<compile_context>
chip_gen: v6e
topology: v6e:2x2x1
jax: 0.10.0
libtpu: 0.0.40
codegen_flags: <defaults>
</compile_context>

<pallas_src>
import math
from functools import partial
from typing import NamedTuple

import jax
import jax.numpy as jnp
from jax.experimental import pallas as pl
from jax.experimental.pallas import tpu as pltpu

_BN_EPS = 1e-5


# ----------------------------- small helpers -----------------------------

def _round_up(x, m):
    return (x + m - 1) // m * m


def _pick_m_tile(m, cap=1024):
    """Largest multiple of 8 (<= cap) dividing m; falls back to the full extent."""
    t = min(m, cap)
    t -= t % 8
    while t >= 8:
        if m % t == 0:
            return t
        t -= 8
    return m


# ----------------------------- Pallas kernels -----------------------------

def _bn_stats_kernel(x_ref, o_ref):
    """Accumulate per-channel sum (row 0) and sum-of-squares (row 1) across M tiles."""
    @pl.when(pl.program_id(0) == 0)
    def _init():
        o_ref[...] = jnp.zeros_like(o_ref)
    x = x_ref[...]
    o_ref[0:1, :] += jnp.sum(x, axis=0, keepdims=True)
    o_ref[1:2, :] += jnp.sum(x * x, axis=0, keepdims=True)


def _accum_conv_taps(xn_ref, w_ref, acc_ref, Ho, Wo, C, ksize, stride):
    """K*K tap-unrolled MXU matmuls (bf16 operands, f32 accumulation), no im2col."""
    first = True
    for i in range(ksize):
        for j in range(ksize):
            if stride == 1:
                xs = xn_ref[pl.ds(i, Ho), pl.ds(j, Wo), :]
            else:
                xs = xn_ref[pl.ds(i, Ho, stride), pl.ds(j, Wo, stride), :]
            part = jnp.dot(xs.reshape(Ho * Wo, C).astype(jnp.bfloat16),
                           w_ref[i * ksize + j],
                           preferred_element_type=jnp.float32)
            if first:
                acc_ref[...] = part
                first = False
            else:
                acc_ref[...] += part


def _stage1_kernel(*refs, ksize, stride, pad, has_shortcut):
    """conv1(relu(bn1(x))) [+ 1x1 shortcut conv] + fused bn2 sum/sumsq reduction."""
    if has_shortcut:
        (x_ref, scale_ref, shift_ref, w1_ref, wsc_ref,
         out1_ref, sc_ref, stats_ref, xn_ref, acc_ref) = refs
    else:
        (x_ref, scale_ref, shift_ref, w1_ref,
         out1_ref, stats_ref, xn_ref, acc_ref) = refs
        wsc_ref = sc_ref = None

    H, W, C = x_ref.shape[1], x_ref.shape[2], x_ref.shape[3]
    Ho, Wo, Co = out1_ref.shape[1], out1_ref.shape[2], out1_ref.shape[3]

    # ---- fused BN1 (per-channel scale/shift) + ReLU prologue into padded VMEM buffer
    if pad > 0:
        xn_ref[...] = jnp.zeros_like(xn_ref)          # conv zero-padding happens AFTER BN
    xn = jnp.maximum(x_ref[0] * scale_ref[...] + shift_ref[...], 0.0)
    xn_ref[pad:pad + H, pad:pad + W, :] = xn

    # ---- 3x3 conv1
    _accum_conv_taps(xn_ref, w1_ref, acc_ref, Ho, Wo, C, ksize, stride)
    out = acc_ref[...]
    out1_ref[0] = out.reshape(Ho, Wo, Co).astype(out1_ref.dtype)

    # ---- fused bn2 statistics accumulated across the batch grid (resident output block)
    @pl.when(pl.program_id(0) == 0)
    def _init_stats():
        stats_ref[...] = jnp.zeros_like(stats_ref)
    stats_ref[0:1, :] += jnp.sum(out, axis=0, keepdims=True)
    stats_ref[1:2, :] += jnp.sum(out * out, axis=0, keepdims=True)

    # ---- fused 1x1 shortcut conv, reusing the normalized input already in VMEM
    if has_shortcut:
        if stride == 1:
            xs = xn_ref[pl.ds(pad, Ho), pl.ds(pad, Wo), :]
        else:
            xs = xn_ref[pl.ds(pad, Ho, stride), pl.ds(pad, Wo, stride), :]
        sc = jnp.dot(xs.reshape(Ho * Wo, C).astype(jnp.bfloat16), wsc_ref[0],
                     preferred_element_type=jnp.float32)
        sc_ref[0] = sc.reshape(Ho, Wo, Co).astype(sc_ref.dtype)


def _stage2_kernel(x_ref, scale_ref, shift_ref, w_ref, res_ref, o_ref,
                   xn_ref, acc_ref, *, ksize, stride, pad):
    """conv2(relu(bn2(x))) + residual, all fused for one batch element."""
    H, W, C = x_ref.shape[1], x_ref.shape[2], x_ref.shape[3]
    Ho, Wo, Co = o_ref.shape[1], o_ref.shape[2], o_ref.shape[3]

    if pad > 0:
        xn_ref[...] = jnp.zeros_like(xn_ref)
    xn = jnp.maximum(x_ref[0] * scale_ref[...] + shift_ref[...], 0.0)
    xn_ref[pad:pad + H, pad:pad + W, :] = xn

    _accum_conv_taps(xn_ref, w_ref, acc_ref, Ho, Wo, C, ksize, stride)

    result = acc_ref[...].reshape(Ho, Wo, Co) + res_ref[0]   # fused residual add
    o_ref[0] = result.astype(o_ref.dtype)


# ----------------------------- Pallas wrappers -----------------------------

def _pallas_bn_stats(x):
    """Per-channel batch mean / biased variance over [N,H,W,C] via a tiled reduction."""
    N, H, W, C = x.shape
    M = N * H * W
    x2 = x.reshape(M, C)
    TM = _pick_m_tile(M)
    stats = pl.pallas_call(
        _bn_stats_kernel,
        out_shape=jax.ShapeDtypeStruct((8, C), jnp.float32),
        grid_spec=pltpu.PrefetchScalarGridSpec(
            num_scalar_prefetch=0,
            grid=(M // TM,),
            in_specs=[pl.BlockSpec((TM, C), lambda m: (m, 0))],
            out_specs=pl.BlockSpec((8, C), lambda m: (0, 0))),
        compiler_params=pltpu.CompilerParams(dimension_semantics=("arbitrary",)),
    )(x2)
    mean = stats[0] / M
    var = jnp.maximum(stats[1] / M - mean * mean, 0.0)   # biased var (PyTorch training BN)
    return mean, var


def _stage1(x, scale, shift, w1, w_sc, *, stride):
    """Fused bn1+relu -> conv1 (3x3) [+ 1x1 shortcut conv] + bn2 stats, grid over batch."""
    N, H, W, C = x.shape
    taps, C2, Co = w1.shape
    ksize, pad = 3, 1
    assert C2 == C and taps == ksize * ksize
    Ho = (H + 2 * pad - ksize) // stride + 1
    Wo = (W + 2 * pad - ksize) // stride + 1
    HP, WP = H + 2 * pad, W + 2 * pad
    has_shortcut = w_sc is not None

    kernel = partial(_stage1_kernel, ksize=ksize, stride=stride, pad=pad,
                     has_shortcut=has_shortcut)

    in_specs = [
        pl.BlockSpec((1, H, W, C), lambda n: (n, 0, 0, 0)),
        pl.BlockSpec((1, C), lambda n: (0, 0)),
        pl.BlockSpec((1, C), lambda n: (0, 0)),
        pl.BlockSpec((taps, C, Co), lambda n: (0, 0, 0)),
    ]
    args = [x, scale.reshape(1, C), shift.reshape(1, C), w1]
    out_shapes = [jax.ShapeDtypeStruct((N, Ho, Wo, Co), jnp.float32)]
    out_specs = [pl.BlockSpec((1, Ho, Wo, Co), lambda n: (n, 0, 0, 0))]
    if has_shortcut:
        in_specs.append(pl.BlockSpec((1, C, Co), lambda n: (0, 0, 0)))
        args.append(w_sc)
        out_shapes.append(jax.ShapeDtypeStruct((N, Ho, Wo, Co), jnp.float32))
        out_specs.append(pl.BlockSpec((1, Ho, Wo, Co), lambda n: (n, 0, 0, 0)))
    out_shapes.append(jax.ShapeDtypeStruct((8, Co), jnp.float32))      # bn2 sum / sumsq
    out_specs.append(pl.BlockSpec((8, Co), lambda n: (0, 0)))

    results = pl.pallas_call(
        kernel,
        out_shape=tuple(out_shapes),
        grid_spec=pltpu.PrefetchScalarGridSpec(
            num_scalar_prefetch=0,
            grid=(N,),
            in_specs=in_specs,
            out_specs=tuple(out_specs),
            scratch_shapes=[pltpu.VMEM((HP, WP, C), jnp.float32),     # padded BN+ReLU input
                            pltpu.VMEM((Ho * Wo, Co), jnp.float32)]),  # f32 conv accumulator
        compiler_params=pltpu.CompilerParams(
            dimension_semantics=("arbitrary",)),   # cross-batch stats accumulator
    )(*args)

    if has_shortcut:
        out1, sc, stats = results
    else:
        out1, stats = results
        sc = None
    return out1, sc, stats


def _stage2(x, scale, shift, w, residual):
    """Fused bn2+relu -> conv2 (3x3, stride 1) + residual add, grid over batch."""
    N, H, W, C = x.shape
    taps, C2, Co = w.shape
    ksize, pad, stride = 3, 1, 1
    assert C2 == C and taps == ksize * ksize
    Ho, Wo = H, W
    HP, WP = H + 2 * pad, W + 2 * pad

    kernel = partial(_stage2_kernel, ksize=ksize, stride=stride, pad=pad)

    return pl.pallas_call(
        kernel,
        out_shape=jax.ShapeDtypeStruct((N, Ho, Wo, Co), jnp.float32),
        grid_spec=pltpu.PrefetchScalarGridSpec(
            num_scalar_prefetch=0,
            grid=(N,),
            in_specs=[
                pl.BlockSpec((1, H, W, C), lambda n: (n, 0, 0, 0)),
                pl.BlockSpec((1, C), lambda n: (0, 0)),
                pl.BlockSpec((1, C), lambda n: (0, 0)),
                pl.BlockSpec((taps, C, Co), lambda n: (0, 0, 0)),
                pl.BlockSpec((1, Ho, Wo, Co), lambda n: (n, 0, 0, 0)),
            ],
            out_specs=pl.BlockSpec((1, Ho, Wo, Co), lambda n: (n, 0, 0, 0)),
            scratch_shapes=[pltpu.VMEM((HP, WP, C), jnp.float32),
                            pltpu.VMEM((Ho * Wo, Co), jnp.float32)]),
        compiler_params=pltpu.CompilerParams(dimension_semantics=("parallel",)),
    )(x, scale.reshape(1, C), shift.reshape(1, C), w, residual)


# ----------------------------- BasicBlock forward -----------------------------

class BlockConfig(NamedTuple):
    in_planes: int
    out_planes: int
    stride: int


def basic_block_forward(x_nchw, params, cfg: BlockConfig):
    """Training-mode forward of the pre-activation BasicBlock; NCHW f32 in/out."""
    cin, cout, s = cfg.in_planes, cfg.out_planes, cfg.stride
    equal = cin == cout
    cpi = params["w1"].shape[1]

    x = jnp.transpose(x_nchw, (0, 2, 3, 1)).astype(jnp.float32)      # NCHW -> NHWC
    x = jnp.pad(x, ((0, 0), (0, 0), (0, 0), (0, cpi - cin)))         # lane-dense channels

    # bn1: batch stats via a tiled Pallas reduction; normalize+ReLU fused into stage 1
    mean1, var1 = _pallas_bn_stats(x)
    scale1 = params["bn1_gamma"] * jax.lax.rsqrt(var1 + _BN_EPS)
    shift1 = params["bn1_beta"] - mean1 * scale1

    w_sc = None if equal else params["w_sc"]
    out1, shortcut, stats2 = _stage1(x, scale1, shift1, params["w1"], w_sc, stride=s)

    # bn2 stats came out of stage 1's fused reduction (no extra pass over out1)
    N, Ho, Wo, _ = out1.shape
    M2 = N * Ho * Wo
    mean2 = stats2[0] / M2
    var2 = jnp.maximum(stats2[1] / M2 - mean2 * mean2, 0.0)
    scale2 = params["bn2_gamma"] * jax.lax.rsqrt(var2 + _BN_EPS)
    shift2 = params["bn2_beta"] - mean2 * scale2

    residual = x if equal else shortcut                  # raw x, as in PyTorch, when equal
    out = _stage2(out1, scale2, shift2, params["w2"], residual)       # add fused in epilogue

    return jnp.transpose(out[..., :cout], (0, 3, 1, 2))              # NHWC -> NCHW


# ----------------------------- Init (matches WRN conv init) -----------------------------

def _init_conv(key, k, cin, cout, cpi, cpo):
    std = math.sqrt(2.0 / (k * k * cout))             # normal(0, sqrt(2/(k*k*out_channels)))
    w = std * jax.random.normal(key, (k, k, cin, cout), jnp.float32)
    wp = jnp.zeros((k * k, cpi, cpo), jnp.float32)
    wp = wp.at[:, :cin, :cout].set(w.reshape(k * k, cin, cout))
    return wp.astype(jnp.bfloat16)                    # bf16 weights feed the MXU directly


def init_basic_block(key, cfg: BlockConfig):
    cin, cout = cfg.in_planes, cfg.out_planes
    cpi, cpo = _round_up(cin, 128), _round_up(cout, 128)
    k1, k2, k3, k4 = jax.random.split(key, 4)

    def bn_param(base, c, cp, kk, jitter):
        v = base + jitter * jax.random.normal(kk, (c,), jnp.float32)
        if cp > c:
            v = jnp.concatenate([v, jnp.full((cp - c,), base, jnp.float32)])
        return v

    params = {
        "bn1_gamma": bn_param(1.0, cin, cpi, jax.random.fold_in(k3, 0), 0.1),
        "bn1_beta":  bn_param(0.0, cin, cpi, jax.random.fold_in(k3, 1), 0.1),
        "bn2_gamma": bn_param(1.0, cout, cpo, jax.random.fold_in(k4, 0), 0.1),
        "bn2_beta":  bn_param(0.0, cout, cpo, jax.random.fold_in(k4, 1), 0.1),
        "w1": _init_conv(k1, 3, cin, cout, cpi, cpo),
        "w2": _init_conv(k2, 3, cout, cout, cpo, cpo),
    }
    if cin != cout:
        params["w_sc"] = _init_conv(jax.random.fold_in(k1, 7), 1, cin, cout, cpi, cpo)
    return params


# ----------------------------- Pure-JAX reference -----------------------------

def _reference_basic_block(x_nchw, params, cfg: BlockConfig):
    """f32 reference of the same training-mode math (uses the same bf16 weights)."""
    cin, cout, s = cfg.in_planes, cfg.out_planes, cfg.stride
    equal = cin == cout

    def bn_relu(x, gamma, beta):
        m = jnp.mean(x, axis=(0, 2, 3), keepdims=True)
        v = jnp.mean((x - m) ** 2, axis=(0, 2, 3), keepdims=True)
        y = (x - m) * jax.lax.rsqrt(v + _BN_EPS)
        y = y * gamma.reshape(1, -1, 1, 1) + beta.reshape(1, -1, 1, 1)
        return jnp.maximum(y, 0.0)

    def conv(x, wp, k, ci, co, st, pd):
        w = wp.astype(jnp.float32)[:, :ci, :co].reshape(k, k, ci, co)
        w = jnp.transpose(w, (3, 2, 0, 1))            # -> OIHW
        return jax.lax.conv_general_dilated(
            x, w, (st, st), [(pd, pd), (pd, pd)],
            dimension_numbers=("NCHW", "OIHW", "NCHW"))

    xa = bn_relu(x_nchw, params["bn1_gamma"][:cin], params["bn1_beta"][:cin])
    out = conv(xa, params["w1"], 3, cin, cout, s, 1)
    out = bn_relu(out, params["bn2_gamma"][:cout], params["bn2_beta"][:cout])
    out = conv(out, params["w2"], 3, cout, cout, 1, 1)
    sc = x_nchw if equal else conv(xa, params["w_sc"], 1, cin, cout, s, 0)
    return sc + out


# ----------------------------- Main -----------------------------

if __name__ == "__main__":
    key = jax.random.PRNGKey(0)
    kx, ka, kb = jax.random.split(key, 3)

    cfg_a = BlockConfig(in_planes=16, out_planes=32, stride=2)   # convShortcut branch
    cfg_b = BlockConfig(in_planes=32, out_planes=32, stride=1)   # identity branch
    params_a = init_basic_block(ka, cfg_a)
    params_b = init_basic_block(kb, cfg_b)

    x = jax.random.normal(kx, (2, 16, 16, 16), jnp.float32)      # NCHW, as in PyTorch

    fwd = jax.jit(basic_block_forward, static_argnums=(2,))
    out_a = jax.block_until_ready(fwd(x, params_a, cfg_a))
    out_b = jax.block_until_ready(fwd(out_a, params_b, cfg_b))

    assert out_a.shape == (2, 32, 8, 8), out_a.shape
    assert out_b.shape == (2, 32, 8, 8), out_b.shape
    assert bool(jnp.all(jnp.isfinite(out_a))) and bool(jnp.all(jnp.isfinite(out_b)))

    # correctness vs. the pure-JAX f32 reference (loose tolerance: bf16 MXU operands)
    ref_a = _reference_basic_block(x, params_a, cfg_a)
    ref_b = _reference_basic_block(out_a, params_b, cfg_b)
    assert jnp.allclose(out_a, ref_a, atol=1e-1, rtol=1e-1), float(jnp.max(jnp.abs(out_a - ref_a)))
    assert jnp.allclose(out_b, ref_b, atol=1e-1, rtol=1e-1), float(jnp.max(jnp.abs(out_b - ref_b)))

    print("KERNEL_OK")
</pallas_src>

<mosaic_0001>
module attributes {stable_mosaic.version = 11 : i64} {
  func.func @_bn_stats_kernel(%arg0: i32, %arg1: memref<512x128xf32, #tpu.memory_space<vmem>>, %arg2: memref<8x128xf32, #tpu.memory_space<vmem>>) attributes {dimension_semantics = [#tpu.dimension_semantics<arbitrary>], iteration_bounds = array<i64: 1>, scalar_prefetch = 0 : i64, scratch_operands = 0 : i64, tpu.core_type = #tpu.core_type<tc>, window_params = [{transform_indices = @transform_0, window_bounds = array<i64: 512, 128>}, {pipeline_mode = #tpu.pipeline_mode<synchronous>, transform_indices = @transform_1, window_bounds = array<i64: 8, 128>}]} {
    %c0_i32 = arith.constant 0 : i32
    %0 = arith.cmpi eq, %arg0, %c0_i32 : i32
    %1 = arith.extui %0 : i1 to i32
    %c0_i32_0 = arith.constant 0 : i32
    %2 = arith.cmpi ne, %1, %c0_i32_0 : i32
    scf.if %2 {
      %cst_10 = arith.constant 0.000000e+00 : f32
      %15 = vector.broadcast %cst_10 : f32 to vector<8x128xf32>
      %c0_11 = arith.constant 0 : index
      %c0_12 = arith.constant 0 : index
      %16 = vector.load %arg2[%c0_11, %c0_12] : memref<8x128xf32, #tpu.memory_space<vmem>>, vector<8x128xf32>
      tpu.vector_store %arg2[%c0_11, %c0_12], %15 {strides = array<i32>} : memref<8x128xf32, #tpu.memory_space<vmem>>, vector<8x128xf32>,
    } else {
    }
    %c0 = arith.constant 0 : index
    %c0_1 = arith.constant 0 : index
    %3 = vector.load %arg1[%c0, %c0_1] : memref<512x128xf32, #tpu.memory_space<vmem>>, vector<512x128xf32>
    %c0_2 = arith.constant 0 : index
    %c0_3 = arith.constant 0 : index
    %4 = vector.load %arg2[%c0_2, %c0_3] : memref<8x128xf32, #tpu.memory_space<vmem>>, vector<1x128xf32>
    %cst = arith.constant dense<0.000000e+00> : vector<128xf32>
    %5 = vector.multi_reduction <add>, %3, %cst [0] : vector<512x128xf32> to vector<128xf32>
    %6 = vector.shape_cast %5 : vector<128xf32> to vector<1x128xf32>
    %7 = arith.addf %4, %6 : vector<1x128xf32>
    %c0_4 = arith.constant 0 : index
    %c0_5 = arith.constant 0 : index
    %8 = vector.load %arg2[%c0_4, %c0_5] : memref<8x128xf32, #tpu.memory_space<vmem>>, vector<1x128xf32>
    tpu.vector_store %arg2[%c0_4, %c0_5], %7 {strides = array<i32>} : memref<8x128xf32, #tpu.memory_space<vmem>>, vector<1x128xf32>,
    %c1 = arith.constant 1 : index
    %c0_6 = arith.constant 0 : index
    %9 = vector.load %arg2[%c1, %c0_6] : memref<8x128xf32, #tpu.memory_space<vmem>>, vector<1x128xf32>
    %10 = arith.mulf %3, %3 : vector<512x128xf32>
    %cst_7 = arith.constant dense<0.000000e+00> : vector<128xf32>
    %11 = vector.multi_reduction <add>, %10, %cst_7 [0] : vector<512x128xf32> to vector<128xf32>
    %12 = vector.shape_cast %11 : vector<128xf32> to vector<1x128xf32>
    %13 = arith.addf %9, %12 : vector<1x128xf32>
    %c1_8 = arith.constant 1 : index
    %c0_9 = arith.constant 0 : index
    %14 = vector.load %arg2[%c1_8, %c0_9] : memref<8x128xf32, #tpu.memory_space<vmem>>, vector<1x128xf32>
    tpu.vector_store %arg2[%c1_8, %c0_9], %13 {strides = array<i32>} : memref<8x128xf32, #tpu.memory_space<vmem>>, vector<1x128xf32>,
    return
  }
  func.func @transform_0(%arg0: i32) -> (i32, i32) {
    %c0_i32 = arith.constant 0 : i32
    %c0_i32_0 = arith.constant 0 : i32
    return %arg0, %c0_i32 : i32, i32
  }
  func.func @transform_1(%arg0: i32) -> (i32, i32) {
    %c0_i32 = arith.constant 0 : i32
    %c0_i32_0 = arith.constant 0 : i32
    %c0_i32_1 = arith.constant 0 : i32
    return %c0_i32, %c0_i32_0 : i32, i32
  }
}

module attributes {stable_mosaic.version = 11 : i64} {
  func.func @_stage1_kernel(%arg0: i32, %arg1: memref<1x16x16x128xf32, #tpu.memory_space<vmem>>, %arg2: memref<1x128xf32, #tpu.memory_space<vmem>>, %arg3: memref<1x128xf32, #tpu.memory_space<vmem>>, %arg4: memref<9x128x128xbf16, #tpu.memory_space<vmem>>, %arg5: memref<1x128x128xbf16, #tpu.memory_space<vmem>>, %arg6: memref<1x8x8x128xf32, #tpu.memory_space<vmem>>, %arg7: memref<1x8x8x128xf32, #tpu.memory_space<vmem>>, %arg8: memref<8x128xf32, #tpu.memory_space<vmem>>, %arg9: memref<18x18x128xf32, #tpu.memory_space<vmem>>, %arg10: memref<64x128xf32, #tpu.memory_space<vmem>>) attributes {dimension_semantics = [#tpu.dimension_semantics<arbitrary>], iteration_bounds = array<i64: 2>, scalar_prefetch = 0 : i64, scratch_operands = 2 : i64, tpu.core_type = #tpu.core_type<tc>, window_params = [{transform_indices = @transform_0, window_bounds = array<i64: 1, 16, 16, 128>}, {pipeline_mode = #tpu.pipeline_mode<synchronous>, transform_indices = @transform_1, window_bounds = array<i64: 1, 128>}, {pipeline_mode = #tpu.pipeline_mode<synchronous>, transform_indices = @transform_2, window_bounds = array<i64: 1, 128>}, {pipeline_mode = #tpu.pipeline_mode<synchronous>, transform_indices = @transform_3, window_bounds = array<i64: 9, 128, 128>}, {pipeline_mode = #tpu.pipeline_mode<synchronous>, transform_indices = @transform_4, window_bounds = array<i64: 1, 128, 128>}, {transform_indices = @transform_5, window_bounds = array<i64: 1, 8, 8, 128>}, {transform_indices = @transform_6, window_bounds = array<i64: 1, 8, 8, 128>}, {pipeline_mode = #tpu.pipeline_mode<synchronous>, transform_indices = @transform_7, window_bounds = array<i64: 8, 128>}]} {
    %cst = arith.constant 0.000000e+00 : f32
    %0 = vector.broadcast %cst : f32 to vector<18x18x128xf32>
    %c0 = arith.constant 0 : index
    %c0_0 = arith.constant 0 : index
    %c0_1 = arith.constant 0 : index
    %1 = vector.load %arg9[%c0, %c0_0, %c0_1] : memref<18x18x128xf32, #tpu.memory_space<vmem>>, vector<18x18x128xf32>
    tpu.vector_store %arg9[%c0, %c0_0, %c0_1], %0 {strides = array<i32>} : memref<18x18x128xf32, #tpu.memory_space<vmem>>, vector<18x18x128xf32>,
    %c0_2 = arith.constant 0 : index
    %c0_3 = arith.constant 0 : index
    %c0_4 = arith.constant 0 : index
    %c0_5 = arith.constant 0 : index
    %2 = vector.load %arg1[%c0_2, %c0_3, %c0_4, %c0_5] : memref<1x16x16x128xf32, #tpu.memory_space<vmem>>, vector<1x16x16x128xf32>
    %3 = vector.shape_cast %2 : vector<1x16x16x128xf32> to vector<16x16x128xf32>
    %c0_6 = arith.constant 0 : index
    %c0_7 = arith.constant 0 : index
    %4 = vector.load %arg2[%c0_6, %c0_7] : memref<1x128xf32, #tpu.memory_space<vmem>>, vector<1x128xf32>
    %5 = vector.shape_cast %4 : vector<1x128xf32> to vector<1x1x128xf32>
    %6 = vector.broadcast %5 : vector<1x1x128xf32> to vector<16x16x128xf32>
    %7 = arith.mulf %3, %6 : vector<16x16x128xf32>
    %c0_8 = arith.constant 0 : index
    %c0_9 = arith.constant 0 : index
    %8 = vector.load %arg3[%c0_8, %c0_9] : memref<1x128xf32, #tpu.memory_space<vmem>>, vector<1x128xf32>
    %9 = vector.shape_cast %8 : vector<1x128xf32> to vector<1x1x128xf32>
    %10 = vector.broadcast %9 : vector<1x1x128xf32> to vector<16x16x128xf32>
    %11 = arith.addf %7, %10 : vector<16x16x128xf32>
    %cst_10 = arith.constant 0.000000e+00 : f32
    %12 = vector.broadcast %cst_10 : f32 to vector<16x16x128xf32>
    %13 = arith.maximumf %11, %12 : vector<16x16x128xf32>
    %c1 = arith.constant 1 : index
    %c1_11 = arith.constant 1 : index
    %c0_12 = arith.constant 0 : index
    %14 = vector.load %arg9[%c1, %c1_11, %c0_12] : memref<18x18x128xf32, #tpu.memory_space<vmem>>, vector<16x16x128xf32>
    tpu.vector_store %arg9[%c1, %c1_11, %c0_12], %13 {strides = array<i32>} : memref<18x18x128xf32, #tpu.memory_space<vmem>>, vector<16x16x128xf32>,
    %c0_13 = arith.constant 0 : index
    %c0_14 = arith.constant 0 : index
    %c0_15 = arith.constant 0 : index
    %15 = tpu.strided_load %arg9[%c0_13, %c0_14, %c0_15] {strides = array<i32: 2, 2, 1>} : memref<18x18x128xf32, #tpu.memory_space<vmem>>, vector<8x8x128xf32>
    %16 = vector.shape_cast %15 : vector<8x8x128xf32> to vector<64x128xf32>
    %17 = arith.truncf %16 : vector<64x128xf32> to vector<64x128xbf16>
    %c0_16 = arith.constant 0 : index
    %c0_17 = arith.constant 0 : index
    %c0_18 = arith.constant 0 : index
    %18 = vector.load %arg4[%c0_16, %c0_17, %c0_18] : memref<9x128x128xbf16, #tpu.memory_space<vmem>>, vector<1x128x128xbf16>
    %19 = vector.shape_cast %18 : vector<1x128x128xbf16> to vector<128x128xbf16>
    %cst_19 = arith.constant dense<0.000000e+00> : vector<64x128xf32>
    %20 = tpu.matmul %17, %19, %cst_19 {dimension_numbers = #tpu.dot_dimension_numbers<[1], [0], [0], [1], [0, 0, 1, 1], [], []>} : vector<64x128xbf16>, vector<128x128xbf16>, vector<64x128xf32> -> vector<64x128xf32>
    %c0_20 = arith.constant 0 : index
    %c0_21 = arith.constant 0 : index
    %21 = vector.load %arg10[%c0_20, %c0_21] : memref<64x128xf32, #tpu.memory_space<vmem>>, vector<64x128xf32>
    tpu.vector_store %arg10[%c0_20, %c0_21], %20 {strides = array<i32>} : memref<64x128xf32, #tpu.memory_space<vmem>>, vector<64x128xf32>,
    %c0_22 = arith.constant 0 : index
    %c1_23 = arith.constant 1 : index
    %c0_24 = arith.constant 0 : index
    %22 = tpu.strided_load %arg9[%c0_22, %c1_23, %c0_24] {strides = array<i32: 2, 2, 1>} : memref<18x18x128xf32, #tpu.memory_space<vmem>>, vector<8x8x128xf32>
    %23 = vector.shape_cast %22 : vector<8x8x128xf32> to vector<64x128xf32>
    %24 = arith.truncf %23 : vector<64x128xf32> to vector<64x128xbf16>
    %c1_25 = arith.constant 1 : index
    %c0_26 = arith.constant 0 : index
    %c0_27 = arith.constant 0 : index
    %25 = vector.load %arg4[%c1_25, %c0_26, %c0_27] : memref<9x128x128xbf16, #tpu.memory_space<vmem>>, vector<1x128x128xbf16>
    %26 = vector.shape_cast %25 : vector<1x128x128xbf16> to vector<128x128xbf16>
    %cst_28 = arith.constant dense<0.000000e+00> : vector<64x128xf32>
    %27 = tpu.matmul %24, %26, %cst_28 {dimension_numbers = #tpu.dot_dimension_numbers<[1], [0], [0], [1], [0, 0, 1, 1], [], []>} : vector<64x128xbf16>, vector<128x128xbf16>, vector<64x128xf32> -> vector<64x128xf32>
    %c0_29 = arith.constant 0 : index
    %c0_30 = arith.constant 0 : index
    %28 = vector.load %arg10[%c0_29, %c0_30] : memref<64x128xf32, #tpu.memory_space<vmem>>, vector<64x128xf32>
    %29 = arith.addf %28, %27 : vector<64x128xf32>
    %c0_31 = arith.constant 0 : index
    %c0_32 = arith.constant 0 : index
    %30 = vector.load %arg10[%c0_31, %c0_32] : memref<64x128xf32, #tpu.memory_space<vmem>>, vector<64x128xf32>
    tpu.vector_store %arg10[%c0_31, %c0_32], %29 {strides = array<i32>} : memref<64x128xf32, #tpu.memory_space<vmem>>, vector<64x128xf32>,
    %c0_33 = arith.constant 0 : index
    %c2 = arith.constant 2 : index
    %c0_34 = arith.constant 0 : index
    %31 = tpu.strided_load %arg9[%c0_33, %c2, %c0_34] {strides = array<i32: 2, 2, 1>} : memref<18x18x128xf32, #tpu.memory_space<vmem>>, vector<8x8x128xf32>
    %32 = vector.shape_cast %31 : vector<8x8x128xf32> to vector<64x128xf32>
    %33 = arith.truncf %32 : vector<64x128xf32> to vector<64x128xbf16>
    %c2_35 = arith.constant 2 : index
    %c0_36 = arith.constant 0 : index
    %c0_37 = arith.constant 0 : index
    %34 = vector.load %arg4[%c2_35, %c0_36, %c0_37] : memref<9x128x128xbf16, #tpu.memory_space<vmem>>, vector<1x128x128xbf16>
    %35 = vector.shape_cast %34 : vector<1x128x128xbf16> to vector<128x128xbf16>
    %cst_38 = arith.constant dense<0.000000e+00> : vector<64x128xf32>
    %36 = tpu.matmul %33, %35, %cst_38 {dimension_numbers = #tpu.dot_dimension_numbers<[1], [0], [0], [1], [0, 0, 1, 1], [], []>} : vector<64x128xbf16>, vector<128x128xbf16>, vector<64x128xf32> -> vector<64x128xf32>
    %c0_39 = arith.constant 0 : index
    %c0_40 = arith.constant 0 : index
    %37 = vector.load %arg10[%c0_39, %c0_40] : memref<64x128xf32, #tpu.memory_space<vmem>>, vector<64x128xf32>
    %38 = arith.addf %37, %36 : vector<64x128xf32>
    %c0_41 = arith.constant 0 : index
    %c0_42 = arith.constant 0 : index
    %39 = vector.load %arg10[%c0_41, %c0_42] : memref<64x128xf32, #tpu.memory_space<vmem>>, vector<64x128xf32>
    tpu.vector_store %arg10[%c0_41, %c0_42], %38 {strides = array<i32>} : memref<64x128xf32, #tpu.memory_space<vmem>>, vector<64x128xf32>,
    %c1_43 = arith.constant 1 : index
    %c0_44 = arith.constant 0 : index
    %c0_45 = arith.constant 0 : index
    %40 = tpu.strided_load %arg9[%c1_43, %c0_44, %c0_45] {strides = array<i32: 2, 2, 1>} : memref<18x18x128xf32, #tpu.memory_space<vmem>>, vector<8x8x128xf32>
    %41 = vector.shape_cast %40 : vector<8x8x128xf32> to vector<64x128xf32>
    %42 = arith.truncf %41 : vector<64x128xf32> to vector<64x128xbf16>
    %c3 = arith.constant 3 : index
    %c0_46 = arith.constant 0 : index
    %c0_47 = arith.constant 0 : index
    %43 = vector.load %arg4[%c3, %c0_46, %c0_47] : memref<9x128x128xbf16, #tpu.memory_space<vmem>>, vector<1x128x128xbf16>
    %44 = vector.shape_cast %43 : vector<1x128x128xbf16> to vector<128x128xbf16>
    %cst_48 = arith.constant dense<0.000000e+00> : vector<64x128xf32>
    %45 = tpu.matmul %42, %44, %cst_48 {dimension_numbers = #tpu.dot_dimension_numbers<[1], [0], [0], [1], [0, 0, 1, 1], [], []>} : vector<64x128xbf16>, vector<128x128xbf16>, vector<64x128xf32> -> vector<64x128xf32>
    %c0_49 = arith.constant 0 : index
    %c0_50 = arith.constant 0 : index
    %46 = vector.load %arg10[%c0_49, %c0_50] : memref<64x128xf32, #tpu.memory_space<vmem>>, vector<64x128xf32>
    %47 = arith.addf %46, %45 : vector<64x128xf32>
    %c0_51 = arith.constant 0 : index
    %c0_52 = arith.constant 0 : index
    %48 = vector.load %arg10[%c0_51, %c0_52] : memref<64x128xf32, #tpu.memory_space<vmem>>, vector<64x128xf32>
    tpu.vector_store %arg10[%c0_51, %c0_52], %47 {strides = array<i32>} : memref<64x128xf32, #tpu.memory_space<vmem>>, vector<64x128xf32>,
    %c1_53 = arith.constant 1 : index
    %c1_54 = arith.constant 1 : index
    %c0_55 = arith.constant 0 : index
    %49 = tpu.strided_load %arg9[%c1_53, %c1_54, %c0_55] {strides = array<i32: 2, 2, 1>} : memref<18x18x128xf32, #tpu.memory_space<vmem>>, vector<8x8x128xf32>
    %50 = vector.shape_cast %49 : vector<8x8x128xf32> to vector<64x128xf32>
    %51 = arith.truncf %50 : vector<64x128xf32> to vector<64x128xbf16>
    %c4 = arith.constant 4 : index
    %c0_56 = arith.constant 0 : index
    %c0_57 = arith.constant 0 : index
    %52 = vector.load %arg4[%c4, %c0_56, %c0_57] : memref<9x128x128xbf16, #tpu.memory_space<vmem>>, vector<1x128x128xbf16>
    %53 = vector.shape_cast %52 : vector<1x128x128xbf16> to vector<128x128xbf16>
    %cst_58 = arith.constant dense<0.000000e+00> : vector<64x128xf32>
    %54 = tpu.matmul %51, %53, %cst_58 {dimension_numbers = #tpu.dot_dimension_numbers<[1], [0], [0], [1], [0, 0, 1, 1], [], []>} : vector<64x128xbf16>, vector<128x128xbf16>, vector<64x128xf32> -> vector<64x128xf32>
    %c0_59 = arith.constant 0 : index
    %c0_60 = arith.constant 0 : index
    %55 = vector.load %arg10[%c0_59, %c0_60] : memref<64x128xf32, #tpu.memory_space<vmem>>, vector<64x128xf32>
    %56 = arith.addf %55, %54 : vector<64x128xf32>
    %c0_61 = arith.constant 0 : index
    %c0_62 = arith.constant 0 : index
    %57 = vector.load %arg10[%c0_61, %c0_62] : memref<64x128xf32, #tpu.memory_space<vmem>>, vector<64x128xf32>
    tpu.vector_store %arg10[%c0_61, %c0_62], %56 {strides = array<i32>} : memref<64x128xf32, #tpu.memory_space<vmem>>, vector<64x128xf32>,
    %c1_63 = arith.constant 1 : index
    %c2_64 = arith.constant 2 : index
    %c0_65 = arith.constant 0 : index
    %58 = tpu.strided_load %arg9[%c1_63, %c2_64, %c0_65] {strides = array<i32: 2, 2, 1>} : memref<18x18x128xf32, #tpu.memory_space<vmem>>, vector<8x8x128xf32>
    %59 = vector.shape_cast %58 : vector<8x8x128xf32> to vector<64x128xf32>
    %60 = arith.truncf %59 : vector<64x128xf32> to vector<64x128xbf16>
    %c5 = arith.constant 5 : index
    %c0_66 = arith.constant 0 : index
    %c0_67 = arith.constant 0 : index
    %61 = vector.load %arg4[%c5, %c0_66, %c0_67] : memref<9x128x128xbf16, #tpu.memory_space<vmem>>, vector<1x128x128xbf16>
    %62 = vector.shape_cast %61 : vector<1x128x128xbf16> to vector<128x128xbf16>
    %cst_68 = arith.constant dense<0.000000e+00> : vector<64x128xf32>
    %63 = tpu.matmul %60, %62, %cst_68 {dimension_numbers = #tpu.dot_dimension_numbers<[1], [0], [0], [1], [0, 0, 1, 1], [], []>} : vector<64x128xbf16>, vector<128x128xbf16>, vector<64x128xf32> -> vector<64x128xf32>
    %c0_69 = arith.constant 0 : index
    %c0_70 = arith.constant 0 : index
    %64 = vector.load %arg10[%c0_69, %c0_70] : memref<64x128xf32, #tpu.memory_space<vmem>>, vector<64x128xf32>
    %65 = arith.addf %64, %63 : vector<64x128xf32>
    %c0_71 = arith.constant 0 : index
    %c0_72 = arith.constant 0 : index
    %66 = vector.load %arg10[%c0_71, %c0_72] : memref<64x128xf32, #tpu.memory_space<vmem>>, vector<64x128xf32>
    tpu.vector_store %arg10[%c0_71, %c0_72], %65 {strides = array<i32>} : memref<64x128xf32, #tpu.memory_space<vmem>>, vector<64x128xf32>,
    %c2_73 = arith.constant 2 : index
    %c0_74 = arith.constant 0 : index
    %c0_75 = arith.constant 0 : index
    %67 = tpu.strided_load %arg9[%c2_73, %c0_74, %c0_75] {strides = array<i32: 2, 2, 1>} : memref<18x18x128xf32, #tpu.memory_space<vmem>>, vector<8x8x128xf32>
    %68 = vector.shape_cast %67 : vector<8x8x128xf32> to vector<64x128xf32>
    %69 = arith.truncf %68 : vector<64x128xf32> to vector<64x128xbf16>
    %c6 = arith.constant 6 : index
    %c0_76 = arith.constant 0 : index
    %c0_77 = arith.constant 0 : index
    %70 = vector.load %arg4[%c6, %c0_76, %c0_77] : memref<9x128x128xbf16, #tpu.memory_space<vmem>>, vector<1x128x128xbf16>
    %71 = vector.shape_cast %70 : vector<1x128x128xbf16> to vector<128x128xbf16>
    %cst_78 = arith.constant dense<0.000000e+00> : vector<64x128xf32>
    %72 = tpu.matmul %69, %71, %cst_78 {dimension_numbers = #tpu.dot_dimension_numbers<[1], [0], [0], [1], [0, 0, 1, 1], [], []>} : vector<64x128xbf16>, vector<128x128xbf16>, vector<64x128xf32> -> vector<64x128xf32>
    %c0_79 = arith.constant 0 : index
    %c0_80 = arith.constant 0 : index
    %73 = vector.load %arg10[%c0_79, %c0_80] : memref<64x128xf32, #tpu.memory_space<vmem>>, vector<64x128xf32>
    %74 = arith.addf %73, %72 : vector<64x128xf32>
    %c0_81 = arith.constant 0 : index
    %c0_82 = arith.constant 0 : index
    %75 = vector.load %arg10[%c0_81, %c0_82] : memref<64x128xf32, #tpu.memory_space<vmem>>, vector<64x128xf32>
    tpu.vector_store %arg10[%c0_81, %c0_82], %74 {strides = array<i32>} : memref<64x128xf32, #tpu.memory_space<vmem>>, vector<64x128xf32>,
    %c2_83 = arith.constant 2 : index
    %c1_84 = arith.constant 1 : index
    %c0_85 = arith.constant 0 : index
    %76 = tpu.strided_load %arg9[%c2_83, %c1_84, %c0_85] {strides = array<i32: 2, 2, 1>} : memref<18x18x128xf32, #tpu.memory_space<vmem>>, vector<8x8x128xf32>
    %77 = vector.shape_cast %76 : vector<8x8x128xf32> to vector<64x128xf32>
    %78 = arith.truncf %77 : vector<64x128xf32> to vector<64x128xbf16>
    %c7 = arith.constant 7 : index
    %c0_86 = arith.constant 0 : index
    %c0_87 = arith.constant 0 : index
    %79 = vector.load %arg4[%c7, %c0_86, %c0_87] : memref<9x128x128xbf16, #tpu.memory_space<vmem>>, vector<1x128x128xbf16>
    %80 = vector.shape_cast %79 : vector<1x128x128xbf16> to vector<128x128xbf16>
    %cst_88 = arith.constant dense<0.000000e+00> : vector<64x128xf32>
    %81 = tpu.matmul %78, %80, %cst_88 {dimension_numbers = #tpu.dot_dimension_numbers<[1], [0], [0], [1], [0, 0, 1, 1], [], []>} : vector<64x128xbf16>, vector<128x128xbf16>, vector<64x128xf32> -> vector<64x128xf32>
    %c0_89 = arith.constant 0 : index
    %c0_90 = arith.constant 0 : index
    %82 = vector.load %arg10[%c0_89, %c0_90] : memref<64x128xf32, #tpu.memory_space<vmem>>, vector<64x128xf32>
    %83 = arith.addf %82, %81 : vector<64x128xf32>
    %c0_91 = arith.constant 0 : index
    %c0_92 = arith.constant 0 : index
    %84 = vector.load %arg10[%c0_91, %c0_92] : memref<64x128xf32, #tpu.memory_space<vmem>>, vector<64x128xf32>
    tpu.vector_store %arg10[%c0_91, %c0_92], %83 {strides = array<i32>} : memref<64x128xf32, #tpu.memory_space<vmem>>, vector<64x128xf32>,
    %c2_93 = arith.constant 2 : index
    %c2_94 = arith.constant 2 : index
    %c0_95 = arith.constant 0 : index
    %85 = tpu.strided_load %arg9[%c2_93, %c2_94, %c0_95] {strides = array<i32: 2, 2, 1>} : memref<18x18x128xf32, #tpu.memory_space<vmem>>, vector<8x8x128xf32>
    %86 = vector.shape_cast %85 : vector<8x8x128xf32> to vector<64x128xf32>
    %87 = arith.truncf %86 : vector<64x128xf32> to vector<64x128xbf16>
    %c8 = arith.constant 8 : index
    %c0_96 = arith.constant 0 : index
    %c0_97 = arith.constant 0 : index
    %88 = vector.load %arg4[%c8, %c0_96, %c0_97] : memref<9x128x128xbf16, #tpu.memory_space<vmem>>, vector<1x128x128xbf16>
    %89 = vector.shape_cast %88 : vector<1x128x128xbf16> to vector<128x128xbf16>
    %cst_98 = arith.constant dense<0.000000e+00> : vector<64x128xf32>
    %90 = tpu.matmul %87, %89, %cst_98 {dimension_numbers = #tpu.dot_dimension_numbers<[1], [0], [0], [1], [0, 0, 1, 1], [], []>} : vector<64x128xbf16>, vector<128x128xbf16>, vector<64x128xf32> -> vector<64x128xf32>
    %c0_99 = arith.constant 0 : index
    %c0_100 = arith.constant 0 : index
    %91 = vector.load %arg10[%c0_99, %c0_100] : memref<64x128xf32, #tpu.memory_space<vmem>>, vector<64x128xf32>
    %92 = arith.addf %91, %90 : vector<64x128xf32>
    %c0_101 = arith.constant 0 : index
    %c0_102 = arith.constant 0 : index
    %93 = vector.load %arg10[%c0_101, %c0_102] : memref<64x128xf32, #tpu.memory_space<vmem>>, vector<64x128xf32>
    tpu.vector_store %arg10[%c0_101, %c0_102], %92 {strides = array<i32>} : memref<64x128xf32, #tpu.memory_space<vmem>>, vector<64x128xf32>,
    %c0_103 = arith.constant 0 : index
    %c0_104 = arith.constant 0 : index
    %94 = vector.load %arg10[%c0_103, %c0_104] : memref<64x128xf32, #tpu.memory_space<vmem>>, vector<64x128xf32>
    %95 = vector.shape_cast %94 : vector<64x128xf32> to vector<8x8x128xf32>
    %c0_105 = arith.constant 0 : index
    %c0_106 = arith.constant 0 : index
    %c0_107 = arith.constant 0 : index
    %c0_108 = arith.constant 0 : index
    %96 = vector.load %arg6[%c0_105, %c0_106, %c0_107, %c0_108] : memref<1x8x8x128xf32, #tpu.memory_space<vmem>>, vector<1x8x8x128xf32>
    %97 = vector.shape_cast %96 : vector<1x8x8x128xf32> to vector<8x8x128xf32>
    %98 = vector.shape_cast %95 : vector<8x8x128xf32> to vector<1x8x8x128xf32>
    tpu.vector_store %arg6[%c0_105, %c0_106, %c0_107, %c0_108], %98 {strides = array<i32>} : memref<1x8x8x128xf32, #tpu.memory_space<vmem>>, vector<1x8x8x128xf32>,
    %c0_i32 = arith.constant 0 : i32
    %99 = arith.cmpi eq, %arg0, %c0_i32 : i32
    %100 = arith.extui %99 : i1 to i32
    %c0_i32_109 = arith.constant 0 : i32
    %101 = arith.cmpi ne, %100, %c0_i32_109 : i32
    scf.if %101 {
      %cst_131 = arith.constant 0.000000e+00 : f32
      %123 = vector.broadcast %cst_131 : f32 to vector<8x128xf32>
      %c0_132 = arith.constant 0 : index
      %c0_133 = arith.constant 0 : index
      %124 = vector.load %arg8[%c0_132, %c0_133] : memref<8x128xf32, #tpu.memory_space<vmem>>, vector<8x128xf32>
      tpu.vector_store %arg8[%c0_132, %c0_133], %123 {strides = array<i32>} : memref<8x128xf32, #tpu.memory_space<vmem>>, vector<8x128xf32>,
    } else {
    }
    %c0_110 = arith.constant 0 : index
    %c0_111 = arith.constant 0 : index
    %102 = vector.load %arg8[%c0_110, %c0_111] : memref<8x128xf32, #tpu.memory_space<vmem>>, vector<1x128xf32>
    %cst_112 = arith.constant dense<0.000000e+00> : vector<128xf32>
    %103 = vector.multi_reduction <add>, %94, %cst_112 [0] : vector<64x128xf32> to vector<128xf32>
    %104 = vector.shape_cast %103 : vector<128xf32> to vector<1x128xf32>
    %105 = arith.addf %102, %104 : vector<1x128xf32>
    %c0_113 = arith.constant 0 : index
    %c0_114 = arith.constant 0 : index
    %106 = vector.load %arg8[%c0_113, %c0_114] : memref<8x128xf32, #tpu.memory_space<vmem>>, vector<1x128xf32>
    tpu.vector_store %arg8[%c0_113, %c0_114], %105 {strides = array<i32>} : memref<8x128xf32, #tpu.memory_space<vmem>>, vector<1x128xf32>,
    %c1_115 = arith.constant 1 : index
    %c0_116 = arith.constant 0 : index
    %107 = vector.load %arg8[%c1_115, %c0_116] : memref<8x128xf32, #tpu.memory_space<vmem>>, vector<1x128xf32>
    %108 = arith.mulf %94, %94 : vector<64x128xf32>
    %cst_117 = arith.constant dense<0.000000e+00> : vector<128xf32>
    %109 = vector.multi_reduction <add>, %108, %cst_117 [0] : vector<64x128xf32> to vector<128xf32>
    %110 = vector.shape_cast %109 : vector<128xf32> to vector<1x128xf32>
    %111 = arith.addf %107, %110 : vector<1x128xf32>
    %c1_118 = arith.constant 1 : index
    %c0_119 = arith.constant 0 : index
    %112 = vector.load %arg8[%c1_118, %c0_119] : memref<8x128xf32, #tpu.memory_space<vmem>>, vector<1x128xf32>
    tpu.vector_store %arg8[%c1_118, %c0_119], %111 {strides = array<i32>} : memref<8x128xf32, #tpu.memory_space<vmem>>, vector<1x128xf32>,
    %c1_120 = arith.constant 1 : index
    %c1_121 = arith.constant 1 : index
    %c0_122 = arith.constant 0 : index
    %113 = tpu.strided_load %arg9[%c1_120, %c1_121, %c0_122] {strides = array<i32: 2, 2, 1>} : memref<18x18x128xf32, #tpu.memory_space<vmem>>, vector<8x8x128xf32>
    %114 = vector.shape_cast %113 : vector<8x8x128xf32> to vector<64x128xf32>
    %115 = arith.truncf %114 : vector<64x128xf32> to vector<64x128xbf16>
    %c0_123 = arith.constant 0 : index
    %c0_124 = arith.constant 0 : index
    %c0_125 = arith.constant 0 : index
    %116 = vector.load %arg5[%c0_123, %c0_124, %c0_125] : memref<1x128x128xbf16, #tpu.memory_space<vmem>>, vector<1x128x128xbf16>
    %117 = vector.shape_cast %116 : vector<1x128x128xbf16> to vector<128x128xbf16>
    %cst_126 = arith.constant dense<0.000000e+00> : vector<64x128xf32>
    %118 = tpu.matmul %115, %117, %cst_126 {dimension_numbers = #tpu.dot_dimension_numbers<[1], [0], [0], [1], [0, 0, 1, 1], [], []>} : vector<64x128xbf16>, vector<128x128xbf16>, vector<64x128xf32> -> vector<64x128xf32>
    %119 = vector.shape_cast %118 : vector<64x128xf32> to vector<8x8x128xf32>
    %c0_127 = arith.constant 0 : index
    %c0_128 = arith.constant 0 : index
    %c0_129 = arith.constant 0 : index
    %c0_130 = arith.constant 0 : index
    %120 = vector.load %arg7[%c0_127, %c0_128, %c0_129, %c0_130] : memref<1x8x8x128xf32, #tpu.memory_space<vmem>>, vector<1x8x8x128xf32>
    %121 = vector.shape_cast %120 : vector<1x8x8x128xf32> to vector<8x8x128xf32>
    %122 = vector.shape_cast %119 : vector<8x8x128xf32> to vector<1x8x8x128xf32>
    tpu.vector_store %arg7[%c0_127, %c0_128, %c0_129, %c0_130], %122 {strides = array<i32>} : memref<1x8x8x128xf32, #tpu.memory_space<vmem>>, vector<1x8x8x128xf32>,
    return
  }
  func.func @transform_0(%arg0: i32) -> (i32, i32, i32, i32) {
    %c0_i32 = arith.constant 0 : i32
    %c0_i32_0 = arith.constant 0 : i32
    %c0_i32_1 = arith.constant 0 : i32
    %c0_i32_2 = arith.constant 0 : i32
    return %arg0, %c0_i32, %c0_i32_0, %c0_i32_1 : i32, i32, i32, i32
  }
  func.func @transform_1(%arg0: i32) -> (i32, i32) {
    %c0_i32 = arith.constant 0 : i32
    %c0_i32_0 = arith.constant 0 : i32
    %c0_i32_1 = arith.constant 0 : i32
    return %c0_i32, %c0_i32_0 : i32, i32
  }
  func.func @transform_2(%arg0: i32) -> (i32, i32) {
    %c0_i32 = arith.constant 0 : i32
    %c0_i32_0 = arith.constant 0 : i32
    %c0_i32_1 = arith.constant 0 : i32
    return %c0_i32, %c0_i32_0 : i32, i32
  }
  func.func @transform_3(%arg0: i32) -> (i32, i32, i32) {
    %c0_i32 = arith.constant 0 : i32
    %c0_i32_0 = arith.constant 0 : i32
    %c0_i32_1 = arith.constant 0 : i32
    %c0_i32_2 = arith.constant 0 : i32
    return %c0_i32, %c0_i32_0, %c0_i32_1 : i32, i32, i32
  }
  func.func @transform_4(%arg0: i32) -> (i32, i32, i32) {
    %c0_i32 = arith.constant 0 : i32
    %c0_i32_0 = arith.constant 0 : i32
    %c0_i32_1 = arith.constant 0 : i32
    %c0_i32_2 = arith.constant 0 : i32
    return %c0_i32, %c0_i32_0, %c0_i32_1 : i32, i32, i32
  }
  func.func @transform_5(%arg0: i32) -> (i32, i32, i32, i32) {
    %c0_i32 = arith.constant 0 : i32
    %c0_i32_0 = arith.constant 0 : i32
    %c0_i32_1 = arith.constant 0 : i32
    %c0_i32_2 = arith.constant 0 : i32
    return %arg0, %c0_i32, %c0_i32_0, %c0_i32_1 : i32, i32, i32, i32
  }
  func.func @transform_6(%arg0: i32) -> (i32, i32, i32, i32) {
    %c0_i32 = arith.constant 0 : i32
    %c0_i32_0 = arith.constant 0 : i32
    %c0_i32_1 = arith.constant 0 : i32
    %c0_i32_2 = arith.constant 0 : i32
    return %arg0, %c0_i32, %c0_i32_0, %c0_i32_1 : i32, i32, i32, i32
  }
  func.func @transform_7(%arg0: i32) -> (i32, i32) {
    %c0_i32 = arith.constant 0 : i32
    %c0_i32_0 = arith.constant 0 : i32
    %c0_i32_1 = arith.constant 0 : i32
    return %c0_i32, %c0_i32_0 : i32, i32
  }
}

module attributes {stable_mosaic.version = 11 : i64} {
  func.func @_stage2_kernel(%arg0: i32, %arg1: memref<1x8x8x128xf32, #tpu.memory_space<vmem>>, %arg2: memref<1x128xf32, #tpu.memory_space<vmem>>, %arg3: memref<1x128xf32, #tpu.memory_space<vmem>>, %arg4: memref<9x128x128xbf16, #tpu.memory_space<vmem>>, %arg5: memref<1x8x8x128xf32, #tpu.memory_space<vmem>>, %arg6: memref<1x8x8x128xf32, #tpu.memory_space<vmem>>, %arg7: memref<10x10x128xf32, #tpu.memory_space<vmem>>, %arg8: memref<64x128xf32, #tpu.memory_space<vmem>>) attributes {dimension_semantics = [#tpu.dimension_semantics<parallel>], iteration_bounds = array<i64: 2>, scalar_prefetch = 0 : i64, scratch_operands = 2 : i64, tpu.core_type = #tpu.core_type<tc>, window_params = [{transform_indices = @transform_0, window_bounds = array<i64: 1, 8, 8, 128>}, {pipeline_mode = #tpu.pipeline_mode<synchronous>, transform_indices = @transform_1, window_bounds = array<i64: 1, 128>}, {pipeline_mode = #tpu.pipeline_mode<synchronous>, transform_indices = @transform_2, window_bounds = array<i64: 1, 128>}, {pipeline_mode = #tpu.pipeline_mode<synchronous>, transform_indices = @transform_3, window_bounds = array<i64: 9, 128, 128>}, {transform_indices = @transform_4, window_bounds = array<i64: 1, 8, 8, 128>}, {transform_indices = @transform_5, window_bounds = array<i64: 1, 8, 8, 128>}]} {
    %cst = arith.constant 0.000000e+00 : f32
    %0 = vector.broadcast %cst : f32 to vector<10x10x128xf32>
    %c0 = arith.constant 0 : index
    %c0_0 = arith.constant 0 : index
    %c0_1 = arith.constant 0 : index
    %1 = vector.load %arg7[%c0, %c0_0, %c0_1] : memref<10x10x128xf32, #tpu.memory_space<vmem>>, vector<10x10x128xf32>
    tpu.vector_store %arg7[%c0, %c0_0, %c0_1], %0 {strides = array<i32>} : memref<10x10x128xf32, #tpu.memory_space<vmem>>, vector<10x10x128xf32>,
    %c0_2 = arith.constant 0 : index
    %c0_3 = arith.constant 0 : index
    %c0_4 = arith.constant 0 : index
    %c0_5 = arith.constant 0 : index
    %2 = vector.load %arg1[%c0_2, %c0_3, %c0_4, %c0_5] : memref<1x8x8x128xf32, #tpu.memory_space<vmem>>, vector<1x8x8x128xf32>
    %3 = vector.shape_cast %2 : vector<1x8x8x128xf32> to vector<8x8x128xf32>
    %c0_6 = arith.constant 0 : index
    %c0_7 = arith.constant 0 : index
    %4 = vector.load %arg2[%c0_6, %c0_7] : memref<1x128xf32, #tpu.memory_space<vmem>>, vector<1x128xf32>
    %5 = vector.shape_cast %4 : vector<1x128xf32> to vector<1x1x128xf32>
    %6 = vector.broadcast %5 : vector<1x1x128xf32> to vector<8x8x128xf32>
    %7 = arith.mulf %3, %6 : vector<8x8x128xf32>
    %c0_8 = arith.constant 0 : index
    %c0_9 = arith.constant 0 : index
    %8 = vector.load %arg3[%c0_8, %c0_9] : memref<1x128xf32, #tpu.memory_space<vmem>>, vector<1x128xf32>
    %9 = vector.shape_cast %8 : vector<1x128xf32> to vector<1x1x128xf32>
    %10 = vector.broadcast %9 : vector<1x1x128xf32> to vector<8x8x128xf32>
    %11 = arith.addf %7, %10 : vector<8x8x128xf32>
    %cst_10 = arith.constant 0.000000e+00 : f32
    %12 = vector.broadcast %cst_10 : f32 to vector<8x8x128xf32>
    %13 = arith.maximumf %11, %12 : vector<8x8x128xf32>
    %c1 = arith.constant 1 : index
    %c1_11 = arith.constant 1 : index
    %c0_12 = arith.constant 0 : index
    %14 = vector.load %arg7[%c1, %c1_11, %c0_12] : memref<10x10x128xf32, #tpu.memory_space<vmem>>, vector<8x8x128xf32>
    tpu.vector_store %arg7[%c1, %c1_11, %c0_12], %13 {strides = array<i32>} : memref<10x10x128xf32, #tpu.memory_space<vmem>>, vector<8x8x128xf32>,
    %c0_13 = arith.constant 0 : index
    %c0_14 = arith.constant 0 : index
    %c0_15 = arith.constant 0 : index
    %15 = vector.load %arg7[%c0_13, %c0_14, %c0_15] : memref<10x10x128xf32, #tpu.memory_space<vmem>>, vector<8x8x128xf32>
    %16 = vector.shape_cast %15 : vector<8x8x128xf32> to vector<64x128xf32>
    %17 = arith.truncf %16 : vector<64x128xf32> to vector<64x128xbf16>
    %c0_16 = arith.constant 0 : index
    %c0_17 = arith.constant 0 : index
    %c0_18 = arith.constant 0 : index
    %18 = vector.load %arg4[%c0_16, %c0_17, %c0_18] : memref<9x128x128xbf16, #tpu.memory_space<vmem>>, vector<1x128x128xbf16>
    %19 = vector.shape_cast %18 : vector<1x128x128xbf16> to vector<128x128xbf16>
    %cst_19 = arith.constant dense<0.000000e+00> : vector<64x128xf32>
    %20 = tpu.matmul %17, %19, %cst_19 {dimension_numbers = #tpu.dot_dimension_numbers<[1], [0], [0], [1], [0, 0, 1, 1], [], []>} : vector<64x128xbf16>, vector<128x128xbf16>, vector<64x128xf32> -> vector<64x128xf32>
    %c0_20 = arith.constant 0 : index
    %c0_21 = arith.constant 0 : index
    %21 = vector.load %arg8[%c0_20, %c0_21] : memref<64x128xf32, #tpu.memory_space<vmem>>, vector<64x128xf32>
    tpu.vector_store %arg8[%c0_20, %c0_21], %20 {strides = array<i32>} : memref<64x128xf32, #tpu.memory_space<vmem>>, vector<64x128xf32>,
    %c0_22 = arith.constant 0 : index
    %c1_23 = arith.constant 1 : index
    %c0_24 = arith.constant 0 : index
    %22 = vector.load %arg7[%c0_22, %c1_23, %c0_24] : memref<10x10x128xf32, #tpu.memory_space<vmem>>, vector<8x8x128xf32>
    %23 = vector.shape_cast %22 : vector<8x8x128xf32> to vector<64x128xf32>
    %24 = arith.truncf %23 : vector<64x128xf32> to vector<64x128xbf16>
    %c1_25 = arith.constant 1 : index
    %c0_26 = arith.constant 0 : index
    %c0_27 = arith.constant 0 : index
    %25 = vector.load %arg4[%c1_25, %c0_26, %c0_27] : memref<9x128x128xbf16, #tpu.memory_space<vmem>>, vector<1x128x128xbf16>
    %26 = vector.shape_cast %25 : vector<1x128x128xbf16> to vector<128x128xbf16>
    %cst_28 = arith.constant dense<0.000000e+00> : vector<64x128xf32>
    %27 = tpu.matmul %24, %26, %cst_28 {dimension_numbers = #tpu.dot_dimension_numbers<[1], [0], [0], [1], [0, 0, 1, 1], [], []>} : vector<64x128xbf16>, vector<128x128xbf16>, vector<64x128xf32> -> vector<64x128xf32>
    %c0_29 = arith.constant 0 : index
    %c0_30 = arith.constant 0 : index
    %28 = vector.load %arg8[%c0_29, %c0_30] : memref<64x128xf32, #tpu.memory_space<vmem>>, vector<64x128xf32>
    %29 = arith.addf %28, %27 : vector<64x128xf32>
    %c0_31 = arith.constant 0 : index
    %c0_32 = arith.constant 0 : index
    %30 = vector.load %arg8[%c0_31, %c0_32] : memref<64x128xf32, #tpu.memory_space<vmem>>, vector<64x128xf32>
    tpu.vector_store %arg8[%c0_31, %c0_32], %29 {strides = array<i32>} : memref<64x128xf32, #tpu.memory_space<vmem>>, vector<64x128xf32>,
    %c0_33 = arith.constant 0 : index
    %c2 = arith.constant 2 : index
    %c0_34 = arith.constant 0 : index
    %31 = vector.load %arg7[%c0_33, %c2, %c0_34] : memref<10x10x128xf32, #tpu.memory_space<vmem>>, vector<8x8x128xf32>
    %32 = vector.shape_cast %31 : vector<8x8x128xf32> to vector<64x128xf32>
    %33 = arith.truncf %32 : vector<64x128xf32> to vector<64x128xbf16>
    %c2_35 = arith.constant 2 : index
    %c0_36 = arith.constant 0 : index
    %c0_37 = arith.constant 0 : index
    %34 = vector.load %arg4[%c2_35, %c0_36, %c0_37] : memref<9x128x128xbf16, #tpu.memory_space<vmem>>, vector<1x128x128xbf16>
    %35 = vector.shape_cast %34 : vector<1x128x128xbf16> to vector<128x128xbf16>
    %cst_38 = arith.constant dense<0.000000e+00> : vector<64x128xf32>
    %36 = tpu.matmul %33, %35, %cst_38 {dimension_numbers = #tpu.dot_dimension_numbers<[1], [0], [0], [1], [0, 0, 1, 1], [], []>} : vector<64x128xbf16>, vector<128x128xbf16>, vector<64x128xf32> -> vector<64x128xf32>
    %c0_39 = arith.constant 0 : index
    %c0_40 = arith.constant 0 : index
    %37 = vector.load %arg8[%c0_39, %c0_40] : memref<64x128xf32, #tpu.memory_space<vmem>>, vector<64x128xf32>
    %38 = arith.addf %37, %36 : vector<64x128xf32>
    %c0_41 = arith.constant 0 : index
    %c0_42 = arith.constant 0 : index
    %39 = vector.load %arg8[%c0_41, %c0_42] : memref<64x128xf32, #tpu.memory_space<vmem>>, vector<64x128xf32>
    tpu.vector_store %arg8[%c0_41, %c0_42], %38 {strides = array<i32>} : memref<64x128xf32, #tpu.memory_space<vmem>>, vector<64x128xf32>,
    %c1_43 = arith.constant 1 : index
    %c0_44 = arith.constant 0 : index
    %c0_45 = arith.constant 0 : index
    %40 = vector.load %arg7[%c1_43, %c0_44, %c0_45] : memref<10x10x128xf32, #tpu.memory_space<vmem>>, vector<8x8x128xf32>
    %41 = vector.shape_cast %40 : vector<8x8x128xf32> to vector<64x128xf32>
    %42 = arith.truncf %41 : vector<64x128xf32> to vector<64x128xbf16>
    %c3 = arith.constant 3 : index
    %c0_46 = arith.constant 0 : index
    %c0_47 = arith.constant 0 : index
    %43 = vector.load %arg4[%c3, %c0_46, %c0_47] : memref<9x128x128xbf16, #tpu.memory_space<vmem>>, vector<1x128x128xbf16>
    %44 = vector.shape_cast %43 : vector<1x128x128xbf16> to vector<128x128xbf16>
    %cst_48 = arith.constant dense<0.000000e+00> : vector<64x128xf32>
    %45 = tpu.matmul %42, %44, %cst_48 {dimension_numbers = #tpu.dot_dimension_numbers<[1], [0], [0], [1], [0, 0, 1, 1], [], []>} : vector<64x128xbf16>, vector<128x128xbf16>, vector<64x128xf32> -> vector<64x128xf32>
    %c0_49 = arith.constant 0 : index
    %c0_50 = arith.constant 0 : index
    %46 = vector.load %arg8[%c0_49, %c0_50] : memref<64x128xf32, #tpu.memory_space<vmem>>, vector<64x128xf32>
    %47 = arith.addf %46, %45 : vector<64x128xf32>
    %c0_51 = arith.constant 0 : index
    %c0_52 = arith.constant 0 : index
    %48 = vector.load %arg8[%c0_51, %c0_52] : memref<64x128xf32, #tpu.memory_space<vmem>>, vector<64x128xf32>
    tpu.vector_store %arg8[%c0_51, %c0_52], %47 {strides = array<i32>} : memref<64x128xf32, #tpu.memory_space<vmem>>, vector<64x128xf32>,
    %c1_53 = arith.constant 1 : index
    %c1_54 = arith.constant 1 : index
    %c0_55 = arith.constant 0 : index
    %49 = vector.load %arg7[%c1_53, %c1_54, %c0_55] : memref<10x10x128xf32, #tpu.memory_space<vmem>>, vector<8x8x128xf32>
    %50 = vector.shape_cast %49 : vector<8x8x128xf32> to vector<64x128xf32>
    %51 = arith.truncf %50 : vector<64x128xf32> to vector<64x128xbf16>
    %c4 = arith.constant 4 : index
    %c0_56 = arith.constant 0 : index
    %c0_57 = arith.constant 0 : index
    %52 = vector.load %arg4[%c4, %c0_56, %c0_57] : memref<9x128x128xbf16, #tpu.memory_space<vmem>>, vector<1x128x128xbf16>
    %53 = vector.shape_cast %52 : vector<1x128x128xbf16> to vector<128x128xbf16>
    %cst_58 = arith.constant dense<0.000000e+00> : vector<64x128xf32>
    %54 = tpu.matmul %51, %53, %cst_58 {dimension_numbers = #tpu.dot_dimension_numbers<[1], [0], [0], [1], [0, 0, 1, 1], [], []>} : vector<64x128xbf16>, vector<128x128xbf16>, vector<64x128xf32> -> vector<64x128xf32>
    %c0_59 = arith.constant 0 : index
    %c0_60 = arith.constant 0 : index
    %55 = vector.load %arg8[%c0_59, %c0_60] : memref<64x128xf32, #tpu.memory_space<vmem>>, vector<64x128xf32>
    %56 = arith.addf %55, %54 : vector<64x128xf32>
    %c0_61 = arith.constant 0 : index
    %c0_62 = arith.constant 0 : index
    %57 = vector.load %arg8[%c0_61, %c0_62] : memref<64x128xf32, #tpu.memory_space<vmem>>, vector<64x128xf32>
    tpu.vector_store %arg8[%c0_61, %c0_62], %56 {strides = array<i32>} : memref<64x128xf32, #tpu.memory_space<vmem>>, vector<64x128xf32>,
    %c1_63 = arith.constant 1 : index
    %c2_64 = arith.constant 2 : index
    %c0_65 = arith.constant 0 : index
    %58 = vector.load %arg7[%c1_63, %c2_64, %c0_65] : memref<10x10x128xf32, #tpu.memory_space<vmem>>, vector<8x8x128xf32>
    %59 = vector.shape_cast %58 : vector<8x8x128xf32> to vector<64x128xf32>
    %60 = arith.truncf %59 : vector<64x128xf32> to vector<64x128xbf16>
    %c5 = arith.constant 5 : index
    %c0_66 = arith.constant 0 : index
    %c0_67 = arith.constant 0 : index
    %61 = vector.load %arg4[%c5, %c0_66, %c0_67] : memref<9x128x128xbf16, #tpu.memory_space<vmem>>, vector<1x128x128xbf16>
    %62 = vector.shape_cast %61 : vector<1x128x128xbf16> to vector<128x128xbf16>
    %cst_68 = arith.constant dense<0.000000e+00> : vector<64x128xf32>
    %63 = tpu.matmul %60, %62, %cst_68 {dimension_numbers = #tpu.dot_dimension_numbers<[1], [0], [0], [1], [0, 0, 1, 1], [], []>} : vector<64x128xbf16>, vector<128x128xbf16>, vector<64x128xf32> -> vector<64x128xf32>
    %c0_69 = arith.constant 0 : index
    %c0_70 = arith.constant 0 : index
    %64 = vector.load %arg8[%c0_69, %c0_70] : memref<64x128xf32, #tpu.memory_space<vmem>>, vector<64x128xf32>
    %65 = arith.addf %64, %63 : vector<64x128xf32>
    %c0_71 = arith.constant 0 : index
    %c0_72 = arith.constant 0 : index
    %66 = vector.load %arg8[%c0_71, %c0_72] : memref<64x128xf32, #tpu.memory_space<vmem>>, vector<64x128xf32>
    tpu.vector_store %arg8[%c0_71, %c0_72], %65 {strides = array<i32>} : memref<64x128xf32, #tpu.memory_space<vmem>>, vector<64x128xf32>,
    %c2_73 = arith.constant 2 : index
    %c0_74 = arith.constant 0 : index
    %c0_75 = arith.constant 0 : index
    %67 = vector.load %arg7[%c2_73, %c0_74, %c0_75] : memref<10x10x128xf32, #tpu.memory_space<vmem>>, vector<8x8x128xf32>
    %68 = vector.shape_cast %67 : vector<8x8x128xf32> to vector<64x128xf32>
    %69 = arith.truncf %68 : vector<64x128xf32> to vector<64x128xbf16>
    %c6 = arith.constant 6 : index
    %c0_76 = arith.constant 0 : index
    %c0_77 = arith.constant 0 : index
    %70 = vector.load %arg4[%c6, %c0_76, %c0_77] : memref<9x128x128xbf16, #tpu.memory_space<vmem>>, vector<1x128x128xbf16>
    %71 = vector.shape_cast %70 : vector<1x128x128xbf16> to vector<128x128xbf16>
    %cst_78 = arith.constant dense<0.000000e+00> : vector<64x128xf32>
    %72 = tpu.matmul %69, %71, %cst_78 {dimension_numbers = #tpu.dot_dimension_numbers<[1], [0], [0], [1], [0, 0, 1, 1], [], []>} : vector<64x128xbf16>, vector<128x128xbf16>, vector<64x128xf32> -> vector<64x128xf32>
    %c0_79 = arith.constant 0 : index
    %c0_80 = arith.constant 0 : index
    %73 = vector.load %arg8[%c0_79, %c0_80] : memref<64x128xf32, #tpu.memory_space<vmem>>, vector<64x128xf32>
    %74 = arith.addf %73, %72 : vector<64x128xf32>
    %c0_81 = arith.constant 0 : index
    %c0_82 = arith.constant 0 : index
    %75 = vector.load %arg8[%c0_81, %c0_82] : memref<64x128xf32, #tpu.memory_space<vmem>>, vector<64x128xf32>
    tpu.vector_store %arg8[%c0_81, %c0_82], %74 {strides = array<i32>} : memref<64x128xf32, #tpu.memory_space<vmem>>, vector<64x128xf32>,
    %c2_83 = arith.constant 2 : index
    %c1_84 = arith.constant 1 : index
    %c0_85 = arith.constant 0 : index
    %76 = vector.load %arg7[%c2_83, %c1_84, %c0_85] : memref<10x10x128xf32, #tpu.memory_space<vmem>>, vector<8x8x128xf32>
    %77 = vector.shape_cast %76 : vector<8x8x128xf32> to vector<64x128xf32>
    %78 = arith.truncf %77 : vector<64x128xf32> to vector<64x128xbf16>
    %c7 = arith.constant 7 : index
    %c0_86 = arith.constant 0 : index
    %c0_87 = arith.constant 0 : index
    %79 = vector.load %arg4[%c7, %c0_86, %c0_87] : memref<9x128x128xbf16, #tpu.memory_space<vmem>>, vector<1x128x128xbf16>
    %80 = vector.shape_cast %79 : vector<1x128x128xbf16> to vector<128x128xbf16>
    %cst_88 = arith.constant dense<0.000000e+00> : vector<64x128xf32>
    %81 = tpu.matmul %78, %80, %cst_88 {dimension_numbers = #tpu.dot_dimension_numbers<[1], [0], [0], [1], [0, 0, 1, 1], [], []>} : vector<64x128xbf16>, vector<128x128xbf16>, vector<64x128xf32> -> vector<64x128xf32>
    %c0_89 = arith.constant 0 : index
    %c0_90 = arith.constant 0 : index
    %82 = vector.load %arg8[%c0_89, %c0_90] : memref<64x128xf32, #tpu.memory_space<vmem>>, vector<64x128xf32>
    %83 = arith.addf %82, %81 : vector<64x128xf32>
    %c0_91 = arith.constant 0 : index
    %c0_92 = arith.constant 0 : index
    %84 = vector.load %arg8[%c0_91, %c0_92] : memref<64x128xf32, #tpu.memory_space<vmem>>, vector<64x128xf32>
    tpu.vector_store %arg8[%c0_91, %c0_92], %83 {strides = array<i32>} : memref<64x128xf32, #tpu.memory_space<vmem>>, vector<64x128xf32>,
    %c2_93 = arith.constant 2 : index
    %c2_94 = arith.constant 2 : index
    %c0_95 = arith.constant 0 : index
    %85 = vector.load %arg7[%c2_93, %c2_94, %c0_95] : memref<10x10x128xf32, #tpu.memory_space<vmem>>, vector<8x8x128xf32>
    %86 = vector.shape_cast %85 : vector<8x8x128xf32> to vector<64x128xf32>
    %87 = arith.truncf %86 : vector<64x128xf32> to vector<64x128xbf16>
    %c8 = arith.constant 8 : index
    %c0_96 = arith.constant 0 : index
    %c0_97 = arith.constant 0 : index
    %88 = vector.load %arg4[%c8, %c0_96, %c0_97] : memref<9x128x128xbf16, #tpu.memory_space<vmem>>, vector<1x128x128xbf16>
    %89 = vector.shape_cast %88 : vector<1x128x128xbf16> to vector<128x128xbf16>
    %cst_98 = arith.constant dense<0.000000e+00> : vector<64x128xf32>
    %90 = tpu.matmul %87, %89, %cst_98 {dimension_numbers = #tpu.dot_dimension_numbers<[1], [0], [0], [1], [0, 0, 1, 1], [], []>} : vector<64x128xbf16>, vector<128x128xbf16>, vector<64x128xf32> -> vector<64x128xf32>
    %c0_99 = arith.constant 0 : index
    %c0_100 = arith.constant 0 : index
    %91 = vector.load %arg8[%c0_99, %c0_100] : memref<64x128xf32, #tpu.memory_space<vmem>>, vector<64x128xf32>
    %92 = arith.addf %91, %90 : vector<64x128xf32>
    %c0_101 = arith.constant 0 : index
    %c0_102 = arith.constant 0 : index
    %93 = vector.load %arg8[%c0_101, %c0_102] : memref<64x128xf32, #tpu.memory_space<vmem>>, vector<64x128xf32>
    tpu.vector_store %arg8[%c0_101, %c0_102], %92 {strides = array<i32>} : memref<64x128xf32, #tpu.memory_space<vmem>>, vector<64x128xf32>,
    %c0_103 = arith.constant 0 : index
    %c0_104 = arith.constant 0 : index
    %94 = vector.load %arg8[%c0_103, %c0_104] : memref<64x128xf32, #tpu.memory_space<vmem>>, vector<64x128xf32>
    %95 = vector.shape_cast %94 : vector<64x128xf32> to vector<8x8x128xf32>
    %c0_105 = arith.constant 0 : index
    %c0_106 = arith.constant 0 : index
    %c0_107 = arith.constant 0 : index
    %c0_108 = arith.constant 0 : index
    %96 = vector.load %arg5[%c0_105, %c0_106, %c0_107, %c0_108] : memref<1x8x8x128xf32, #tpu.memory_space<vmem>>, vector<1x8x8x128xf32>
    %97 = vector.shape_cast %96 : vector<1x8x8x128xf32> to vector<8x8x128xf32>
    %98 = arith.addf %95, %97 : vector<8x8x128xf32>
    %c0_109 = arith.constant 0 : index
    %c0_110 = arith.constant 0 : index
    %c0_111 = arith.constant 0 : index
    %c0_112 = arith.constant 0 : index
    %99 = vector.load %arg6[%c0_109, %c0_110, %c0_111, %c0_112] : memref<1x8x8x128xf32, #tpu.memory_space<vmem>>, vector<1x8x8x128xf32>
    %100 = vector.shape_cast %99 : vector<1x8x8x128xf32> to vector<8x8x128xf32>
    %101 = vector.shape_cast %98 : vector<8x8x128xf32> to vector<1x8x8x128xf32>
    tpu.vector_store %arg6[%c0_109, %c0_110, %c0_111, %c0_112], %101 {strides = array<i32>} : memref<1x8x8x128xf32, #tpu.memory_space<vmem>>, vector<1x8x8x128xf32>,
    return
  }
  func.func @transform_0(%arg0: i32) -> (i32, i32, i32, i32) {
    %c0_i32 = arith.constant 0 : i32
    %c0_i32_0 = arith.constant 0 : i32
    %c0_i32_1 = arith.constant 0 : i32
    %c0_i32_2 = arith.constant 0 : i32
    return %arg0, %c0_i32, %c0_i32_0, %c0_i32_1 : i32, i32, i32, i32
  }
  func.func @transform_1(%arg0: i32) -> (i32, i32) {
    %c0_i32 = arith.constant 0 : i32
    %c0_i32_0 = arith.constant 0 : i32
    %c0_i32_1 = arith.constant 0 : i32
    return %c0_i32, %c0_i32_0 : i32, i32
  }
  func.func @transform_2(%arg0: i32) -> (i32, i32) {
    %c0_i32 = arith.constant 0 : i32
    %c0_i32_0 = arith.constant 0 : i32
    %c0_i32_1 = arith.constant 0 : i32
    return %c0_i32, %c0_i32_0 : i32, i32
  }
  func.func @transform_3(%arg0: i32) -> (i32, i32, i32) {
    %c0_i32 = arith.constant 0 : i32
    %c0_i32_0 = arith.constant 0 : i32
    %c0_i32_1 = arith.constant 0 : i32
    %c0_i32_2 = arith.constant 0 : i32
    return %c0_i32, %c0_i32_0, %c0_i32_1 : i32, i32, i32
  }
  func.func @transform_4(%arg0: i32) -> (i32, i32, i32, i32) {
    %c0_i32 = arith.constant 0 : i32
    %c0_i32_0 = arith.constant 0 : i32
    %c0_i32_1 = arith.constant 0 : i32
    %c0_i32_2 = arith.constant 0 : i32
    return %arg0, %c0_i32, %c0_i32_0, %c0_i32_1 : i32, i32, i32, i32
  }
  func.func @transform_5(%arg0: i32) -> (i32, i32, i32, i32) {
    %c0_i32 = arith.constant 0 : i32
    %c0_i32_0 = arith.constant 0 : i32
    %c0_i32_1 = arith.constant 0 : i32
    %c0_i32_2 = arith.constant 0 : i32
    return %arg0, %c0_i32, %c0_i32_0, %c0_i32_1 : i32, i32, i32, i32
  }
}

</mosaic_0001>

<llo_original>
// kernel: basic_block_forward.3
$region0: #{basic_block_forward.3}
  #allocation0 [shape = 'u32[]', space=smem, size = 0x4, offset = 0x4, fixed_abs, tag = 'smem constant byte address 0x4 - core index']
  #allocation1 [shape = 'u32[144,128]{1,0:T(1,128)}', space=vmem, size = 0x12000, scoped, tag = 'internal scratch']
  %s0 = inlined_call_operand.vmem [shape: f32[512,128], index: 0, kind: input, shape index: {}]
  %s1 = inlined_call_operand.vmem [shape: f32[8,128], index: 1, kind: output, shape index: {}]
  %s2 = sld [smem:[#allocation0]]
  $region18: #{basic_block_forward.3} parent=0
    _
  %s4 = ssub.s32 1, %s2
  %s5 = scalar_select 0, %s4, %s2
  // Predicated region
  $region2: #{basic_block_forward.3} parent=0 // pred_check
    _
  $region3: #{basic_block_forward.3} parent=0 // pred_check_branch
    %7 = sbr.rel (0) target = $region5
  $region4: #{basic_block_forward.3} parent=0 // pred_region
    _
  $region5: #{basic_block_forward.3} parent=0 // pred_fallthru
    _
  %p8 = scmp.eq.s32.totalorder 0, 0
  // Predicated region
  $region6: #{basic_block_forward.3} parent=0 // pred_check
    %p9 = pneg %p8
  $region7: #{basic_block_forward.3} parent=0 // pred_check_branch
    %11 = sbr.rel (%p9) target = $region9
  $region8: #{basic_block_forward.3} parent=0 // pred_region
    %12 = vst [vmem:[%s1] sm:$0xff] 0.0
  $region9: #{basic_block_forward.3} parent=0 // pred_fallthru
    _
  %v13 = vld [vmem:[%s0] sm:$0xff]
  %v14 = vld [vmem:[%s0 + $0x8] sm:$0xff]
  %v15 = vld [vmem:[%s0 + $0x10] sm:$0xff]
  %v16 = vld [vmem:[%s0 + $0x18] sm:$0xff]
  %v17 = vld [vmem:[%s0 + $0x20] sm:$0xff]
  %v18 = vld [vmem:[%s0 + $0x28] sm:$0xff]
  %v19 = vld [vmem:[%s0 + $0x30] sm:$0xff]
  %v20 = vld [vmem:[%s0 + $0x38] sm:$0xff]
  %v21 = vld [vmem:[%s0 + $0x40] sm:$0xff]
  %v22 = vld [vmem:[%s0 + $0x48] sm:$0xff]
  %v23 = vld [vmem:[%s0 + $0x50] sm:$0xff]
  %v24 = vld [vmem:[%s0 + $0x58] sm:$0xff]
  %v25 = vld [vmem:[%s0 + $0x60] sm:$0xff]
  %v26 = vld [vmem:[%s0 + $0x68] sm:$0xff]
  %v27 = vld [vmem:[%s0 + $0x70] sm:$0xff]
  %v28 = vld [vmem:[%s0 + $0x78] sm:$0xff]
  %v29 = vld [vmem:[%s0 + $0x80] sm:$0xff]
  %v30 = vld [vmem:[%s0 + $0x88] sm:$0xff]
  %v31 = vld [vmem:[%s0 + $0x90] sm:$0xff]
  %v32 = vld [vmem:[%s0 + $0x98] sm:$0xff]
  %v33 = vld [vmem:[%s0 + $0xa0] sm:$0xff]
  %v34 = vld [vmem:[%s0 + $0xa8] sm:$0xff]
  %v35 = vld [vmem:[%s0 + $0xb0] sm:$0xff]
  %v36 = vld [vmem:[%s0 + $0xb8] sm:$0xff]
  %v37 = vld [vmem:[%s0 + $0xc0] sm:$0xff]
  %v38 = vld [vmem:[%s0 + $0xc8] sm:$0xff]
  %v39 = vld [vmem:[%s0 + $0xd0] sm:$0xff]
  %v40 = vld [vmem:[%s0 + $0xd8] sm:$0xff]
  %v41 = vld [vmem:[%s0 + $0xe0] sm:$0xff]
  %v42 = vld [vmem:[%s0 + $0xe8] sm:$0xff]
  %v43 = vld [vmem:[%s0 + $0xf0] sm:$0xff]
  %v44 = vld [vmem:[%s0 + $0xf8] sm:$0xff]
  %v45 = vld [vmem:[%s0 + $0x100] sm:$0xff]
  %v46 = vld [vmem:[%s0 + $0x108] sm:$0xff]
  %v47 = vld [vmem:[%s0 + $0x110] sm:$0xff]
  %v48 = vld [vmem:[%s0 + $0x118] sm:$0xff]
  %v49 = vld [vmem:[%s0 + $0x120] sm:$0xff]
  %v50 = vld [vmem:[%s0 + $0x128] sm:$0xff]
  %v51 = vld [vmem:[%s0 + $0x130] sm:$0xff]
  %v52 = vld [vmem:[%s0 + $0x138] sm:$0xff]
  %v53 = vld [vmem:[%s0 + $0x140] sm:$0xff]
  %v54 = vld [vmem:[%s0 + $0x148] sm:$0xff]
  %v55 = vld [vmem:[%s0 + $0x150] sm:$0xff]
  %v56 = vld [vmem:[%s0 + $0x158] sm:$0xff]
  %v57 = vld [vmem:[%s0 + $0x160] sm:$0xff]
  %v58 = vld [vmem:[%s0 + $0x168] sm:$0xff]
  %v59 = vld [vmem:[%s0 + $0x170] sm:$0xff]
  %v60 = vld [vmem:[%s0 + $0x178] sm:$0xff]
  %v61 = vld [vmem:[%s0 + $0x180] sm:$0xff]
  %v62 = vld [vmem:[%s0 + $0x188] sm:$0xff]
  %v63 = vld [vmem:[%s0 + $0x190] sm:$0xff]
  %v64 = vld [vmem:[%s0 + $0x198] sm:$0xff]
  %v65 = vld [vmem:[%s0 + $0x1a0] sm:$0xff]
  %v66 = vld [vmem:[%s0 + $0x1a8] sm:$0xff]
  %v67 = vld [vmem:[%s0 + $0x1b0] sm:$0xff]
  %v68 = vld [vmem:[%s0 + $0x1b8] sm:$0xff]
  %v69 = vld [vmem:[%s0 + $0x1c0] sm:$0xff]
  %v70 = vld [vmem:[%s0 + $0x1c8] sm:$0xff]
  %v71 = vld [vmem:[%s0 + $0x1d0] sm:$0xff]
  %v72 = vld [vmem:[%s0 + $0x1d8] sm:$0xff]
  %v73 = vld [vmem:[%s0 + $0x1e0] sm:$0xff]
  %v74 = vld [vmem:[%s0 + $0x1e8] sm:$0xff]
  %v75 = vld [vmem:[%s0 + $0x1f0] sm:$0xff]
  %v76 = vld [vmem:[%s0 + $0x1f8] sm:$0xff]
  %v77 = vld [vmem:[%s1] sm:$0x1]
  %v78 = vadd.f32 %v13, %v14
  %v79 = vadd.f32 %v78, %v15
  %v80 = vadd.f32 %v79, %v16
  %v81 = vadd.f32 %v80, %v17
  %v82 = vadd.f32 %v81, %v18
  %v83 = vadd.f32 %v82, %v19
  %v84 = vadd.f32 %v83, %v20
  %v85 = vadd.f32 %v84, %v21
  %v86 = vadd.f32 %v85, %v22
  %v87 = vadd.f32 %v86, %v23
  %v88 = vadd.f32 %v87, %v24
  %v89 = vadd.f32 %v88, %v25
  %v90 = vadd.f32 %v89, %v26
  %v91 = vadd.f32 %v90, %v27
  %v92 = vadd.f32 %v91, %v28
  %v93 = vadd.f32 %v92, %v29
  %v94 = vadd.f32 %v93, %v30
  %v95 = vadd.f32 %v94, %v31
  %v96 = vadd.f32 %v95, %v32
  %v97 = vadd.f32 %v96, %v33
  %v98 = vadd.f32 %v97, %v34
  %v99 = vadd.f32 %v98, %v35
  %v100 = vadd.f32 %v99, %v36
  %v101 = vadd.f32 %v100, %v37
  %v102 = vadd.f32 %v101, %v38
  %v103 = vadd.f32 %v102, %v39
  %v104 = vadd.f32 %v103, %v40
  %v105 = vadd.f32 %v104, %v41
  %v106 = vadd.f32 %v105, %v42
  %v107 = vadd.f32 %v106, %v43
  %v108 = vadd.f32 %v107, %v44
  %v109 = vadd.f32 %v108, %v45
  %v110 = vadd.f32 %v109, %v46
  %v111 = vadd.f32 %v110, %v47
  %v112 = vadd.f32 %v111, %v48
  %v113 = vadd.f32 %v112, %v49
  %v114 = vadd.f32 %v113, %v50
  %v115 = vadd.f32 %v114, %v51
  %v116 = vadd.f32 %v115, %v52
  %v117 = vadd.f32 %v116, %v53
  %v118 = vadd.f32 %v117, %v54
  %v119 = vadd.f32 %v118, %v55
  %v120 = vadd.f32 %v119, %v56
  %v121 = vadd.f32 %v120, %v57
  %v122 = vadd.f32 %v121, %v58
  %v123 = vadd.f32 %v122, %v59
  %v124 = vadd.f32 %v123, %v60
  %v125 = vadd.f32 %v124, %v61
  %v126 = vadd.f32 %v125, %v62
  %v127 = vadd.f32 %v126, %v63
  %v128 = vadd.f32 %v127, %v64
  %v129 = vadd.f32 %v128, %v65
  %v130 = vadd.f32 %v129, %v66
  %v131 = vadd.f32 %v130, %v67
  %v132 = vadd.f32 %v131, %v68
  %v133 = vadd.f32 %v132, %v69
  %v134 = vadd.f32 %v133, %v70
  %v135 = vadd.f32 %v134, %v71
  %v136 = vadd.f32 %v135, %v72
  %v137 = vadd.f32 %v136, %v73
  %v138 = vadd.f32 %v137, %v74
  %v139 = vadd.f32 %v138, %v75
  %v140 = vadd.f32 %v139, %v76
  %v141 = vrot.slane %v140, 4
  %v142 = vadd.f32 %v140, %v141
  %v143 = vrot.slane %v142, 2
  %v144 = vadd.f32 %v142, %v143
  %v145 = vrot.slane %v144, 1
  %v146 = vadd.f32 %v144, %v145
  %v147 = vadd.f32 %v77, %v146
  %148 = vst [vmem:[%s1] sm:$0x1] %v147
  %v149 = vld [vmem:[%s1 + $0x1] sm:$0x1]
  %v150 = vmul.f32 %v13, %v13
  %v151 = vmul.f32 %v14, %v14
  %v152 = vmul.f32 %v15, %v15
  %v153 = vmul.f32 %v16, %v16
  %v154 = vmul.f32 %v17, %v17
  %v155 = vmul.f32 %v18, %v18
  %v156 = vmul.f32 %v19, %v19
  %v157 = vmul.f32 %v20, %v20
  %v158 = vmul.f32 %v21, %v21
  %v159 = vmul.f32 %v22, %v22
  %v160 = vmul.f32 %v23, %v23
  %v161 = vmul.f32 %v24, %v24
  %v162 = vmul.f32 %v25, %v25
  %v163 = vmul.f32 %v26, %v26
  %v164 = vmul.f32 %v27, %v27
  %v165 = vmul.f32 %v28, %v28
  %v166 = vmul.f32 %v29, %v29
  %v167 = vmul.f32 %v30, %v30
  %v168 = vmul.f32 %v31, %v31
  %v169 = vmul.f32 %v32, %v32
  %v170 = vmul.f32 %v33, %v33
  %v171 = vmul.f32 %v34, %v34
  %v172 = vmul.f32 %v35, %v35
  %v173 = vmul.f32 %v36, %v36
  %v174 = vmul.f32 %v37, %v37
  %v175 = vmul.f32 %v38, %v38
  %v176 = vmul.f32 %v39, %v39
  %v177 = vmul.f32 %v40, %v40
  %v178 = vmul.f32 %v41, %v41
  %v179 = vmul.f32 %v42, %v42
  %v180 = vmul.f32 %v43, %v43
  %v181 = vmul.f32 %v44, %v44
  %v182 = vmul.f32 %v45, %v45
  %v183 = vmul.f32 %v46, %v46
  %v184 = vmul.f32 %v47, %v47
  %v185 = vmul.f32 %v48, %v48
  %v186 = vmul.f32 %v49, %v49
  %v187 = vmul.f32 %v50, %v50
  %v188 = vmul.f32 %v51, %v51
  %v189 = vmul.f32 %v52, %v52
  %v190 = vmul.f32 %v53, %v53
  %v191 = vmul.f32 %v54, %v54
  %v192 = vmul.f32 %v55, %v55
  %v193 = vmul.f32 %v56, %v56
  %v194 = vmul.f32 %v57, %v57
  %v195 = vmul.f32 %v58, %v58
  %v196 = vmul.f32 %v59, %v59
  %v197 = vmul.f32 %v60, %v60
  %v198 = vmul.f32 %v61, %v61
  %v199 = vmul.f32 %v62, %v62
  %v200 = vmul.f32 %v63, %v63
  %v201 = vmul.f32 %v64, %v64
  %v202 = vmul.f32 %v65, %v65
  %v203 = vmul.f32 %v66, %v66
  %v204 = vmul.f32 %v67, %v67
  %v205 = vmul.f32 %v68, %v68
  %v206 = vmul.f32 %v69, %v69
  %v207 = vmul.f32 %v70, %v70
  %v208 = vmul.f32 %v71, %v71
  %v209 = vmul.f32 %v72, %v72
  %v210 = vmul.f32 %v73, %v73
  %v211 = vmul.f32 %v74, %v74
  %v212 = vmul.f32 %v75, %v75
  %v213 = vmul.f32 %v76, %v76
  %v214 = vadd.f32 %v150, %v151
  %v215 = vadd.f32 %v214, %v152
  %v216 = vadd.f32 %v215, %v153
  %v217 = vadd.f32 %v216, %v154
  %v218 = vadd.f32 %v217, %v155
  %v219 = vadd.f32 %v218, %v156
  %v220 = vadd.f32 %v219, %v157
  %v221 = vadd.f32 %v220, %v158
  %v222 = vadd.f32 %v221, %v159
  %v223 = vadd.f32 %v222, %v160
  %v224 = vadd.f32 %v223, %v161
  %v225 = vadd.f32 %v224, %v162
  %v226 = vadd.f32 %v225, %v163
  %v227 = vadd.f32 %v226, %v164
  %v228 = vadd.f32 %v227, %v165
  %v229 = vadd.f32 %v228, %v166
  %v230 = vadd.f32 %v229, %v167
  %v231 = vadd.f32 %v230, %v168
  %v232 = vadd.f32 %v231, %v169
  %v233 = vadd.f32 %v232, %v170
  %v234 = vadd.f32 %v233, %v171
  %v235 = vadd.f32 %v234, %v172
  %v236 = vadd.f32 %v235, %v173
  %v237 = vadd.f32 %v236, %v174
  %v238 = vadd.f32 %v237, %v175
  %v239 = vadd.f32 %v238, %v176
  %v240 = vadd.f32 %v239, %v177
  %v241 = vadd.f32 %v240, %v178
  %v242 = vadd.f32 %v241, %v179
  %v243 = vadd.f32 %v242, %v180
  %v244 = vadd.f32 %v243, %v181
  %v245 = vadd.f32 %v244, %v182
  %v246 = vadd.f32 %v245, %v183
  %v247 = vadd.f32 %v246, %v184
  %v248 = vadd.f32 %v247, %v185
  %v249 = vadd.f32 %v248, %v186
  %v250 = vadd.f32 %v249, %v187
  %v251 = vadd.f32 %v250, %v188
  %v252 = vadd.f32 %v251, %v189
  %v253 = vadd.f32 %v252, %v190
  %v254 = vadd.f32 %v253, %v191
  %v255 = vadd.f32 %v254, %v192
  %v256 = vadd.f32 %v255, %v193
  %v257 = vadd.f32 %v256, %v194
  %v258 = vadd.f32 %v257, %v195
  %v259 = vadd.f32 %v258, %v196
  %v260 = vadd.f32 %v259, %v197
  %v261 = vadd.f32 %v260, %v198
  %v262 = vadd.f32 %v261, %v199
  %v263 = vadd.f32 %v262, %v200
  %v264 = vadd.f32 %v263, %v201
  %v265 = vadd.f32 %v264, %v202
  %v266 = vadd.f32 %v265, %v203
  %v267 = vadd.f32 %v266, %v204
  %v268 = vadd.f32 %v267, %v205
  %v269 = vadd.f32 %v268, %v206
  %v270 = vadd.f32 %v269, %v207
  %v271 = vadd.f32 %v270, %v208
  %v272 = vadd.f32 %v271, %v209
  %v273 = vadd.f32 %v272, %v210
  %v274 = vadd.f32 %v273, %v211
  %v275 = vadd.f32 %v274, %v212
  %v276 = vadd.f32 %v275, %v213
  %v277 = vrot.slane %v276, 4
  %v278 = vadd.f32 %v276, %v277
  %v279 = vrot.slane %v278, 2
  %v280 = vadd.f32 %v278, %v279
  %v281 = vrot.slane %v280, 1
  %v282 = vadd.f32 %v280, %v281
  %v283 = vadd.f32 %v149, %v282
  %284 = vst [vmem:[%s1 + $0x1] sm:$0x1] %v283
  // Predicated region
  $region10: #{basic_block_forward.3} parent=0 // pred_check
    _
  $region11: #{basic_block_forward.3} parent=0 // pred_check_branch
    %286 = sbr.rel (0) target = $region13
  $region12: #{basic_block_forward.3} parent=0 // pred_region
    _
  $region13: #{basic_block_forward.3} parent=0 // pred_fallthru
    _
  // Predicated region
  $region14: #{basic_block_forward.3} parent=0 // pred_check
    _
  $region15: #{basic_block_forward.3} parent=0 // pred_check_branch
    %288 = sbr.rel (0) target = $region17
  $region16: #{basic_block_forward.3} parent=0 // pred_region
    _
  $region17: #{basic_block_forward.3} parent=0 // pred_fallthru
    _

// kernel: basic_block_forward.4
$region0: #{basic_block_forward.4}
  #allocation0 [shape = 'u32[]', space=smem, size = 0x4, offset = 0x4, fixed_abs, tag = 'smem constant byte address 0x4 - core index']
  #allocation1 [shape = 'u32[144,128]{1,0:T(1,128)}', space=vmem, size = 0x12000, scoped, tag = 'internal scratch']
  #allocation2 [shape = 'f32[18,18,128]{2,1,0:T(8,128)}', space=vmem, size = 0x36000, scoped, tag = 'scratch operand']
  #allocation3 [shape = 'f32[64,128]{1,0:T(8,128)}', space=vmem, size = 0x8000, scoped, tag = 'scratch operand']
  %s0 = inlined_call_operand.vmem [shape: f32[2,16,16,128], index: 0, kind: input, shape index: {}]
  %s1 = inlined_call_operand.vmem [shape: f32[1,128], index: 1, kind: input, shape index: {}]
  %s2 = inlined_call_operand.vmem [shape: f32[1,128], index: 2, kind: input, shape index: {}]
  %s3 = inlined_call_operand.vmem [shape: bf16[9,128,128], index: 3, kind: input, shape index: {}]
  %s4 = inlined_call_operand.vmem [shape: bf16[1,128,128], index: 4, kind: input, shape index: {}]
  %s5 = inlined_call_operand.vmem [shape: f32[2,8,8,128], index: 5, kind: output, shape index: {0}]
  %s6 = inlined_call_operand.vmem [shape: f32[2,8,8,128], index: 6, kind: output, shape index: {1}]
  %s7 = inlined_call_operand.vmem [shape: f32[8,128], index: 7, kind: output, shape index: {2}]
  %8 = xla_tuple %s5, %s6, %s7
  %s9 = sld [smem:[#allocation0]]
  $region73: #{basic_block_forward.4} parent=0
    _
  %s11 = ssub.s32 1, %s9
  %s12 = scalar_select 0, %s11, %s9
  loop: start=0, step=1, limit=4
  $region2: #{basic_block_forward.4} parent=0 // loop_pre_header
    _
  $region3: #{basic_block_forward.4} parent=0 // loop_header
    %s14 = sphi 0, %s18
    %p15 = scmp.ge.s32.totalorder %s14, 4
    %s24 = sphi 0, %s26
    %s27 = sphi 0, %s24
    %s28 = sphi 0, %s27
    %s44 = sphi 0, %s28
    %s48 = sphi 0, %s48
    %s50 = sphi 0, %s48
    %s51 = sphi 0, %s50
    %s65 = sphi 0, %s51
    %s69 = sphi 0, %s69
    %s71 = sphi 0, %s69
    %s72 = sphi 0, %s71
    %s86 = sphi 0, %s72
    %s90 = sphi 0, %s90
    %s92 = sphi 0, %s90
    %s93 = sphi 0, %s92
    %s107 = sphi 0, %s93
    %s111 = sphi 0, %s111
    %s113 = sphi 0, %s111
    %s114 = sphi 0, %s113
    %s128 = sphi 0, %s114
    %s134 = sphi 0, %s136
    %s137 = sphi 0, %s134
    %s138 = sphi 0, %s137
    %s154 = sphi 0, %s138
    %s160 = sphi 0, %s162
    %s163 = sphi 0, %s160
    %s164 = sphi 0, %s163
    %s180 = sphi 0, %s164
    %s184 = sphi 0, %s184
    %s186 = sphi 0, %s184
    %s187 = sphi 0, %s186
    %s201 = sphi 0, %s187
  $region4: #{basic_block_forward.4} parent=0 // loop_header_branch
    %17 = sbr.rel (%p15) target = $region8
  $region5: #{basic_block_forward.4} parent=0 // loop_body
    %s19 = ssub.s32 %s14, 1
    %s20 = ssub.s32 %s14, 2
    %s21 = sadd.s32 %s14, 1
    %s22 = ssub.s32 %s14, %s21
    %p23 = scmp.eq.s32.totalorder %s22, 0
    %s25 = sadd.s32 %s24, 1
    %s26 = scalar_select %p23, %s24, %s25
    %p29 = pneg %p23
    %p30 = scmp.eq.s32.totalorder %s14, 1
    %p31 = por %p29, %p30
    %p32 = scmp.ne.s32.totalorder %s24, %s27
    %p33 = scmp.eq.s32.totalorder %s14, 0
    %p34 = por %p32, %p33
    %p35 = scmp.ne.s32.totalorder %s24, %s27
    %p36 = scmp.eq.s32.totalorder %s19, 1
    %p37 = por %p35, %p36
    %p38 = scmp.ne.s32.totalorder %s27, %s28
    %p39 = scmp.eq.s32.totalorder %s19, 0
    %p40 = por %p38, %p39
    %p41 = scmp.ne.s32.totalorder %s27, %s28
    %p42 = scmp.eq.s32.totalorder %s20, 1
    %p43 = por %p41, %p42
    %p45 = scmp.ne.s32.totalorder %s28, %s44
    %p46 = scmp.eq.s32.totalorder %s20, 0
    %p47 = por %p45, %p46
    %s49 = sadd.s32 %s48, 1
    %p52 = scmp.eq.s32.totalorder %s14, 1
    %p53 = scmp.ne.s32.totalorder %s48, %s50
    %p54 = scmp.eq.s32.totalorder %s14, 0
    %p55 = por %p53, %p54
    %p56 = scmp.ne.s32.totalorder %s48, %s50
    %p57 = scmp.eq.s32.totalorder %s19, 1
    %p58 = por %p56, %p57
    %p59 = scmp.ne.s32.totalorder %s50, %s51
    %p60 = scmp.eq.s32.totalorder %s19, 0
    %p61 = por %p59, %p60
    %p62 = scmp.ne.s32.totalorder %s50, %s51
    %p63 = scmp.eq.s32.totalorder %s20, 1
    %p64 = por %p62, %p63
    %p66 = scmp.ne.s32.totalorder %s51, %s65
    %p67 = scmp.eq.s32.totalorder %s20, 0
    %p68 = por %p66, %p67
    %s70 = sadd.s32 %s69, 1
    %p73 = scmp.eq.s32.totalorder %s14, 1
    %p74 = scmp.ne.s32.totalorder %s69, %s71
    %p75 = scmp.eq.s32.totalorder %s14, 0
    %p76 = por %p74, %p75
    %p77 = scmp.ne.s32.totalorder %s69, %s71
    %p78 = scmp.eq.s32.totalorder %s19, 1
    %p79 = por %p77, %p78
    %p80 = scmp.ne.s32.totalorder %s71, %s72
    %p81 = scmp.eq.s32.totalorder %s19, 0
    %p82 = por %p80, %p81
    %p83 = scmp.ne.s32.totalorder %s71, %s72
    %p84 = scmp.eq.s32.totalorder %s20, 1
    %p85 = por %p83, %p84
    %p87 = scmp.ne.s32.totalorder %s72, %s86
    %p88 = scmp.eq.s32.totalorder %s20, 0
    %p89 = por %p87, %p88
    %s91 = sadd.s32 %s90, 1
    %p94 = scmp.eq.s32.totalorder %s14, 1
    %p95 = scmp.ne.s32.totalorder %s90, %s92
    %p96 = scmp.eq.s32.totalorder %s14, 0
    %p97 = por %p95, %p96
    %p98 = scmp.ne.s32.totalorder %s90, %s92
    %p99 = scmp.eq.s32.totalorder %s19, 1
    %p100 = por %p98, %p99
    %p101 = scmp.ne.s32.totalorder %s92, %s93
    %p102 = scmp.eq.s32.totalorder %s19, 0
    %p103 = por %p101, %p102
    %p104 = scmp.ne.s32.totalorder %s92, %s93
    %p105 = scmp.eq.s32.totalorder %s20, 1
    %p106 = por %p104, %p105
    %p108 = scmp.ne.s32.totalorder %s93, %s107
    %p109 = scmp.eq.s32.totalorder %s20, 0
    %p110 = por %p108, %p109
    %s112 = sadd.s32 %s111, 1
    %p115 = scmp.eq.s32.totalorder %s14, 1
    %p116 = scmp.ne.s32.totalorder %s111, %s113
    %p117 = scmp.eq.s32.totalorder %s14, 0
    %p118 = por %p116, %p117
    %p119 = scmp.ne.s32.totalorder %s111, %s113
    %p120 = scmp.eq.s32.totalorder %s19, 1
    %p121 = por %p119, %p120
    %p122 = scmp.ne.s32.totalorder %s113, %s114
    %p123 = scmp.eq.s32.totalorder %s19, 0
    %p124 = por %p122, %p123
    %p125 = scmp.ne.s32.totalorder %s113, %s114
    %p126 = scmp.eq.s32.totalorder %s20, 1
    %p127 = por %p125, %p126
    %p129 = scmp.ne.s32.totalorder %s114, %s128
    %p130 = scmp.eq.s32.totalorder %s20, 0
    %p131 = por %p129, %p130
    %s132 = ssub.s32 %s14, %s21
    %p133 = scmp.eq.s32.totalorder %s132, 0
    %s135 = sadd.s32 %s134, 1
    %s136 = scalar_select %p133, %s134, %s135
    %p139 = pneg %p133
    %p140 = scmp.eq.s32.totalorder %s14, 1
    %p141 = por %p139, %p140
    %p142 = scmp.ne.s32.totalorder %s134, %s137
    %p143 = scmp.eq.s32.totalorder %s14, 0
    %p144 = por %p142, %p143
    %p145 = scmp.ne.s32.totalorder %s134, %s137
    %p146 = scmp.eq.s32.totalorder %s19, 1
    %p147 = por %p145, %p146
    %p148 = scmp.ne.s32.totalorder %s137, %s138
    %p149 = scmp.eq.s32.totalorder %s19, 0
    %p150 = por %p148, %p149
    %p151 = scmp.ne.s32.totalorder %s137, %s138
    %p152 = scmp.eq.s32.totalorder %s20, 1
    %p153 = por %p151, %p152
    %p155 = scmp.ne.s32.totalorder %s138, %s154
    %p156 = scmp.eq.s32.totalorder %s20, 0
    %p157 = por %p155, %p156
    %s158 = ssub.s32 %s14, %s21
    %p159 = scmp.eq.s32.totalorder %s158, 0
    %s161 = sadd.s32 %s160, 1
    %s162 = scalar_select %p159, %s160, %s161
    %p165 = pneg %p159
    %p166 = scmp.eq.s32.totalorder %s14, 1
    %p167 = por %p165, %p166
    %p168 = scmp.ne.s32.totalorder %s160, %s163
    %p169 = scmp.eq.s32.totalorder %s14, 0
    %p170 = por %p168, %p169
    %p171 = scmp.ne.s32.totalorder %s160, %s163
    %p172 = scmp.eq.s32.totalorder %s19, 1
    %p173 = por %p171, %p172
    %p174 = scmp.ne.s32.totalorder %s163, %s164
    %p175 = scmp.eq.s32.totalorder %s19, 0
    %p176 = por %p174, %p175
    %p177 = scmp.ne.s32.totalorder %s163, %s164
    %p178 = scmp.eq.s32.totalorder %s20, 1
    %p179 = por %p177, %p178
    %p181 = scmp.ne.s32.totalorder %s164, %s180
    %p182 = scmp.eq.s32.totalorder %s20, 0
    %p183 = por %p181, %p182
    %s185 = sadd.s32 %s184, 1
    %p188 = scmp.eq.s32.totalorder %s14, 1
    %p189 = scmp.ne.s32.totalorder %s184, %s186
    %p190 = scmp.eq.s32.totalorder %s14, 0
    %p191 = por %p189, %p190
    %p192 = scmp.ne.s32.totalorder %s184, %s186
    %p193 = scmp.eq.s32.totalorder %s19, 1
    %p194 = por %p192, %p193
    %p195 = scmp.ne.s32.totalorder %s186, %s187
    %p196 = scmp.eq.s32.totalorder %s19, 0
    %p197 = por %p195, %p196
    %p198 = scmp.ne.s32.totalorder %s186, %s187
    %p199 = scmp.eq.s32.totalorder %s20, 1
    %p200 = por %p198, %p199
    %p202 = scmp.ne.s32.totalorder %s187, %s201
    %p203 = scmp.eq.s32.totalorder %s20, 0
    %p204 = por %p202, %p203
    %p205 = scmp.le.s32.totalorder 1, %s14
    %p206 = scmp.lt.s32.totalorder %s14, 3
    %p207 = pnand %p205, %p206
    %p208 = pneg %p207
    // Predicated region
    $region9: #{basic_block_forward.4} parent=5 // pred_check
      _
    $region10: #{basic_block_forward.4} parent=5 // pred_check_branch
      %210 = sbr.rel (%p207) target = $region12
    $region11: #{basic_block_forward.4} parent=5 // pred_region
      %s211 = ssub.s32 %s14, 1
      // Predicated region
      $region13: #{basic_block_forward.4} parent=11 // pred_check
        %p212 = pneg %p61
      $region14: #{basic_block_forward.4} parent=11 // pred_check_branch
        %214 = sbr.rel (%p212) target = $region16
      $region15: #{basic_block_forward.4} parent=11 // pred_region
        _
      $region16: #{basic_block_forward.4} parent=11 // pred_fallthru
        _
      // Predicated region
      $region17: #{basic_block_forward.4} parent=11 // pred_check
        %p215 = pneg %p82
      $region18: #{basic_block_forward.4} parent=11 // pred_check_branch
        %217 = sbr.rel (%p215) target = $region20
      $region19: #{basic_block_forward.4} parent=11 // pred_region
        _
      $region20: #{basic_block_forward.4} parent=11 // pred_fallthru
        _
      // Predicated region
      $region21: #{basic_block_forward.4} parent=11 // pred_check
        %p218 = pneg %p103
      $region22: #{basic_block_forward.4} parent=11 // pred_check_branch
        %220 = sbr.rel (%p218) target = $region24
      $region23: #{basic_block_forward.4} parent=11 // pred_region
        _
      $region24: #{basic_block_forward.4} parent=11 // pred_fallthru
        _
      // Predicated region
      $region25: #{basic_block_forward.4} parent=11 // pred_check
        %p221 = pneg %p124
      $region26: #{basic_block_forward.4} parent=11 // pred_check_branch
        %223 = sbr.rel (%p221) target = $region28
      $region27: #{basic_block_forward.4} parent=11 // pred_region
        _
      $region28: #{basic_block_forward.4} parent=11 // pred_fallthru
        _
    $region12: #{basic_block_forward.4} parent=5 // pred_fallthru
      _
    %p224 = scmp.lt.s32.totalorder %s14, 2
    // Predicated region
    $region29: #{basic_block_forward.4} parent=5 // pred_check
      %p225 = pneg %p224
    $region30: #{basic_block_forward.4} parent=5 // pred_check_branch
      %227 = sbr.rel (%p225) target = $region32
    $region31: #{basic_block_forward.4} parent=5 // pred_region
      // Predicated region
      $region33: #{basic_block_forward.4} parent=31 // pred_check
        %p228 = pneg %p34
      $region34: #{basic_block_forward.4} parent=31 // pred_check_branch
        %230 = sbr.rel (%p228) target = $region36
      $region35: #{basic_block_forward.4} parent=31 // pred_region
        %p231 = scmp.lt.s32.totalorder %s14, 1
        %s232 = scalar_select %p231, %s14, 1
        %s233 = smul.addr %s232, 32
        %s234 = smul.addr %s233, 8
        %s235 = scalar_lea.vmem %s0, %s234
      $region36: #{basic_block_forward.4} parent=31 // pred_fallthru
        _
    $region32: #{basic_block_forward.4} parent=5 // pred_fallthru
      _
    %p236 = scmp.le.s32.totalorder 1, %s14
    %p237 = scmp.lt.s32.totalorder %s14, 3
    %p238 = pnand %p236, %p237
    %p239 = pneg %p238
    // Predicated region
    $region37: #{basic_block_forward.4} parent=5 // pred_check
      _
    $region38: #{basic_block_forward.4} parent=5 // pred_check_branch
      %241 = sbr.rel (%p238) target = $region40
    $region39: #{basic_block_forward.4} parent=5 // pred_region
      %s242 = ssub.s32 %s14, 1
      %p243 = scmp.lt.s32.totalorder %s19, 1
      %s244 = scalar_select %p243, %s19, 1
      %s245 = smul.addr %s244, 32
      %s246 = smul.addr %s245, 8
      %s247 = scalar_lea.vmem %s0, %s246
      %p248 = pneg %p40
      %p249 = pneg %p37
      %p250 = pneg %p61
      %p251 = pneg %p58
      %p252 = pneg %p82
      %p253 = pneg %p79
      %p254 = pneg %p103
      %p255 = pneg %p100
      %p256 = pneg %p124
      %p257 = pneg %p121
      %p258 = pneg %p150
      %p259 = pneg %p147
      %p260 = scmp.lt.s32.totalorder %s19, 1
      %s261 = scalar_select %p260, %s19, 1
      %s262 = smul.addr %s261, 8
      %s263 = smul.addr %s262, 8
      %s264 = scalar_lea.vmem %s5, %s263
      %p265 = pneg %p176
      %p266 = pneg %p173
      %p267 = scmp.lt.s32.totalorder %s19, 1
      %s268 = scalar_select %p267, %s19, 1
      %s269 = smul.addr %s268, 8
      %s270 = smul.addr %s269, 8
      %s271 = scalar_lea.vmem %s6, %s270
      %p272 = pneg %p197
      %p273 = pneg %p194
      %p274 = scmp.lt.s32.totalorder %s19, 1
      %s275 = scalar_select %p274, %s19, 1
      %s276 = smul.addr %s275, 32
      %s277 = smul.addr %s276, 8
      %s278 = scalar_lea.vmem %s0, %s277
      %p279 = scmp.lt.s32.totalorder %s19, 1
      %s280 = scalar_select %p279, %s19, 1
      %s281 = smul.addr %s280, 8
      %s282 = smul.addr %s281, 8
      %s283 = scalar_lea.vmem %s5, %s282
      %p284 = scmp.lt.s32.totalorder %s19, 1
      %s285 = scalar_select %p284, %s19, 1
      %s286 = smul.addr %s285, 8
      %s287 = smul.addr %s286, 8
      %s288 = scalar_lea.vmem %s6, %s287
      %290 = vst [vmem:[#allocation2] sm:$0xff] 0.0
      %291 = vst [vmem:[#allocation2 + $0x8] sm:$0xff] 0.0
      %292 = vst [vmem:[#allocation2 + $0x10] sm:$0x3] 0.0
      %293 = vst [vmem:[#allocation2 + $0x18] sm:$0xff] 0.0
      %294 = vst [vmem:[#allocation2 + $0x20] sm:$0xff] 0.0
      %295 = vst [vmem:[#allocation2 + $0x28] sm:$0x3] 0.0
      %296 = vst [vmem:[#allocation2 + $0x30] sm:$0xff] 0.0
      %297 = vst [vmem:[#allocation2 + $0x38] sm:$0xff] 0.0
      %298 = vst [vmem:[#allocation2 + $0x40] sm:$0x3] 0.0
      %299 = vst [vmem:[#allocation2 + $0x48] sm:$0xff] 0.0
      %300 = vst [vmem:[#allocation2 + $0x50] sm:$0xff] 0.0
      %301 = vst [vmem:[#allocation2 + $0x58] sm:$0x3] 0.0
      %302 = vst [vmem:[#allocation2 + $0x60] sm:$0xff] 0.0
      %303 = vst [vmem:[#allocation2 + $0x68] sm:$0xff] 0.0
      %304 = vst [vmem:[#allocation2 + $0x70] sm:$0x3] 0.0
      %305 = vst [vmem:[#allocation2 + $0x78] sm:$0xff] 0.0
      %306 = vst [vmem:[#allocation2 + $0x80] sm:$0xff] 0.0
      %307 = vst [vmem:[#allocation2 + $0x88] sm:$0x3] 0.0
      %308 = vst [vmem:[#allocation2 + $0x90] sm:$0xff] 0.0
      %309 = vst [vmem:[#allocation2 + $0x98] sm:$0xff] 0.0
      %310 = vst [vmem:[#allocation2 + $0xa0] sm:$0x3] 0.0
      %311 = vst [vmem:[#allocation2 + $0xa8] sm:$0xff] 0.0
      %312 = vst [vmem:[#allocation2 + $0xb0] sm:$0xff] 0.0
      %313 = vst [vmem:[#allocation2 + $0xb8] sm:$0x3] 0.0
      %314 = vst [vmem:[#allocation2 + $0xc0] sm:$0xff] 0.0
      %315 = vst [vmem:[#allocation2 + $0xc8] sm:$0xff] 0.0
      %316 = vst [vmem:[#allocation2 + $0xd0] sm:$0x3] 0.0
      %317 = vst [vmem:[#allocation2 + $0xd8] sm:$0xff] 0.0
      %318 = vst [vmem:[#allocation2 + $0xe0] sm:$0xff] 0.0
      %319 = vst [vmem:[#allocation2 + $0xe8] sm:$0x3] 0.0
      %320 = vst [vmem:[#allocation2 + $0xf0] sm:$0xff] 0.0
      %321 = vst [vmem:[#allocation2 + $0xf8] sm:$0xff] 0.0
      %322 = vst [vmem:[#allocation2 + $0x100] sm:$0x3] 0.0
      %323 = vst [vmem:[#allocation2 + $0x108] sm:$0xff] 0.0
      %324 = vst [vmem:[#allocation2 + $0x110] sm:$0xff] 0.0
      %325 = vst [vmem:[#allocation2 + $0x118] sm:$0x3] 0.0
      %326 = vst [vmem:[#allocation2 + $0x120] sm:$0xff] 0.0
      %327 = vst [vmem:[#allocation2 + $0x128] sm:$0xff] 0.0
      %328 = vst [vmem:[#allocation2 + $0x130] sm:$0x3] 0.0
      %329 = vst [vmem:[#allocation2 + $0x138] sm:$0xff] 0.0
      %330 = vst [vmem:[#allocation2 + $0x140] sm:$0xff] 0.0
      %331 = vst [vmem:[#allocation2 + $0x148] sm:$0x3] 0.0
      %332 = vst [vmem:[#allocation2 + $0x150] sm:$0xff] 0.0
      %333 = vst [vmem:[#allocation2 + $0x158] sm:$0xff] 0.0
      %334 = vst [vmem:[#allocation2 + $0x160] sm:$0x3] 0.0
      %335 = vst [vmem:[#allocation2 + $0x168] sm:$0xff] 0.0
      %336 = vst [vmem:[#allocation2 + $0x170] sm:$0xff] 0.0
      %337 = vst [vmem:[#allocation2 + $0x178] sm:$0x3] 0.0
      %338 = vst [vmem:[#allocation2 + $0x180] sm:$0xff] 0.0
      %339 = vst [vmem:[#allocation2 + $0x188] sm:$0xff] 0.0
      %340 = vst [vmem:[#allocation2 + $0x190] sm:$0x3] 0.0
      %341 = vst [vmem:[#allocation2 + $0x198] sm:$0xff] 0.0
      %342 = vst [vmem:[#allocation2 + $0x1a0] sm:$0xff] 0.0
      %343 = vst [vmem:[#allocation2 + $0x1a8] sm:$0x3] 0.0
      %v344 = vld [vmem:[%s278] sm:$0xff]
      %v345 = vld [vmem:[%s278 + $0x8] sm:$0xff]
      %v346 = vld [vmem:[%s278 + $0x10] sm:$0xff]
      %v347 = vld [vmem:[%s278 + $0x18] sm:$0xff]
      %v348 = vld [vmem:[%s278 + $0x20] sm:$0xff]
      %v349 = vld [vmem:[%s278 + $0x28] sm:$0xff]
      %v350 = vld [vmem:[%s278 + $0x30] sm:$0xff]
      %v351 = vld [vmem:[%s278 + $0x38] sm:$0xff]
      %v352 = vld [vmem:[%s278 + $0x40] sm:$0xff]
      %v353 = vld [vmem:[%s278 + $0x48] sm:$0xff]
      %v354 = vld [vmem:[%s278 + $0x50] sm:$0xff]
      %v355 = vld [vmem:[%s278 + $0x58] sm:$0xff]
      %v356 = vld [vmem:[%s278 + $0x60] sm:$0xff]
      %v357 = vld [vmem:[%s278 + $0x68] sm:$0xff]
      %v358 = vld [vmem:[%s278 + $0x70] sm:$0xff]
      %v359 = vld [vmem:[%s278 + $0x78] sm:$0xff]
      %v360 = vld [vmem:[%s278 + $0x80] sm:$0xff]
      %v361 = vld [vmem:[%s278 + $0x88] sm:$0xff]
      %v362 = vld [vmem:[%s278 + $0x90] sm:$0xff]
      %v363 = vld [vmem:[%s278 + $0x98] sm:$0xff]
      %v364 = vld [vmem:[%s278 + $0xa0] sm:$0xff]
      %v365 = vld [vmem:[%s278 + $0xa8] sm:$0xff]
      %v366 = vld [vmem:[%s278 + $0xb0] sm:$0xff]
      %v367 = vld [vmem:[%s278 + $0xb8] sm:$0xff]
      %v368 = vld [vmem:[%s278 + $0xc0] sm:$0xff]
      %v369 = vld [vmem:[%s278 + $0xc8] sm:$0xff]
      %v370 = vld [vmem:[%s278 + $0xd0] sm:$0xff]
      %v371 = vld [vmem:[%s278 + $0xd8] sm:$0xff]
      %v372 = vld [vmem:[%s278 + $0xe0] sm:$0xff]
      %v373 = vld [vmem:[%s278 + $0xe8] sm:$0xff]
      %v374 = vld [vmem:[%s278 + $0xf0] sm:$0xff]
      %v375 = vld [vmem:[%s278 + $0xf8] sm:$0xff]
      %v376 = vld [vmem:[%s1] sm:$0x1]
      %v378 = vlaneseq
      %v379 = vshrl.u32 %v378, 7
      %v380 = vsub.s32 0, %v379
      %v381 = vrot.slane %v376, %v380
      %v383 = vmul.f32 %v344, %v381
      %v384 = vmul.f32 %v345, %v381
      %v385 = vmul.f32 %v346, %v381
      %v386 = vmul.f32 %v347, %v381
      %v387 = vmul.f32 %v348, %v381
      %v388 = vmul.f32 %v349, %v381
      %v389 = vmul.f32 %v350, %v381
      %v390 = vmul.f32 %v351, %v381
      %v391 = vmul.f32 %v352, %v381
      %v392 = vmul.f32 %v353, %v381
      %v393 = vmul.f32 %v354, %v381
      %v394 = vmul.f32 %v355, %v381
      %v395 = vmul.f32 %v356, %v381
      %v396 = vmul.f32 %v357, %v381
      %v397 = vmul.f32 %v358, %v381
      %v398 = vmul.f32 %v359, %v381
      %v399 = vmul.f32 %v360, %v381
      %v400 = vmul.f32 %v361, %v381
      %v401 = vmul.f32 %v362, %v381
      %v402 = vmul.f32 %v363, %v381
      %v403 = vmul.f32 %v364, %v381
      %v404 = vmul.f32 %v365, %v381
      %v405 = vmul.f32 %v366, %v381
      %v406 = vmul.f32 %v367, %v381
      %v407 = vmul.f32 %v368, %v381
      %v408 = vmul.f32 %v369, %v381
      %v409 = vmul.f32 %v370, %v381
      %v410 = vmul.f32 %v371, %v381
      %v411 = vmul.f32 %v372, %v381
      %v412 = vmul.f32 %v373, %v381
      %v413 = vmul.f32 %v374, %v381
      %v414 = vmul.f32 %v375, %v381
      %v415 = vld [vmem:[%s2] sm:$0x1]
      %v417 = vlaneseq
      %v418 = vshrl.u32 %v417, 7
      %v419 = vsub.s32 0, %v418
      %v420 = vrot.slane %v415, %v419
      %v422 = vadd.f32 %v383, %v420
      %v423 = vadd.f32 %v384, %v420
      %v424 = vadd.f32 %v385, %v420
      %v425 = vadd.f32 %v386, %v420
      %v426 = vadd.f32 %v387, %v420
      %v427 = vadd.f32 %v388, %v420
      %v428 = vadd.f32 %v389, %v420
      %v429 = vadd.f32 %v390, %v420
      %v430 = vadd.f32 %v391, %v420
      %v431 = vadd.f32 %v392, %v420
      %v432 = vadd.f32 %v393, %v420
      %v433 = vadd.f32 %v394, %v420
      %v434 = vadd.f32 %v395, %v420
      %v435 = vadd.f32 %v396, %v420
      %v436 = vadd.f32 %v397, %v420
      %v437 = vadd.f32 %v398, %v420
      %v438 = vadd.f32 %v399, %v420
      %v439 = vadd.f32 %v400, %v420
      %v440 = vadd.f32 %v401, %v420
      %v441 = vadd.f32 %v402, %v420
      %v442 = vadd.f32 %v403, %v420
      %v443 = vadd.f32 %v404, %v420
      %v444 = vadd.f32 %v405, %v420
      %v445 = vadd.f32 %v406, %v420
      %v446 = vadd.f32 %v407, %v420
      %v447 = vadd.f32 %v408, %v420
      %v448 = vadd.f32 %v409, %v420
      %v449 = vadd.f32 %v410, %v420
      %v450 = vadd.f32 %v411, %v420
      %v451 = vadd.f32 %v412, %v420
      %v452 = vadd.f32 %v413, %v420
      %v453 = vadd.f32 %v414, %v420
      %v454 = vmax.f32 %v422, 0.0
      %v455 = vmax.f32 %v423, 0.0
      %v456 = vmax.f32 %v424, 0.0
      %v457 = vmax.f32 %v425, 0.0
      %v458 = vmax.f32 %v426, 0.0
      %v459 = vmax.f32 %v427, 0.0
      %v460 = vmax.f32 %v428, 0.0
      %v461 = vmax.f32 %v429, 0.0
      %v462 = vmax.f32 %v430, 0.0
      %v463 = vmax.f32 %v431, 0.0
      %v464 = vmax.f32 %v432, 0.0
      %v465 = vmax.f32 %v433, 0.0
      %v466 = vmax.f32 %v434, 0.0
      %v467 = vmax.f32 %v435, 0.0
      %v468 = vmax.f32 %v436, 0.0
      %v469 = vmax.f32 %v437, 0.0
      %v470 = vmax.f32 %v438, 0.0
      %v471 = vmax.f32 %v439, 0.0
      %v472 = vmax.f32 %v440, 0.0
      %v473 = vmax.f32 %v441, 0.0
      %v474 = vmax.f32 %v442, 0.0
      %v475 = vmax.f32 %v443, 0.0
      %v476 = vmax.f32 %v444, 0.0
      %v477 = vmax.f32 %v445, 0.0
      %v478 = vmax.f32 %v446, 0.0
      %v479 = vmax.f32 %v447, 0.0
      %v480 = vmax.f32 %v448, 0.0
      %v481 = vmax.f32 %v449, 0.0
      %v482 = vmax.f32 %v450, 0.0
      %v483 = vmax.f32 %v451, 0.0
      %v484 = vmax.f32 %v452, 0.0
      %v485 = vmax.f32 %v453, 0.0
      %s486 = scalar_lea.vmem [#allocation2], 24
      %487 = vst [vmem:[%s486 + $0x1] sm:$0xff] %v454
      %488 = vst [vmem:[%s486 + $0x9] sm:$0xff] %v455
      %489 = vst [vmem:[%s486 + $0x19] sm:$0xff] %v456
      %490 = vst [vmem:[%s486 + $0x21] sm:$0xff] %v457
      %491 = vst [vmem:[%s486 + $0x31] sm:$0xff] %v458
      %492 = vst [vmem:[%s486 + $0x39] sm:$0xff] %v459
      %493 = vst [vmem:[%s486 + $0x49] sm:$0xff] %v460
      %494 = vst [vmem:[%s486 + $0x51] sm:$0xff] %v461
      %495 = vst [vmem:[%s486 + $0x61] sm:$0xff] %v462
      %496 = vst [vmem:[%s486 + $0x69] sm:$0xff] %v463
      %497 = vst [vmem:[%s486 + $0x79] sm:$0xff] %v464
      %498 = vst [vmem:[%s486 + $0x81] sm:$0xff] %v465
      %499 = vst [vmem:[%s486 + $0x91] sm:$0xff] %v466
      %500 = vst [vmem:[%s486 + $0x99] sm:$0xff] %v467
      %501 = vst [vmem:[%s486 + $0xa9] sm:$0xff] %v468
      %502 = vst [vmem:[%s486 + $0xb1] sm:$0xff] %v469
      %503 = vst [vmem:[%s486 + $0xc1] sm:$0xff] %v470
      %504 = vst [vmem:[%s486 + $0xc9] sm:$0xff] %v471
      %505 = vst [vmem:[%s486 + $0xd9] sm:$0xff] %v472
      %506 = vst [vmem:[%s486 + $0xe1] sm:$0xff] %v473
      %507 = vst [vmem:[%s486 + $0xf1] sm:$0xff] %v474
      %508 = vst [vmem:[%s486 + $0xf9] sm:$0xff] %v475
      %509 = vst [vmem:[%s486 + $0x109] sm:$0xff] %v476
      %510 = vst [vmem:[%s486 + $0x111] sm:$0xff] %v477
      %511 = vst [vmem:[%s486 + $0x121] sm:$0xff] %v478
      %512 = vst [vmem:[%s486 + $0x129] sm:$0xff] %v479
      %513 = vst [vmem:[%s486 + $0x139] sm:$0xff] %v480
      %514 = vst [vmem:[%s486 + $0x141] sm:$0xff] %v481
      %515 = vst [vmem:[%s486 + $0x151] sm:$0xff] %v482
      %516 = vst [vmem:[%s486 + $0x159] sm:$0xff] %v483
      %517 = vst [vmem:[%s486 + $0x169] sm:$0xff] %v484
      %518 = vst [vmem:[%s486 + $0x171] sm:$0xff] %v485
      %v519 = vld [vmem:[#allocation2] ss:$2 sm:$0xff]
      %s520 = scalar_lea.vmem [#allocation2], 48
      %v521 = vld [vmem:[%s520] ss:$2 sm:$0xff]
      %s522 = scalar_lea.vmem [#allocation2], 96
      %v523 = vld [vmem:[%s522] ss:$2 sm:$0xff]
      %s524 = scalar_lea.vmem [#allocation2], 144
      %v525 = vld [vmem:[%s524] ss:$2 sm:$0xff]
      %s526 = scalar_lea.vmem [#allocation2], 192
      %v527 = vld [vmem:[%s526] ss:$2 sm:$0xff]
      %s528 = scalar_lea.vmem [#allocation2], 240
      %v529 = vld [vmem:[%s528] ss:$2 sm:$0xff]
      %s530 = scalar_lea.vmem [#allocation2], 288
      %v531 = vld [vmem:[%s530] ss:$2 sm:$0xff]
      %s532 = scalar_lea.vmem [#allocation2], 336
      %v533 = vld [vmem:[%s532] ss:$2 sm:$0xff]
      %v534 = vpack.c.bf16 %v521, %v519
      %v535 = vpack.c.bf16 %v525, %v523
      %v536 = vpack.c.bf16 %v529, %v527
      %v537 = vpack.c.bf16 %v533, %v531
      %v538 = vld [vmem:[%s3] sm:$0xf]
      %v539 = vld [vmem:[%s3 + $0x4] sm:$0xf]
      %v540 = vld [vmem:[%s3 + $0x8] sm:$0xf]
      %v541 = vld [vmem:[%s3 + $0xc] sm:$0xf]
      %v542 = vld [vmem:[%s3 + $0x10] sm:$0xf]
      %v543 = vld [vmem:[%s3 + $0x14] sm:$0xf]
      %v544 = vld [vmem:[%s3 + $0x18] sm:$0xf]
      %v545 = vld [vmem:[%s3 + $0x1c] sm:$0xf]
      %v546 = vld [vmem:[%s3 + $0x20] sm:$0xf]
      %v547 = vld [vmem:[%s3 + $0x24] sm:$0xf]
      %v548 = vld [vmem:[%s3 + $0x28] sm:$0xf]
      %v549 = vld [vmem:[%s3 + $0x2c] sm:$0xf]
      %v550 = vld [vmem:[%s3 + $0x30] sm:$0xf]
      %v551 = vld [vmem:[%s3 + $0x34] sm:$0xf]
      %v552 = vld [vmem:[%s3 + $0x38] sm:$0xf]
      %v553 = vld [vmem:[%s3 + $0x3c] sm:$0xf]
      %v570 = vunpack.c.l.b16 %v538
      %v571 = vunpack.c.l.b16 %v539
      %v572 = vunpack.c.l.b16 %v540
      %v573 = vunpack.c.l.b16 %v541
      %v574 = vunpack.c.l.b16 %v542
      %v575 = vunpack.c.l.b16 %v543
      %v576 = vunpack.c.l.b16 %v544
      %v577 = vunpack.c.l.b16 %v545
      %v578 = vunpack.c.l.b16 %v546
      %v579 = vunpack.c.l.b16 %v547
      %v580 = vunpack.c.l.b16 %v548
      %v581 = vunpack.c.l.b16 %v549
      %v582 = vunpack.c.l.b16 %v550
      %v583 = vunpack.c.l.b16 %v551
      %v584 = vunpack.c.l.b16 %v552
      %v585 = vunpack.c.l.b16 %v553
      %v586 = vpack.c.b16 %v571, %v570
      %v587 = vpack.c.b16 %v573, %v572
      %v588 = vpack.c.b16 %v575, %v574
      %v589 = vpack.c.b16 %v577, %v576
      %v590 = vpack.c.b16 %v579, %v578
      %v591 = vpack.c.b16 %v581, %v580
      %v592 = vpack.c.b16 %v583, %v582
      %v593 = vpack.c.b16 %v585, %v584
      %602 = vmatprep.subr.bf16.mxu0 0
      %603 = vmatpush1.bf16.msra.mxu0 %v593
      %604 = vmatprep.subr.bf16.mxu0 0
      %605 = vmatpush1.bf16.msra.mxu0 %v592
      %606 = vmatprep.subr.bf16.mxu0 0
      %607 = vmatpush1.bf16.msra.mxu0 %v591
      %608 = vmatprep.subr.bf16.mxu0 0
      %609 = vmatpush1.bf16.msra.mxu0 %v590
      %610 = vmatprep.subr.bf16.mxu0 0
      %611 = vmatpush1.bf16.msra.mxu0 %v589
      %612 = vmatprep.subr.bf16.mxu0 0
      %613 = vmatpush1.bf16.msra.mxu0 %v588
      %614 = vmatprep.subr.bf16.mxu0 0
      %615 = vmatpush1.bf16.msra.mxu0 %v587
      %616 = vmatprep.subr.bf16.mxu0 0
      %617 = vmatpush1.bf16.msra.mxu0 %v586
      %618 = vmatprep.subr.bf16.mxu0 0
      %619 = vmatpush2.bf16.msra.mxu0 0
      %620 = vmatprep.subr.bf16.mxu0 0
      %621 = vmatpush2.bf16.msra.mxu0 0
      %622 = vmatprep.subr.bf16.mxu0 0
      %623 = vmatpush2.bf16.msra.mxu0 0
      %624 = vmatprep.subr.bf16.mxu0 0
      %625 = vmatpush2.bf16.msra.mxu0 0
      %626 = vmatprep.subr.bf16.mxu0 0
      %627 = vmatpush2.bf16.msra.mxu0 0
      %628 = vmatprep.subr.bf16.mxu0 0
      %629 = vmatpush2.bf16.msra.mxu0 0
      %630 = vmatprep.subr.bf16.mxu0 0
      %631 = vmatpush2.bf16.msra.mxu0 0
      %632 = vmatprep.subr.bf16.mxu0 0
      %633 = vmatpush2.bf16.msra.mxu0 0
      %634 = vmatprep.mubr.bf16.mxu0 0
      %635 = vmatmul.mubr.bf16.gmra.mxu0 %v534
      %v636 = vpop.f32.mrf.mxu0
      %v637 = vadd.f32 0.0, %v636
      %v638 = vpop.f32.mrf.mxu0
      %v639 = vpop.f32.mrf.mxu0
      %v640 = vadd.f32 0.0, %v639
      %v641 = vpop.f32.mrf.mxu0
      %642 = vmatprep.mubr.bf16.mxu0 0
      %643 = vmatmul.mubr.bf16.gmra.mxu0 %v535
      %v644 = vpop.f32.mrf.mxu0
      %v645 = vadd.f32 0.0, %v644
      %v646 = vpop.f32.mrf.mxu0
      %v647 = vpop.f32.mrf.mxu0
      %v648 = vadd.f32 0.0, %v647
      %v649 = vpop.f32.mrf.mxu0
      %650 = vmatprep.mubr.bf16.mxu0 0
      %651 = vmatmul.mubr.bf16.gmra.mxu0 %v536
      %v652 = vpop.f32.mrf.mxu0
      %v653 = vadd.f32 0.0, %v652
      %v654 = vpop.f32.mrf.mxu0
      %v655 = vpop.f32.mrf.mxu0
      %v656 = vadd.f32 0.0, %v655
      %v657 = vpop.f32.mrf.mxu0
      %658 = vmatprep.mubr.bf16.mxu0 0
      %659 = vmatmul.mubr.bf16.gmra.mxu0 %v537
      %v660 = vpop.f32.mrf.mxu0
      %v661 = vadd.f32 0.0, %v660
      %v662 = vpop.f32.mrf.mxu0
      %v663 = vpop.f32.mrf.mxu0
      %v664 = vadd.f32 0.0, %v663
      %v665 = vpop.f32.mrf.mxu0
      %666 = vdwg.mxu0
      %667 = vst [vmem:[#allocation3] sm:$0xff] %v637
      %668 = vst [vmem:[#allocation3 + $0x8] sm:$0xff] %v640
      %669 = vst [vmem:[#allocation3 + $0x10] sm:$0xff] %v645
      %670 = vst [vmem:[#allocation3 + $0x18] sm:$0xff] %v648
      %671 = vst [vmem:[#allocation3 + $0x20] sm:$0xff] %v653
      %672 = vst [vmem:[#allocation3 + $0x28] sm:$0xff] %v656
      %673 = vst [vmem:[#allocation3 + $0x30] sm:$0xff] %v661
      %674 = vst [vmem:[#allocation3 + $0x38] sm:$0xff] %v664
      %s675 = scalar_lea.vmem [#allocation2], 1
      %v676 = vld [vmem:[%s675] ss:$2 sm:$0xff]
      %s677 = scalar_lea.vmem [#allocation2], 49
      %v678 = vld [vmem:[%s677] ss:$2 sm:$0xff]
      %s679 = scalar_lea.vmem [#allocation2], 97
      %v680 = vld [vmem:[%s679] ss:$2 sm:$0xff]
      %s681 = scalar_lea.vmem [#allocation2], 145
      %v682 = vld [vmem:[%s681] ss:$2 sm:$0xff]
      %s683 = scalar_lea.vmem [#allocation2], 193
      %v684 = vld [vmem:[%s683] ss:$2 sm:$0xff]
      %s685 = scalar_lea.vmem [#allocation2], 241
      %v686 = vld [vmem:[%s685] ss:$2 sm:$0xff]
      %s687 = scalar_lea.vmem [#allocation2], 289
      %v688 = vld [vmem:[%s687] ss:$2 sm:$0xff]
      %s689 = scalar_lea.vmem [#allocation2], 337
      %v690 = vld [vmem:[%s689] ss:$2 sm:$0xff]
      %v691 = vpack.c.bf16 %v678, %v676
      %v692 = vpack.c.bf16 %v682, %v680
      %v693 = vpack.c.bf16 %v686, %v684
      %v694 = vpack.c.bf16 %v690, %v688
      %s695 = scalar_lea.vmem %s3, 64
      %v696 = vld [vmem:[%s695] sm:$0xf]
      %v697 = vld [vmem:[%s695 + $0x4] sm:$0xf]
      %v698 = vld [vmem:[%s695 + $0x8] sm:$0xf]
      %v699 = vld [vmem:[%s695 + $0xc] sm:$0xf]
      %v700 = vld [vmem:[%s695 + $0x10] sm:$0xf]
      %v701 = vld [vmem:[%s695 + $0x14] sm:$0xf]
      %v702 = vld [vmem:[%s695 + $0x18] sm:$0xf]
      %v703 = vld [vmem:[%s695 + $0x1c] sm:$0xf]
      %v704 = vld [vmem:[%s695 + $0x20] sm:$0xf]
      %v705 = vld [vmem:[%s695 + $0x24] sm:$0xf]
      %v706 = vld [vmem:[%s695 + $0x28] sm:$0xf]
      %v707 = vld [vmem:[%s695 + $0x2c] sm:$0xf]
      %v708 = vld [vmem:[%s695 + $0x30] sm:$0xf]
      %v709 = vld [vmem:[%s695 + $0x34] sm:$0xf]
      %v710 = vld [vmem:[%s695 + $0x38] sm:$0xf]
      %v711 = vld [vmem:[%s695 + $0x3c] sm:$0xf]
      %v728 = vunpack.c.l.b16 %v696
      %v729 = vunpack.c.l.b16 %v697
      %v730 = vunpack.c.l.b16 %v698
      %v731 = vunpack.c.l.b16 %v699
      %v732 = vunpack.c.l.b16 %v700
      %v733 = vunpack.c.l.b16 %v701
      %v734 = vunpack.c.l.b16 %v702
      %v735 = vunpack.c.l.b16 %v703
      %v736 = vunpack.c.l.b16 %v704
      %v737 = vunpack.c.l.b16 %v705
      %v738 = vunpack.c.l.b16 %v706
      %v739 = vunpack.c.l.b16 %v707
      %v740 = vunpack.c.l.b16 %v708
      %v741 = vunpack.c.l.b16 %v709
      %v742 = vunpack.c.l.b16 %v710
      %v743 = vunpack.c.l.b16 %v711
      %v744 = vpack.c.b16 %v729, %v728
      %v745 = vpack.c.b16 %v731, %v730
      %v746 = vpack.c.b16 %v733, %v732
      %v747 = vpack.c.b16 %v735, %v734
      %v748 = vpack.c.b16 %v737, %v736
      %v749 = vpack.c.b16 %v739, %v738
      %v750 = vpack.c.b16 %v741, %v740
      %v751 = vpack.c.b16 %v743, %v742
      %760 = vmatprep.subr.bf16.mxu0 0
      %761 = vmatpush1.bf16.msra.mxu0 %v751
      %762 = vmatprep.subr.bf16.mxu0 0
      %763 = vmatpush1.bf16.msra.mxu0 %v750
      %764 = vmatprep.subr.bf16.mxu0 0
      %765 = vmatpush1.bf16.msra.mxu0 %v749
      %766 = vmatprep.subr.bf16.mxu0 0
      %767 = vmatpush1.bf16.msra.mxu0 %v748
      %768 = vmatprep.subr.bf16.mxu0 0
      %769 = vmatpush1.bf16.msra.mxu0 %v747
      %770 = vmatprep.subr.bf16.mxu0 0
      %771 = vmatpush1.bf16.msra.mxu0 %v746
      %772 = vmatprep.subr.bf16.mxu0 0
      %773 = vmatpush1.bf16.msra.mxu0 %v745
      %774 = vmatprep.subr.bf16.mxu0 0
      %775 = vmatpush1.bf16.msra.mxu0 %v744
      %776 = vmatprep.subr.bf16.mxu0 0
      %777 = vmatpush2.bf16.msra.mxu0 0
      %778 = vmatprep.subr.bf16.mxu0 0
      %779 = vmatpush2.bf16.msra.mxu0 0
      %780 = vmatprep.subr.bf16.mxu0 0
      %781 = vmatpush2.bf16.msra.mxu0 0
      %782 = vmatprep.subr.bf16.mxu0 0
      %783 = vmatpush2.bf16.msra.mxu0 0
      %784 = vmatprep.subr.bf16.mxu0 0
      %785 = vmatpush2.bf16.msra.mxu0 0
      %786 = vmatprep.subr.bf16.mxu0 0
      %787 = vmatpush2.bf16.msra.mxu0 0
      %788 = vmatprep.subr.bf16.mxu0 0
      %789 = vmatpush2.bf16.msra.mxu0 0
      %790 = vmatprep.subr.bf16.mxu0 0
      %791 = vmatpush2.bf16.msra.mxu0 0
      %792 = vmatprep.mubr.bf16.mxu0 0
      %793 = vmatmul.mubr.bf16.gmra.mxu0 %v691
      %v794 = vpop.f32.mrf.mxu0
      %v795 = vadd.f32 0.0, %v794
      %v796 = vpop.f32.mrf.mxu0
      %v797 = vpop.f32.mrf.mxu0
      %v798 = vadd.f32 0.0, %v797
      %v799 = vpop.f32.mrf.mxu0
      %800 = vmatprep.mubr.bf16.mxu0 0
      %801 = vmatmul.mubr.bf16.gmra.mxu0 %v692
      %v802 = vpop.f32.mrf.mxu0
      %v803 = vadd.f32 0.0, %v802
      %v804 = vpop.f32.mrf.mxu0
      %v805 = vpop.f32.mrf.mxu0
      %v806 = vadd.f32 0.0, %v805
      %v807 = vpop.f32.mrf.mxu0
      %808 = vmatprep.mubr.bf16.mxu0 0
      %809 = vmatmul.mubr.bf16.gmra.mxu0 %v693
      %v810 = vpop.f32.mrf.mxu0
      %v811 = vadd.f32 0.0, %v810
      %v812 = vpop.f32.mrf.mxu0
      %v813 = vpop.f32.mrf.mxu0
      %v814 = vadd.f32 0.0, %v813
      %v815 = vpop.f32.mrf.mxu0
      %816 = vmatprep.mubr.bf16.mxu0 0
      %817 = vmatmul.mubr.bf16.gmra.mxu0 %v694
      %v818 = vpop.f32.mrf.mxu0
      %v819 = vadd.f32 0.0, %v818
      %v820 = vpop.f32.mrf.mxu0
      %v821 = vpop.f32.mrf.mxu0
      %v822 = vadd.f32 0.0, %v821
      %v823 = vpop.f32.mrf.mxu0
      %824 = vdwg.mxu0
      %v825 = vld [vmem:[#allocation3] sm:$0xff]
      %v826 = vld [vmem:[#allocation3 + $0x8] sm:$0xff]
      %v827 = vld [vmem:[#allocation3 + $0x10] sm:$0xff]
      %v828 = vld [vmem:[#allocation3 + $0x18] sm:$0xff]
      %v829 = vld [vmem:[#allocation3 + $0x20] sm:$0xff]
      %v830 = vld [vmem:[#allocation3 + $0x28] sm:$0xff]
      %v831 = vld [vmem:[#allocation3 + $0x30] sm:$0xff]
      %v832 = vld [vmem:[#allocation3 + $0x38] sm:$0xff]
      %v833 = vadd.f32 %v825, %v795
      %v834 = vadd.f32 %v826, %v798
      %v835 = vadd.f32 %v827, %v803
      %v836 = vadd.f32 %v828, %v806
      %v837 = vadd.f32 %v829, %v811
      %v838 = vadd.f32 %v830, %v814
      %v839 = vadd.f32 %v831, %v819
      %v840 = vadd.f32 %v832, %v822
      %841 = vst [vmem:[#allocation3] sm:$0xff] %v833
      %842 = vst [vmem:[#allocation3 + $0x8] sm:$0xff] %v834
      %843 = vst [vmem:[#allocation3 + $0x10] sm:$0xff] %v835
      %844 = vst [vmem:[#allocation3 + $0x18] sm:$0xff] %v836
      %845 = vst [vmem:[#allocation3 + $0x20] sm:$0xff] %v837
      %846 = vst [vmem:[#allocation3 + $0x28] sm:$0xff] %v838
      %847 = vst [vmem:[#allocation3 + $0x30] sm:$0xff] %v839
      %848 = vst [vmem:[#allocation3 + $0x38] sm:$0xff] %v840
      %s849 = scalar_lea.vmem [#allocation2], 2
      %v850 = vld [vmem:[%s849] ss:$2 sm:$0xff]
      %s851 = scalar_lea.vmem [#allocation2], 50
      %v852 = vld [vmem:[%s851] ss:$2 sm:$0xff]
      %s853 = scalar_lea.vmem [#allocation2], 98
      %v854 = vld [vmem:[%s853] ss:$2 sm:$0xff]
      %s855 = scalar_lea.vmem [#allocation2], 146
      %v856 = vld [vmem:[%s855] ss:$2 sm:$0xff]
      %s857 = scalar_lea.vmem [#allocation2], 194
      %v858 = vld [vmem:[%s857] ss:$2 sm:$0xff]
      %s859 = scalar_lea.vmem [#allocation2], 242
      %v860 = vld [vmem:[%s859] ss:$2 sm:$0xff]
      %s861 = scalar_lea.vmem [#allocation2], 290
      %v862 = vld [vmem:[%s861] ss:$2 sm:$0xff]
      %s863 = scalar_lea.vmem [#allocation2], 338
      %v864 = vld [vmem:[%s863] ss:$2 sm:$0xff]
      %v865 = vpack.c.bf16 %v852, %v850
      %v866 = vpack.c.bf16 %v856, %v854
      %v867 = vpack.c.bf16 %v860, %v858
      %v868 = vpack.c.bf16 %v864, %v862
      %s869 = scalar_lea.vmem %s3, 128
      %v870 = vld [vmem:[%s869] sm:$0xf]
      %v871 = vld [vmem:[%s869 + $0x4] sm:$0xf]
      %v872 = vld [vmem:[%s869 + $0x8] sm:$0xf]
      %v873 = vld [vmem:[%s869 + $0xc] sm:$0xf]
      %v874 = vld [vmem:[%s869 + $0x10] sm:$0xf]
      %v875 = vld [vmem:[%s869 + $0x14] sm:$0xf]
      %v876 = vld [vmem:[%s869 + $0x18] sm:$0xf]
      %v877 = vld [vmem:[%s869 + $0x1c] sm:$0xf]
      %v878 = vld [vmem:[%s869 + $0x20] sm:$0xf]
      %v879 = vld [vmem:[%s869 + $0x24] sm:$0xf]
      %v880 = vld [vmem:[%s869 + $0x28] sm:$0xf]
      %v881 = vld [vmem:[%s869 + $0x2c] sm:$0xf]
      %v882 = vld [vmem:[%s869 + $0x30] sm:$0xf]
      %v883 = vld [vmem:[%s869 + $0x34] sm:$0xf]
      %v884 = vld [vmem:[%s869 + $0x38] sm:$0xf]
      %v885 = vld [vmem:[%s869 + $0x3c] sm:$0xf]
      %v902 = vunpack.c.l.b16 %v870
      %v903 = vunpack.c.l.b16 %v871
      %v904 = vunpack.c.l.b16 %v872
      %v905 = vunpack.c.l.b16 %v873
      %v906 = vunpack.c.l.b16 %v874
      %v907 = vunpack.c.l.b16 %v875
      %v908 = vunpack.c.l.b16 %v876
      %v909 = vunpack.c.l.b16 %v877
      %v910 = vunpack.c.l.b16 %v878
      %v911 = vunpack.c.l.b16 %v879
      %v912 = vunpack.c.l.b16 %v880
      %v913 = vunpack.c.l.b16 %v881
      %v914 = vunpack.c.l.b16 %v882
      %v915 = vunpack.c.l.b16 %v883
      %v916 = vunpack.c.l.b16 %v884
      %v917 = vunpack.c.l.b16 %v885
      %v918 = vpack.c.b16 %v903, %v902
      %v919 = vpack.c.b16 %v905, %v904
      %v920 = vpack.c.b16 %v907, %v906
      %v921 = vpack.c.b16 %v909, %v908
      %v922 = vpack.c.b16 %v911, %v910
      %v923 = vpack.c.b16 %v913, %v912
      %v924 = vpack.c.b16 %v915, %v914
      %v925 = vpack.c.b16 %v917, %v916
      %934 = vmatprep.subr.bf16.mxu0 0
      %935 = vmatpush1.bf16.msra.mxu0 %v925
      %936 = vmatprep.subr.bf16.mxu0 0
      %937 = vmatpush1.bf16.msra.mxu0 %v924
      %938 = vmatprep.subr.bf16.mxu0 0
      %939 = vmatpush1.bf16.msra.mxu0 %v923
      %940 = vmatprep.subr.bf16.mxu0 0
      %941 = vmatpush1.bf16.msra.mxu0 %v922
      %942 = vmatprep.subr.bf16.mxu0 0
      %943 = vmatpush1.bf16.msra.mxu0 %v921
      %944 = vmatprep.subr.bf16.mxu0 0
      %945 = vmatpush1.bf16.msra.mxu0 %v920
      %946 = vmatprep.subr.bf16.mxu0 0
      %947 = vmatpush1.bf16.msra.mxu0 %v919
      %948 = vmatprep.subr.bf16.mxu0 0
      %949 = vmatpush1.bf16.msra.mxu0 %v918
      %950 = vmatprep.subr.bf16.mxu0 0
      %951 = vmatpush2.bf16.msra.mxu0 0
      %952 = vmatprep.subr.bf16.mxu0 0
      %953 = vmatpush2.bf16.msra.mxu0 0
      %954 = vmatprep.subr.bf16.mxu0 0
      %955 = vmatpush2.bf16.msra.mxu0 0
      %956 = vmatprep.subr.bf16.mxu0 0
      %957 = vmatpush2.bf16.msra.mxu0 0
      %958 = vmatprep.subr.bf16.mxu0 0
      %959 = vmatpush2.bf16.msra.mxu0 0
      %960 = vmatprep.subr.bf16.mxu0 0
      %961 = vmatpush2.bf16.msra.mxu0 0
      %962 = vmatprep.subr.bf16.mxu0 0
      %963 = vmatpush2.bf16.msra.mxu0 0
      %964 = vmatprep.subr.bf16.mxu0 0
      %965 = vmatpush2.bf16.msra.mxu0 0
      %966 = vmatprep.mubr.bf16.mxu0 0
      %967 = vmatmul.mubr.bf16.gmra.mxu0 %v865
      %v968 = vpop.f32.mrf.mxu0
      %v969 = vadd.f32 0.0, %v968
      %v970 = vpop.f32.mrf.mxu0
      %v971 = vpop.f32.mrf.mxu0
      %v972 = vadd.f32 0.0, %v971
      %v973 = vpop.f32.mrf.mxu0
      %974 = vmatprep.mubr.bf16.mxu0 0
      %975 = vmatmul.mubr.bf16.gmra.mxu0 %v866
      %v976 = vpop.f32.mrf.mxu0
      %v977 = vadd.f32 0.0, %v976
      %v978 = vpop.f32.mrf.mxu0
      %v979 = vpop.f32.mrf.mxu0
      %v980 = vadd.f32 0.0, %v979
      %v981 = vpop.f32.mrf.mxu0
      %982 = vmatprep.mubr.bf16.mxu0 0
      %983 = vmatmul.mubr.bf16.gmra.mxu0 %v867
      %v984 = vpop.f32.mrf.mxu0
      %v985 = vadd.f32 0.0, %v984
      %v986 = vpop.f32.mrf.mxu0
      %v987 = vpop.f32.mrf.mxu0
      %v988 = vadd.f32 0.0, %v987
      %v989 = vpop.f32.mrf.mxu0
      %990 = vmatprep.mubr.bf16.mxu0 0
      %991 = vmatmul.mubr.bf16.gmra.mxu0 %v868
      %v992 = vpop.f32.mrf.mxu0
      %v993 = vadd.f32 0.0, %v992
      %v994 = vpop.f32.mrf.mxu0
      %v995 = vpop.f32.mrf.mxu0
      %v996 = vadd.f32 0.0, %v995
      %v997 = vpop.f32.mrf.mxu0
      %998 = vdwg.mxu0
      %v999 = vld [vmem:[#allocation3] sm:$0xff]
      %v1000 = vld [vmem:[#allocation3 + $0x8] sm:$0xff]
      %v1001 = vld [vmem:[#allocation3 + $0x10] sm:$0xff]
      %v1002 = vld [vmem:[#allocation3 + $0x18] sm:$0xff]
      %v1003 = vld [vmem:[#allocation3 + $0x20] sm:$0xff]
      %v1004 = vld [vmem:[#allocation3 + $0x28] sm:$0xff]
      %v1005 = vld [vmem:[#allocation3 + $0x30] sm:$0xff]
      %v1006 = vld [vmem:[#allocation3 + $0x38] sm:$0xff]
      %v1007 = vadd.f32 %v999, %v969
      %v1008 = vadd.f32 %v1000, %v972
      %v1009 = vadd.f32 %v1001, %v977
      %v1010 = vadd.f32 %v1002, %v980
      %v1011 = vadd.f32 %v1003, %v985
      %v1012 = vadd.f32 %v1004, %v988
      %v1013 = vadd.f32 %v1005, %v993
      %v1014 = vadd.f32 %v1006, %v996
      %1015 = vst [vmem:[#allocation3] sm:$0xff] %v1007
      %1016 = vst [vmem:[#allocation3 + $0x8] sm:$0xff] %v1008
      %1017 = vst [vmem:[#allocation3 + $0x10] sm:$0xff] %v1009
      %1018 = vst [vmem:[#allocation3 + $0x18] sm:$0xff] %v1010
      %1019 = vst [vmem:[#allocation3 + $0x20] sm:$0xff] %v1011
      %1020 = vst [vmem:[#allocation3 + $0x28] sm:$0xff] %v1012
      %1021 = vst [vmem:[#allocation3 + $0x30] sm:$0xff] %v1013
      %1022 = vst [vmem:[#allocation3 + $0x38] sm:$0xff] %v1014
      %v1023 = vld [vmem:[%s486] ss:$2 sm:$0xff]
      %s1024 = scalar_lea.vmem %s486, 48 [#allocation2]
      %v1025 = vld [vmem:[%s1024] ss:$2 sm:$0xff]
      %s1026 = scalar_lea.vmem %s486, 96 [#allocation2]
      %v1027 = vld [vmem:[%s1026] ss:$2 sm:$0xff]
      %s1028 = scalar_lea.vmem %s486, 144 [#allocation2]
      %v1029 = vld [vmem:[%s1028] ss:$2 sm:$0xff]
      %s1030 = scalar_lea.vmem %s486, 192 [#allocation2]
      %v1031 = vld [vmem:[%s1030] ss:$2 sm:$0xff]
      %s1032 = scalar_lea.vmem %s486, 240 [#allocation2]
      %v1033 = vld [vmem:[%s1032] ss:$2 sm:$0xff]
      %s1034 = scalar_lea.vmem %s486, 288 [#allocation2]
      %v1035 = vld [vmem:[%s1034] ss:$2 sm:$0xff]
      %s1036 = scalar_lea.vmem %s486, 336 [#allocation2]
      %v1037 = vld [vmem:[%s1036] ss:$2 sm:$0xff]
      %v1038 = vpack.c.bf16 %v1025, %v1023
      %v1039 = vpack.c.bf16 %v1029, %v1027
      %v1040 = vpack.c.bf16 %v1033, %v1031
      %v1041 = vpack.c.bf16 %v1037, %v1035
      %s1042 = scalar_lea.vmem %s3, 192
      %v1043 = vld [vmem:[%s1042] sm:$0xf]
      %v1044 = vld [vmem:[%s1042 + $0x4] sm:$0xf]
      %v1045 = vld [vmem:[%s1042 + $0x8] sm:$0xf]
      %v1046 = vld [vmem:[%s1042 + $0xc] sm:$0xf]
      %v1047 = vld [vmem:[%s1042 + $0x10] sm:$0xf]
      %v1048 = vld [vmem:[%s1042 + $0x14] sm:$0xf]
      %v1049 = vld [vmem:[%s1042 + $0x18] sm:$0xf]
      %v1050 = vld [vmem:[%s1042 + $0x1c] sm:$0xf]
      %v1051 = vld [vmem:[%s1042 + $0x20] sm:$0xf]
      %v1052 = vld [vmem:[%s1042 + $0x24] sm:$0xf]
      %v1053 = vld [vmem:[%s1042 + $0x28] sm:$0xf]
      %v1054 = vld [vmem:[%s1042 + $0x2c] sm:$0xf]
      %v1055 = vld [vmem:[%s1042 + $0x30] sm:$0xf]
      %v1056 = vld [vmem:[%s1042 + $0x34] sm:$0xf]
      %v1057 = vld [vmem:[%s1042 + $0x38] sm:$0xf]
      %v1058 = vld [vmem:[%s1042 + $0x3c] sm:$0xf]
      %v1075 = vunpack.c.l.b16 %v1043
      %v1076 = vunpack.c.l.b16 %v1044
      %v1077 = vunpack.c.l.b16 %v1045
      %v1078 = vunpack.c.l.b16 %v1046
      %v1079 = vunpack.c.l.b16 %v1047
      %v1080 = vunpack.c.l.b16 %v1048
      %v1081 = vunpack.c.l.b16 %v1049
      %v1082 = vunpack.c.l.b16 %v1050
      %v1083 = vunpack.c.l.b16 %v1051
      %v1084 = vunpack.c.l.b16 %v1052
      %v1085 = vunpack.c.l.b16 %v1053
      %v1086 = vunpack.c.l.b16 %v1054
      %v1087 = vunpack.c.l.b16 %v1055
      %v1088 = vunpack.c.l.b16 %v1056
      %v1089 = vunpack.c.l.b16 %v1057
      %v1090 = vunpack.c.l.b16 %v1058
      %v1091 = vpack.c.b16 %v1076, %v1075
      %v1092 = vpack.c.b16 %v1078, %v1077
      %v1093 = vpack.c.b16 %v1080, %v1079
      %v1094 = vpack.c.b16 %v1082, %v1081
      %v1095 = vpack.c.b16 %v1084, %v1083
      %v1096 = vpack.c.b16 %v1086, %v1085
      %v1097 = vpack.c.b16 %v1088, %v1087
      %v1098 = vpack.c.b16 %v1090, %v1089
      %1107 = vmatprep.subr.bf16.mxu0 0
      %1108 = vmatpush1.bf16.msra.mxu0 %v1098
      %1109 = vmatprep.subr.bf16.mxu0 0
      %1110 = vmatpush1.bf16.msra.mxu0 %v1097
      %1111 = vmatprep.subr.bf16.mxu0 0
      %1112 = vmatpush1.bf16.msra.mxu0 %v1096
      %1113 = vmatprep.subr.bf16.mxu0 0
      %1114 = vmatpush1.bf16.msra.mxu0 %v1095
      %1115 = vmatprep.subr.bf16.mxu0 0
      %1116 = vmatpush1.bf16.msra.mxu0 %v1094
      %1117 = vmatprep.subr.bf16.mxu0 0
      %1118 = vmatpush1.bf16.msra.mxu0 %v1093
      %1119 = vmatprep.subr.bf16.mxu0 0
      %1120 = vmatpush1.bf16.msra.mxu0 %v1092
      %1121 = vmatprep.subr.bf16.mxu0 0
      %1122 = vmatpush1.bf16.msra.mxu0 %v1091
      %1123 = vmatprep.subr.bf16.mxu0 0
      %1124 = vmatpush2.bf16.msra.mxu0 0
      %1125 = vmatprep.subr.bf16.mxu0 0
      %1126 = vmatpush2.bf16.msra.mxu0 0
      %1127 = vmatprep.subr.bf16.mxu0 0
      %1128 = vmatpush2.bf16.msra.mxu0 0
      %1129 = vmatprep.subr.bf16.mxu0 0
      %1130 = vmatpush2.bf16.msra.mxu0 0
      %1131 = vmatprep.subr.bf16.mxu0 0
      %1132 = vmatpush2.bf16.msra.mxu0 0
      %1133 = vmatprep.subr.bf16.mxu0 0
      %1134 = vmatpush2.bf16.msra.mxu0 0
      %1135 = vmatprep.subr.bf16.mxu0 0
      %1136 = vmatpush2.bf16.msra.mxu0 0
      %1137 = vmatprep.subr.bf16.mxu0 0
      %1138 = vmatpush2.bf16.msra.mxu0 0
      %1139 = vmatprep.mubr.bf16.mxu0 0
      %1140 = vmatmul.mubr.bf16.gmra.mxu0 %v1038
      %v1141 = vpop.f32.mrf.mxu0
      %v1142 = vadd.f32 0.0, %v1141
      %v1143 = vpop.f32.mrf.mxu0
      %v1144 = vpop.f32.mrf.mxu0
      %v1145 = vadd.f32 0.0, %v1144
      %v1146 = vpop.f32.mrf.mxu0
      %1147 = vmatprep.mubr.bf16.mxu0 0
      %1148 = vmatmul.mubr.bf16.gmra.mxu0 %v1039
      %v1149 = vpop.f32.mrf.mxu0
      %v1150 = vadd.f32 0.0, %v1149
      %v1151 = vpop.f32.mrf.mxu0
      %v1152 = vpop.f32.mrf.mxu0
      %v1153 = vadd.f32 0.0, %v1152
      %v1154 = vpop.f32.mrf.mxu0
      %1155 = vmatprep.mubr.bf16.mxu0 0
      %1156 = vmatmul.mubr.bf16.gmra.mxu0 %v1040
      %v1157 = vpop.f32.mrf.mxu0
      %v1158 = vadd.f32 0.0, %v1157
      %v1159 = vpop.f32.mrf.mxu0
      %v1160 = vpop.f32.mrf.mxu0
      %v1161 = vadd.f32 0.0, %v1160
      %v1162 = vpop.f32.mrf.mxu0
      %1163 = vmatprep.mubr.bf16.mxu0 0
      %1164 = vmatmul.mubr.bf16.gmra.mxu0 %v1041
      %v1165 = vpop.f32.mrf.mxu0
      %v1166 = vadd.f32 0.0, %v1165
      %v1167 = vpop.f32.mrf.mxu0
      %v1168 = vpop.f32.mrf.mxu0
      %v1169 = vadd.f32 0.0, %v1168
      %v1170 = vpop.f32.mrf.mxu0
      %1171 = vdwg.mxu0
      %v1172 = vld [vmem:[#allocation3] sm:$0xff]
      %v1173 = vld [vmem:[#allocation3 + $0x8] sm:$0xff]
      %v1174 = vld [vmem:[#allocation3 + $0x10] sm:$0xff]
      %v1175 = vld [vmem:[#allocation3 + $0x18] sm:$0xff]
      %v1176 = vld [vmem:[#allocation3 + $0x20] sm:$0xff]
      %v1177 = vld [vmem:[#allocation3 + $0x28] sm:$0xff]
      %v1178 = vld [vmem:[#allocation3 + $0x30] sm:$0xff]
      %v1179 = vld [vmem:[#allocation3 + $0x38] sm:$0xff]
      %v1180 = vadd.f32 %v1172, %v1142
      %v1181 = vadd.f32 %v1173, %v1145
      %v1182 = vadd.f32 %v1174, %v1150
      %v1183 = vadd.f32 %v1175, %v1153
      %v1184 = vadd.f32 %v1176, %v1158
      %v1185 = vadd.f32 %v1177, %v1161
      %v1186 = vadd.f32 %v1178, %v1166
      %v1187 = vadd.f32 %v1179, %v1169
      %1188 = vst [vmem:[#allocation3] sm:$0xff] %v1180
      %1189 = vst [vmem:[#allocation3 + $0x8] sm:$0xff] %v1181
      %1190 = vst [vmem:[#allocation3 + $0x10] sm:$0xff] %v1182
      %1191 = vst [vmem:[#allocation3 + $0x18] sm:$0xff] %v1183
      %1192 = vst [vmem:[#allocation3 + $0x20] sm:$0xff] %v1184
      %1193 = vst [vmem:[#allocation3 + $0x28] sm:$0xff] %v1185
      %1194 = vst [vmem:[#allocation3 + $0x30] sm:$0xff] %v1186
      %1195 = vst [vmem:[#allocation3 + $0x38] sm:$0xff] %v1187
      %s1196 = scalar_lea.vmem %s486, 1 [#allocation2]
      %v1197 = vld [vmem:[%s1196] ss:$2 sm:$0xff]
      %s1198 = scalar_lea.vmem %s486, 49 [#allocation2]
      %v1199 = vld [vmem:[%s1198] ss:$2 sm:$0xff]
      %s1200 = scalar_lea.vmem %s486, 97 [#allocation2]
      %v1201 = vld [vmem:[%s1200] ss:$2 sm:$0xff]
      %s1202 = scalar_lea.vmem %s486, 145 [#allocation2]
      %v1203 = vld [vmem:[%s1202] ss:$2 sm:$0xff]
      %s1204 = scalar_lea.vmem %s486, 193 [#allocation2]
      %v1205 = vld [vmem:[%s1204] ss:$2 sm:$0xff]
      %s1206 = scalar_lea.vmem %s486, 241 [#allocation2]
      %v1207 = vld [vmem:[%s1206] ss:$2 sm:$0xff]
      %s1208 = scalar_lea.vmem %s486, 289 [#allocation2]
      %v1209 = vld [vmem:[%s1208] ss:$2 sm:$0xff]
      %s1210 = scalar_lea.vmem %s486, 337 [#allocation2]
      %v1211 = vld [vmem:[%s1210] ss:$2 sm:$0xff]
      %v1212 = vpack.c.bf16 %v1199, %v1197
      %v1213 = vpack.c.bf16 %v1203, %v1201
      %v1214 = vpack.c.bf16 %v1207, %v1205
      %v1215 = vpack.c.bf16 %v1211, %v1209
      %s1216 = scalar_lea.vmem %s3, 256
      %v1217 = vld [vmem:[%s1216] sm:$0xf]
      %v1218 = vld [vmem:[%s1216 + $0x4] sm:$0xf]
      %v1219 = vld [vmem:[%s1216 + $0x8] sm:$0xf]
      %v1220 = vld [vmem:[%s1216 + $0xc] sm:$0xf]
      %v1221 = vld [vmem:[%s1216 + $0x10] sm:$0xf]
      %v1222 = vld [vmem:[%s1216 + $0x14] sm:$0xf]
      %v1223 = vld [vmem:[%s1216 + $0x18] sm:$0xf]
      %v1224 = vld [vmem:[%s1216 + $0x1c] sm:$0xf]
      %v1225 = vld [vmem:[%s1216 + $0x20] sm:$0xf]
      %v1226 = vld [vmem:[%s1216 + $0x24] sm:$0xf]
      %v1227 = vld [vmem:[%s1216 + $0x28] sm:$0xf]
      %v1228 = vld [vmem:[%s1216 + $0x2c] sm:$0xf]
      %v1229 = vld [vmem:[%s1216 + $0x30] sm:$0xf]
      %v1230 = vld [vmem:[%s1216 + $0x34] sm:$0xf]
      %v1231 = vld [vmem:[%s1216 + $0x38] sm:$0xf]
      %v1232 = vld [vmem:[%s1216 + $0x3c] sm:$0xf]
      %v1249 = vunpack.c.l.b16 %v1217
      %v1250 = vunpack.c.l.b16 %v1218
      %v1251 = vunpack.c.l.b16 %v1219
      %v1252 = vunpack.c.l.b16 %v1220
      %v1253 = vunpack.c.l.b16 %v1221
      %v1254 = vunpack.c.l.b16 %v1222
      %v1255 = vunpack.c.l.b16 %v1223
      %v1256 = vunpack.c.l.b16 %v1224
      %v1257 = vunpack.c.l.b16 %v1225
      %v1258 = vunpack.c.l.b16 %v1226
      %v1259 = vunpack.c.l.b16 %v1227
      %v1260 = vunpack.c.l.b16 %v1228
      %v1261 = vunpack.c.l.b16 %v1229
      %v1262 = vunpack.c.l.b16 %v1230
      %v1263 = vunpack.c.l.b16 %v1231
      %v1264 = vunpack.c.l.b16 %v1232
      %v1265 = vpack.c.b16 %v1250, %v1249
      %v1266 = vpack.c.b16 %v1252, %v1251
      %v1267 = vpack.c.b16 %v1254, %v1253
      %v1268 = vpack.c.b16 %v1256, %v1255
      %v1269 = vpack.c.b16 %v1258, %v1257
      %v1270 = vpack.c.b16 %v1260, %v1259
      %v1271 = vpack.c.b16 %v1262, %v1261
      %v1272 = vpack.c.b16 %v1264, %v1263
      %1281 = vmatprep.subr.bf16.mxu0 0
      %1282 = vmatpush1.bf16.msra.mxu0 %v1272
      %1283 = vmatprep.subr.bf16.mxu0 0
      %1284 = vmatpush1.bf16.msra.mxu0 %v1271
      %1285 = vmatprep.subr.bf16.mxu0 0
      %1286 = vmatpush1.bf16.msra.mxu0 %v1270
      %1287 = vmatprep.subr.bf16.mxu0 0
      %1288 = vmatpush1.bf16.msra.mxu0 %v1269
      %1289 = vmatprep.subr.bf16.mxu0 0
      %1290 = vmatpush1.bf16.msra.mxu0 %v1268
      %1291 = vmatprep.subr.bf16.mxu0 0
      %1292 = vmatpush1.bf16.msra.mxu0 %v1267
      %1293 = vmatprep.subr.bf16.mxu0 0
      %1294 = vmatpush1.bf16.msra.mxu0 %v1266
      %1295 = vmatprep.subr.bf16.mxu0 0
      %1296 = vmatpush1.bf16.msra.mxu0 %v1265
      %1297 = vmatprep.subr.bf16.mxu0 0
      %1298 = vmatpush2.bf16.msra.mxu0 0
      %1299 = vmatprep.subr.bf16.mxu0 0
      %1300 = vmatpush2.bf16.msra.mxu0 0
      %1301 = vmatprep.subr.bf16.mxu0 0
      %1302 = vmatpush2.bf16.msra.mxu0 0
      %1303 = vmatprep.subr.bf16.mxu0 0
      %1304 = vmatpush2.bf16.msra.mxu0 0
      %1305 = vmatprep.subr.bf16.mxu0 0
      %1306 = vmatpush2.bf16.msra.mxu0 0
      %1307 = vmatprep.subr.bf16.mxu0 0
      %1308 = vmatpush2.bf16.msra.mxu0 0
      %1309 = vmatprep.subr.bf16.mxu0 0
      %1310 = vmatpush2.bf16.msra.mxu0 0
      %1311 = vmatprep.subr.bf16.mxu0 0
      %1312 = vmatpush2.bf16.msra.mxu0 0
      %1313 = vmatprep.mubr.bf16.mxu0 0
      %1314 = vmatmul.mubr.bf16.gmra.mxu0 %v1212
      %v1315 = vpop.f32.mrf.mxu0
      %v1316 = vadd.f32 0.0, %v1315
      %v1317 = vpop.f32.mrf.mxu0
      %v1318 = vpop.f32.mrf.mxu0
      %v1319 = vadd.f32 0.0, %v1318
      %v1320 = vpop.f32.mrf.mxu0
      %1321 = vmatprep.mubr.bf16.mxu0 0
      %1322 = vmatmul.mubr.bf16.gmra.mxu0 %v1213
      %v1323 = vpop.f32.mrf.mxu0
      %v1324 = vadd.f32 0.0, %v1323
      %v1325 = vpop.f32.mrf.mxu0
      %v1326 = vpop.f32.mrf.mxu0
      %v1327 = vadd.f32 0.0, %v1326
      %v1328 = vpop.f32.mrf.mxu0
      %1329 = vmatprep.mubr.bf16.mxu0 0
      %1330 = vmatmul.mubr.bf16.gmra.mxu0 %v1214
      %v1331 = vpop.f32.mrf.mxu0
      %v1332 = vadd.f32 0.0, %v1331
      %v1333 = vpop.f32.mrf.mxu0
      %v1334 = vpop.f32.mrf.mxu0
      %v1335 = vadd.f32 0.0, %v1334
      %v1336 = vpop.f32.mrf.mxu0
      %1337 = vmatprep.mubr.bf16.mxu0 0
      %1338 = vmatmul.mubr.bf16.gmra.mxu0 %v1215
      %v1339 = vpop.f32.mrf.mxu0
      %v1340 = vadd.f32 0.0, %v1339
      %v1341 = vpop.f32.mrf.mxu0
      %v1342 = vpop.f32.mrf.mxu0
      %v1343 = vadd.f32 0.0, %v1342
      %v1344 = vpop.f32.mrf.mxu0
      %1345 = vdwg.mxu0
      %v1346 = vld [vmem:[#allocation3] sm:$0xff]
      %v1347 = vld [vmem:[#allocation3 + $0x8] sm:$0xff]
      %v1348 = vld [vmem:[#allocation3 + $0x10] sm:$0xff]
      %v1349 = vld [vmem:[#allocation3 + $0x18] sm:$0xff]
      %v1350 = vld [vmem:[#allocation3 + $0x20] sm:$0xff]
      %v1351 = vld [vmem:[#allocation3 + $0x28] sm:$0xff]
      %v1352 = vld [vmem:[#allocation3 + $0x30] sm:$0xff]
      %v1353 = vld [vmem:[#allocation3 + $0x38] sm:$0xff]
      %v1354 = vadd.f32 %v1346, %v1316
      %v1355 = vadd.f32 %v1347, %v1319
      %v1356 = vadd.f32 %v1348, %v1324
      %v1357 = vadd.f32 %v1349, %v1327
      %v1358 = vadd.f32 %v1350, %v1332
      %v1359 = vadd.f32 %v1351, %v1335
      %v1360 = vadd.f32 %v1352, %v1340
      %v1361 = vadd.f32 %v1353, %v1343
      %1362 = vst [vmem:[#allocation3] sm:$0xff] %v1354
      %1363 = vst [vmem:[#allocation3 + $0x8] sm:$0xff] %v1355
      %1364 = vst [vmem:[#allocation3 + $0x10] sm:$0xff] %v1356
      %1365 = vst [vmem:[#allocation3 + $0x18] sm:$0xff] %v1357
      %1366 = vst [vmem:[#allocation3 + $0x20] sm:$0xff] %v1358
      %1367 = vst [vmem:[#allocation3 + $0x28] sm:$0xff] %v1359
      %1368 = vst [vmem:[#allocation3 + $0x30] sm:$0xff] %v1360
      %1369 = vst [vmem:[#allocation3 + $0x38] sm:$0xff] %v1361
      %s1370 = scalar_lea.vmem %s486, 2 [#allocation2]
      %v1371 = vld [vmem:[%s1370] ss:$2 sm:$0xff]
      %s1372 = scalar_lea.vmem %s486, 50 [#allocation2]
      %v1373 = vld [vmem:[%s1372] ss:$2 sm:$0xff]
      %s1374 = scalar_lea.vmem %s486, 98 [#allocation2]
      %v1375 = vld [vmem:[%s1374] ss:$2 sm:$0xff]
      %s1376 = scalar_lea.vmem %s486, 146 [#allocation2]
      %v1377 = vld [vmem:[%s1376] ss:$2 sm:$0xff]
      %s1378 = scalar_lea.vmem %s486, 194 [#allocation2]
      %v1379 = vld [vmem:[%s1378] ss:$2 sm:$0xff]
      %s1380 = scalar_lea.vmem %s486, 242 [#allocation2]
      %v1381 = vld [vmem:[%s1380] ss:$2 sm:$0xff]
      %s1382 = scalar_lea.vmem %s486, 290 [#allocation2]
      %v1383 = vld [vmem:[%s1382] ss:$2 sm:$0xff]
      %s1384 = scalar_lea.vmem %s486, 338 [#allocation2]
      %v1385 = vld [vmem:[%s1384] ss:$2 sm:$0xff]
      %v1386 = vpack.c.bf16 %v1373, %v1371
      %v1387 = vpack.c.bf16 %v1377, %v1375
      %v1388 = vpack.c.bf16 %v1381, %v1379
      %v1389 = vpack.c.bf16 %v1385, %v1383
      %s1390 = scalar_lea.vmem %s3, 320
      %v1391 = vld [vmem:[%s1390] sm:$0xf]
      %v1392 = vld [vmem:[%s1390 + $0x4] sm:$0xf]
      %v1393 = vld [vmem:[%s1390 + $0x8] sm:$0xf]
      %v1394 = vld [vmem:[%s1390 + $0xc] sm:$0xf]
      %v1395 = vld [vmem:[%s1390 + $0x10] sm:$0xf]
      %v1396 = vld [vmem:[%s1390 + $0x14] sm:$0xf]
      %v1397 = vld [vmem:[%s1390 + $0x18] sm:$0xf]
      %v1398 = vld [vmem:[%s1390 + $0x1c] sm:$0xf]
      %v1399 = vld [vmem:[%s1390 + $0x20] sm:$0xf]
      %v1400 = vld [vmem:[%s1390 + $0x24] sm:$0xf]
      %v1401 = vld [vmem:[%s1390 + $0x28] sm:$0xf]
      %v1402 = vld [vmem:[%s1390 + $0x2c] sm:$0xf]
      %v1403 = vld [vmem:[%s1390 + $0x30] sm:$0xf]
      %v1404 = vld [vmem:[%s1390 + $0x34] sm:$0xf]
      %v1405 = vld [vmem:[%s1390 + $0x38] sm:$0xf]
      %v1406 = vld [vmem:[%s1390 + $0x3c] sm:$0xf]
      %v1423 = vunpack.c.l.b16 %v1391
      %v1424 = vunpack.c.l.b16 %v1392
      %v1425 = vunpack.c.l.b16 %v1393
      %v1426 = vunpack.c.l.b16 %v1394
      %v1427 = vunpack.c.l.b16 %v1395
      %v1428 = vunpack.c.l.b16 %v1396
      %v1429 = vunpack.c.l.b16 %v1397
      %v1430 = vunpack.c.l.b16 %v1398
      %v1431 = vunpack.c.l.b16 %v1399
      %v1432 = vunpack.c.l.b16 %v1400
      %v1433 = vunpack.c.l.b16 %v1401
      %v1434 = vunpack.c.l.b16 %v1402
      %v1435 = vunpack.c.l.b16 %v1403
      %v1436 = vunpack.c.l.b16 %v1404
      %v1437 = vunpack.c.l.b16 %v1405
      %v1438 = vunpack.c.l.b16 %v1406
      %v1439 = vpack.c.b16 %v1424, %v1423
      %v1440 = vpack.c.b16 %v1426, %v1425
      %v1441 = vpack.c.b16 %v1428, %v1427
      %v1442 = vpack.c.b16 %v1430, %v1429
      %v1443 = vpack.c.b16 %v1432, %v1431
      %v1444 = vpack.c.b16 %v1434, %v1433
      %v1445 = vpack.c.b16 %v1436, %v1435
      %v1446 = vpack.c.b16 %v1438, %v1437
      %1455 = vmatprep.subr.bf16.mxu0 0
      %1456 = vmatpush1.bf16.msra.mxu0 %v1446
      %1457 = vmatprep.subr.bf16.mxu0 0
      %1458 = vmatpush1.bf16.msra.mxu0 %v1445
      %1459 = vmatprep.subr.bf16.mxu0 0
      %1460 = vmatpush1.bf16.msra.mxu0 %v1444
      %1461 = vmatprep.subr.bf16.mxu0 0
      %1462 = vmatpush1.bf16.msra.mxu0 %v1443
      %1463 = vmatprep.subr.bf16.mxu0 0
      %1464 = vmatpush1.bf16.msra.mxu0 %v1442
      %1465 = vmatprep.subr.bf16.mxu0 0
      %1466 = vmatpush1.bf16.msra.mxu0 %v1441
      %1467 = vmatprep.subr.bf16.mxu0 0
      %1468 = vmatpush1.bf16.msra.mxu0 %v1440
      %1469 = vmatprep.subr.bf16.mxu0 0
      %1470 = vmatpush1.bf16.msra.mxu0 %v1439
      %1471 = vmatprep.subr.bf16.mxu0 0
      %1472 = vmatpush2.bf16.msra.mxu0 0
      %1473 = vmatprep.subr.bf16.mxu0 0
      %1474 = vmatpush2.bf16.msra.mxu0 0
      %1475 = vmatprep.subr.bf16.mxu0 0
      %1476 = vmatpush2.bf16.msra.mxu0 0
      %1477 = vmatprep.subr.bf16.mxu0 0
      %1478 = vmatpush2.bf16.msra.mxu0 0
      %1479 = vmatprep.subr.bf16.mxu0 0
      %1480 = vmatpush2.bf16.msra.mxu0 0
      %1481 = vmatprep.subr.bf16.mxu0 0
      %1482 = vmatpush2.bf16.msra.mxu0 0
      %1483 = vmatprep.subr.bf16.mxu0 0
      %1484 = vmatpush2.bf16.msra.mxu0 0
      %1485 = vmatprep.subr.bf16.mxu0 0
      %1486 = vmatpush2.bf16.msra.mxu0 0
      %1487 = vmatprep.mubr.bf16.mxu0 0
      %1488 = vmatmul.mubr.bf16.gmra.mxu0 %v1386
      %v1489 = vpop.f32.mrf.mxu0
      %v1490 = vadd.f32 0.0, %v1489
      %v1491 = vpop.f32.mrf.mxu0
      %v1492 = vpop.f32.mrf.mxu0
      %v1493 = vadd.f32 0.0, %v1492
      %v1494 = vpop.f32.mrf.mxu0
      %1495 = vmatprep.mubr.bf16.mxu0 0
      %1496 = vmatmul.mubr.bf16.gmra.mxu0 %v1387
      %v1497 = vpop.f32.mrf.mxu0
      %v1498 = vadd.f32 0.0, %v1497
      %v1499 = vpop.f32.mrf.mxu0
      %v1500 = vpop.f32.mrf.mxu0
      %v1501 = vadd.f32 0.0, %v1500
      %v1502 = vpop.f32.mrf.mxu0
      %1503 = vmatprep.mubr.bf16.mxu0 0
      %1504 = vmatmul.mubr.bf16.gmra.mxu0 %v1388
      %v1505 = vpop.f32.mrf.mxu0
      %v1506 = vadd.f32 0.0, %v1505
      %v1507 = vpop.f32.mrf.mxu0
      %v1508 = vpop.f32.mrf.mxu0
      %v1509 = vadd.f32 0.0, %v1508
      %v1510 = vpop.f32.mrf.mxu0
      %1511 = vmatprep.mubr.bf16.mxu0 0
      %1512 = vmatmul.mubr.bf16.gmra.mxu0 %v1389
      %v1513 = vpop.f32.mrf.mxu0
      %v1514 = vadd.f32 0.0, %v1513
      %v1515 = vpop.f32.mrf.mxu0
      %v1516 = vpop.f32.mrf.mxu0
      %v1517 = vadd.f32 0.0, %v1516
      %v1518 = vpop.f32.mrf.mxu0
      %1519 = vdwg.mxu0
      %v1520 = vld [vmem:[#allocation3] sm:$0xff]
      %v1521 = vld [vmem:[#allocation3 + $0x8] sm:$0xff]
      %v1522 = vld [vmem:[#allocation3 + $0x10] sm:$0xff]
      %v1523 = vld [vmem:[#allocation3 + $0x18] sm:$0xff]
      %v1524 = vld [vmem:[#allocation3 + $0x20] sm:$0xff]
      %v1525 = vld [vmem:[#allocation3 + $0x28] sm:$0xff]
      %v1526 = vld [vmem:[#allocation3 + $0x30] sm:$0xff]
      %v1527 = vld [vmem:[#allocation3 + $0x38] sm:$0xff]
      %v1528 = vadd.f32 %v1520, %v1490
      %v1529 = vadd.f32 %v1521, %v1493
      %v1530 = vadd.f32 %v1522, %v1498
      %v1531 = vadd.f32 %v1523, %v1501
      %v1532 = vadd.f32 %v1524, %v1506
      %v1533 = vadd.f32 %v1525, %v1509
      %v1534 = vadd.f32 %v1526, %v1514
      %v1535 = vadd.f32 %v1527, %v1517
      %1536 = vst [vmem:[#allocation3] sm:$0xff] %v1528
      %1537 = vst [vmem:[#allocation3 + $0x8] sm:$0xff] %v1529
      %1538 = vst [vmem:[#allocation3 + $0x10] sm:$0xff] %v1530
      %1539 = vst [vmem:[#allocation3 + $0x18] sm:$0xff] %v1531
      %1540 = vst [vmem:[#allocation3 + $0x20] sm:$0xff] %v1532
      %1541 = vst [vmem:[#allocation3 + $0x28] sm:$0xff] %v1533
      %1542 = vst [vmem:[#allocation3 + $0x30] sm:$0xff] %v1534
      %1543 = vst [vmem:[#allocation3 + $0x38] sm:$0xff] %v1535
      %s1544 = scalar_lea.vmem [#allocation2], 48
      %v1545 = vld [vmem:[%s1544] ss:$2 sm:$0xff]
      %s1546 = scalar_lea.vmem %s1544, 48 [#allocation2]
      %v1547 = vld [vmem:[%s1546] ss:$2 sm:$0xff]
      %s1548 = scalar_lea.vmem %s1544, 96 [#allocation2]
      %v1549 = vld [vmem:[%s1548] ss:$2 sm:$0xff]
      %s1550 = scalar_lea.vmem %s1544, 144 [#allocation2]
      %v1551 = vld [vmem:[%s1550] ss:$2 sm:$0xff]
      %s1552 = scalar_lea.vmem %s1544, 192 [#allocation2]
      %v1553 = vld [vmem:[%s1552] ss:$2 sm:$0xff]
      %s1554 = scalar_lea.vmem %s1544, 240 [#allocation2]
      %v1555 = vld [vmem:[%s1554] ss:$2 sm:$0xff]
      %s1556 = scalar_lea.vmem %s1544, 288 [#allocation2]
      %v1557 = vld [vmem:[%s1556] ss:$2 sm:$0xff]
      %s1558 = scalar_lea.vmem %s1544, 336 [#allocation2]
      %v1559 = vld [vmem:[%s1558] ss:$2 sm:$0xff]
      %v1560 = vpack.c.bf16 %v1547, %v1545
      %v1561 = vpack.c.bf16 %v1551, %v1549
      %v1562 = vpack.c.bf16 %v1555, %v1553
      %v1563 = vpack.c.bf16 %v1559, %v1557
      %s1564 = scalar_lea.vmem %s3, 384
      %v1565 = vld [vmem:[%s1564] sm:$0xf]
      %v1566 = vld [vmem:[%s1564 + $0x4] sm:$0xf]
      %v1567 = vld [vmem:[%s1564 + $0x8] sm:$0xf]
      %v1568 = vld [vmem:[%s1564 + $0xc] sm:$0xf]
      %v1569 = vld [vmem:[%s1564 + $0x10] sm:$0xf]
      %v1570 = vld [vmem:[%s1564 + $0x14] sm:$0xf]
      %v1571 = vld [vmem:[%s1564 + $0x18] sm:$0xf]
      %v1572 = vld [vmem:[%s1564 + $0x1c] sm:$0xf]
      %v1573 = vld [vmem:[%s1564 + $0x20] sm:$0xf]
      %v1574 = vld [vmem:[%s1564 + $0x24] sm:$0xf]
      %v1575 = vld [vmem:[%s1564 + $0x28] sm:$0xf]
      %v1576 = vld [vmem:[%s1564 + $0x2c] sm:$0xf]
      %v1577 = vld [vmem:[%s1564 + $0x30] sm:$0xf]
      %v1578 = vld [vmem:[%s1564 + $0x34] sm:$0xf]
      %v1579 = vld [vmem:[%s1564 + $0x38] sm:$0xf]
      %v1580 = vld [vmem:[%s1564 + $0x3c] sm:$0xf]
      %v1597 = vunpack.c.l.b16 %v1565
      %v1598 = vunpack.c.l.b16 %v1566
      %v1599 = vunpack.c.l.b16 %v1567
      %v1600 = vunpack.c.l.b16 %v1568
      %v1601 = vunpack.c.l.b16 %v1569
      %v1602 = vunpack.c.l.b16 %v1570
      %v1603 = vunpack.c.l.b16 %v1571
      %v1604 = vunpack.c.l.b16 %v1572
      %v1605 = vunpack.c.l.b16 %v1573
      %v1606 = vunpack.c.l.b16 %v1574
      %v1607 = vunpack.c.l.b16 %v1575
      %v1608 = vunpack.c.l.b16 %v1576
      %v1609 = vunpack.c.l.b16 %v1577
      %v1610 = vunpack.c.l.b16 %v1578
      %v1611 = vunpack.c.l.b16 %v1579
      %v1612 = vunpack.c.l.b16 %v1580
      %v1613 = vpack.c.b16 %v1598, %v1597
      %v1614 = vpack.c.b16 %v1600, %v1599
      %v1615 = vpack.c.b16 %v1602, %v1601
      %v1616 = vpack.c.b16 %v1604, %v1603
      %v1617 = vpack.c.b16 %v1606, %v1605
      %v1618 = vpack.c.b16 %v1608, %v1607
      %v1619 = vpack.c.b16 %v1610, %v1609
      %v1620 = vpack.c.b16 %v1612, %v1611
      %1629 = vmatprep.subr.bf16.mxu0 0
      %1630 = vmatpush1.bf16.msra.mxu0 %v1620
      %1631 = vmatprep.subr.bf16.mxu0 0
      %1632 = vmatpush1.bf16.msra.mxu0 %v1619
      %1633 = vmatprep.subr.bf16.mxu0 0
      %1634 = vmatpush1.bf16.msra.mxu0 %v1618
      %1635 = vmatprep.subr.bf16.mxu0 0
      %1636 = vmatpush1.bf16.msra.mxu0 %v1617
      %1637 = vmatprep.subr.bf16.mxu0 0
      %1638 = vmatpush1.bf16.msra.mxu0 %v1616
      %1639 = vmatprep.subr.bf16.mxu0 0
      %1640 = vmatpush1.bf16.msra.mxu0 %v1615
      %1641 = vmatprep.subr.bf16.mxu0 0
      %1642 = vmatpush1.bf16.msra.mxu0 %v1614
      %1643 = vmatprep.subr.bf16.mxu0 0
      %1644 = vmatpush1.bf16.msra.mxu0 %v1613
      %1645 = vmatprep.subr.bf16.mxu0 0
      %1646 = vmatpush2.bf16.msra.mxu0 0
      %1647 = vmatprep.subr.bf16.mxu0 0
      %1648 = vmatpush2.bf16.msra.mxu0 0
      %1649 = vmatprep.subr.bf16.mxu0 0
      %1650 = vmatpush2.bf16.msra.mxu0 0
      %1651 = vmatprep.subr.bf16.mxu0 0
      %1652 = vmatpush2.bf16.msra.mxu0 0
      %1653 = vmatprep.subr.bf16.mxu0 0
      %1654 = vmatpush2.bf16.msra.mxu0 0
      %1655 = vmatprep.subr.bf16.mxu0 0
      %1656 = vmatpush2.bf16.msra.mxu0 0
      %1657 = vmatprep.subr.bf16.mxu0 0
      %1658 = vmatpush2.bf16.msra.mxu0 0
      %1659 = vmatprep.subr.bf16.mxu0 0
      %1660 = vmatpush2.bf16.msra.mxu0 0
      %1661 = vmatprep.mubr.bf16.mxu0 0
      %1662 = vmatmul.mubr.bf16.gmra.mxu0 %v1560
      %v1663 = vpop.f32.mrf.mxu0
      %v1664 = vadd.f32 0.0, %v1663
      %v1665 = vpop.f32.mrf.mxu0
      %v1666 = vpop.f32.mrf.mxu0
      %v1667 = vadd.f32 0.0, %v1666
      %v1668 = vpop.f32.mrf.mxu0
      %1669 = vmatprep.mubr.bf16.mxu0 0
      %1670 = vmatmul.mubr.bf16.gmra.mxu0 %v1561
      %v1671 = vpop.f32.mrf.mxu0
      %v1672 = vadd.f32 0.0, %v1671
      %v1673 = vpop.f32.mrf.mxu0
      %v1674 = vpop.f32.mrf.mxu0
      %v1675 = vadd.f32 0.0, %v1674
      %v1676 = vpop.f32.mrf.mxu0
      %1677 = vmatprep.mubr.bf16.mxu0 0
      %1678 = vmatmul.mubr.bf16.gmra.mxu0 %v1562
      %v1679 = vpop.f32.mrf.mxu0
      %v1680 = vadd.f32 0.0, %v1679
      %v1681 = vpop.f32.mrf.mxu0
      %v1682 = vpop.f32.mrf.mxu0
      %v1683 = vadd.f32 0.0, %v1682
      %v1684 = vpop.f32.mrf.mxu0
      %1685 = vmatprep.mubr.bf16.mxu0 0
      %1686 = vmatmul.mubr.bf16.gmra.mxu0 %v1563
      %v1687 = vpop.f32.mrf.mxu0
      %v1688 = vadd.f32 0.0, %v1687
      %v1689 = vpop.f32.mrf.mxu0
      %v1690 = vpop.f32.mrf.mxu0
      %v1691 = vadd.f32 0.0, %v1690
      %v1692 = vpop.f32.mrf.mxu0
      %1693 = vdwg.mxu0
      %v1694 = vld [vmem:[#allocation3] sm:$0xff]
      %v1695 = vld [vmem:[#allocation3 + $0x8] sm:$0xff]
      %v1696 = vld [vmem:[#allocation3 + $0x10] sm:$0xff]
      %v1697 = vld [vmem:[#allocation3 + $0x18] sm:$0xff]
      %v1698 = vld [vmem:[#allocation3 + $0x20] sm:$0xff]
      %v1699 = vld [vmem:[#allocation3 + $0x28] sm:$0xff]
      %v1700 = vld [vmem:[#allocation3 + $0x30] sm:$0xff]
      %v1701 = vld [vmem:[#allocation3 + $0x38] sm:$0xff]
      %v1702 = vadd.f32 %v1694, %v1664
      %v1703 = vadd.f32 %v1695, %v1667
      %v1704 = vadd.f32 %v1696, %v1672
      %v1705 = vadd.f32 %v1697, %v1675
      %v1706 = vadd.f32 %v1698, %v1680
      %v1707 = vadd.f32 %v1699, %v1683
      %v1708 = vadd.f32 %v1700, %v1688
      %v1709 = vadd.f32 %v1701, %v1691
      %1710 = vst [vmem:[#allocation3] sm:$0xff] %v1702
      %1711 = vst [vmem:[#allocation3 + $0x8] sm:$0xff] %v1703
      %1712 = vst [vmem:[#allocation3 + $0x10] sm:$0xff] %v1704
      %1713 = vst [vmem:[#allocation3 + $0x18] sm:$0xff] %v1705
      %1714 = vst [vmem:[#allocation3 + $0x20] sm:$0xff] %v1706
      %1715 = vst [vmem:[#allocation3 + $0x28] sm:$0xff] %v1707
      %1716 = vst [vmem:[#allocation3 + $0x30] sm:$0xff] %v1708
      %1717 = vst [vmem:[#allocation3 + $0x38] sm:$0xff] %v1709
      %s1718 = scalar_lea.vmem %s1544, 1 [#allocation2]
      %v1719 = vld [vmem:[%s1718] ss:$2 sm:$0xff]
      %s1720 = scalar_lea.vmem %s1544, 49 [#allocation2]
      %v1721 = vld [vmem:[%s1720] ss:$2 sm:$0xff]
      %s1722 = scalar_lea.vmem %s1544, 97 [#allocation2]
      %v1723 = vld [vmem:[%s1722] ss:$2 sm:$0xff]
      %s1724 = scalar_lea.vmem %s1544, 145 [#allocation2]
      %v1725 = vld [vmem:[%s1724] ss:$2 sm:$0xff]
      %s1726 = scalar_lea.vmem %s1544, 193 [#allocation2]
      %v1727 = vld [vmem:[%s1726] ss:$2 sm:$0xff]
      %s1728 = scalar_lea.vmem %s1544, 241 [#allocation2]
      %v1729 = vld [vmem:[%s1728] ss:$2 sm:$0xff]
      %s1730 = scalar_lea.vmem %s1544, 289 [#allocation2]
      %v1731 = vld [vmem:[%s1730] ss:$2 sm:$0xff]
      %s1732 = scalar_lea.vmem %s1544, 337 [#allocation2]
      %v1733 = vld [vmem:[%s1732] ss:$2 sm:$0xff]
      %v1734 = vpack.c.bf16 %v1721, %v1719
      %v1735 = vpack.c.bf16 %v1725, %v1723
      %v1736 = vpack.c.bf16 %v1729, %v1727
      %v1737 = vpack.c.bf16 %v1733, %v1731
      %s1738 = scalar_lea.vmem %s3, 448
      %v1739 = vld [vmem:[%s1738] sm:$0xf]
      %v1740 = vld [vmem:[%s1738 + $0x4] sm:$0xf]
      %v1741 = vld [vmem:[%s1738 + $0x8] sm:$0xf]
      %v1742 = vld [vmem:[%s1738 + $0xc] sm:$0xf]
      %v1743 = vld [vmem:[%s1738 + $0x10] sm:$0xf]
      %v1744 = vld [vmem:[%s1738 + $0x14] sm:$0xf]
      %v1745 = vld [vmem:[%s1738 + $0x18] sm:$0xf]
      %v1746 = vld [vmem:[%s1738 + $0x1c] sm:$0xf]
      %v1747 = vld [vmem:[%s1738 + $0x20] sm:$0xf]
      %v1748 = vld [vmem:[%s1738 + $0x24] sm:$0xf]
      %v1749 = vld [vmem:[%s1738 + $0x28] sm:$0xf]
      %v1750 = vld [vmem:[%s1738 + $0x2c] sm:$0xf]
      %v1751 = vld [vmem:[%s1738 + $0x30] sm:$0xf]
      %v1752 = vld [vmem:[%s1738 + $0x34] sm:$0xf]
      %v1753 = vld [vmem:[%s1738 + $0x38] sm:$0xf]
      %v1754 = vld [vmem:[%s1738 + $0x3c] sm:$0xf]
      %v1771 = vunpack.c.l.b16 %v1739
      %v1772 = vunpack.c.l.b16 %v1740
      %v1773 = vunpack.c.l.b16 %v1741
      %v1774 = vunpack.c.l.b16 %v1742
      %v1775 = vunpack.c.l.b16 %v1743
      %v1776 = vunpack.c.l.b16 %v1744
      %v1777 = vunpack.c.l.b16 %v1745
      %v1778 = vunpack.c.l.b16 %v1746
      %v1779 = vunpack.c.l.b16 %v1747
      %v1780 = vunpack.c.l.b16 %v1748
      %v1781 = vunpack.c.l.b16 %v1749
      %v1782 = vunpack.c.l.b16 %v1750
      %v1783 = vunpack.c.l.b16 %v1751
      %v1784 = vunpack.c.l.b16 %v1752
      %v1785 = vunpack.c.l.b16 %v1753
      %v1786 = vunpack.c.l.b16 %v1754
      %v1787 = vpack.c.b16 %v1772, %v1771
      %v1788 = vpack.c.b16 %v1774, %v1773
      %v1789 = vpack.c.b16 %v1776, %v1775
      %v1790 = vpack.c.b16 %v1778, %v1777
      %v1791 = vpack.c.b16 %v1780, %v1779
      %v1792 = vpack.c.b16 %v1782, %v1781
      %v1793 = vpack.c.b16 %v1784, %v1783
      %v1794 = vpack.c.b16 %v1786, %v1785
      %1803 = vmatprep.subr.bf16.mxu0 0
      %1804 = vmatpush1.bf16.msra.mxu0 %v1794
      %1805 = vmatprep.subr.bf16.mxu0 0
      %1806 = vmatpush1.bf16.msra.mxu0 %v1793
      %1807 = vmatprep.subr.bf16.mxu0 0
      %1808 = vmatpush1.bf16.msra.mxu0 %v1792
      %1809 = vmatprep.subr.bf16.mxu0 0
      %1810 = vmatpush1.bf16.msra.mxu0 %v1791
      %1811 = vmatprep.subr.bf16.mxu0 0
      %1812 = vmatpush1.bf16.msra.mxu0 %v1790
      %1813 = vmatprep.subr.bf16.mxu0 0
      %1814 = vmatpush1.bf16.msra.mxu0 %v1789
      %1815 = vmatprep.subr.bf16.mxu0 0
      %1816 = vmatpush1.bf16.msra.mxu0 %v1788
      %1817 = vmatprep.subr.bf16.mxu0 0
      %1818 = vmatpush1.bf16.msra.mxu0 %v1787
      %1819 = vmatprep.subr.bf16.mxu0 0
      %1820 = vmatpush2.bf16.msra.mxu0 0
      %1821 = vmatprep.subr.bf16.mxu0 0
      %1822 = vmatpush2.bf16.msra.mxu0 0
      %1823 = vmatprep.subr.bf16.mxu0 0
      %1824 = vmatpush2.bf16.msra.mxu0 0
      %1825 = vmatprep.subr.bf16.mxu0 0
      %1826 = vmatpush2.bf16.msra.mxu0 0
      %1827 = vmatprep.subr.bf16.mxu0 0
      %1828 = vmatpush2.bf16.msra.mxu0 0
      %1829 = vmatprep.subr.bf16.mxu0 0
      %1830 = vmatpush2.bf16.msra.mxu0 0
      %1831 = vmatprep.subr.bf16.mxu0 0
      %1832 = vmatpush2.bf16.msra.mxu0 0
      %1833 = vmatprep.subr.bf16.mxu0 0
      %1834 = vmatpush2.bf16.msra.mxu0 0
      %1835 = vmatprep.mubr.bf16.mxu0 0
      %1836 = vmatmul.mubr.bf16.gmra.mxu0 %v1734
      %v1837 = vpop.f32.mrf.mxu0
      %v1838 = vadd.f32 0.0, %v1837
      %v1839 = vpop.f32.mrf.mxu0
      %v1840 = vpop.f32.mrf.mxu0
      %v1841 = vadd.f32 0.0, %v1840
      %v1842 = vpop.f32.mrf.mxu0
      %1843 = vmatprep.mubr.bf16.mxu0 0
      %1844 = vmatmul.mubr.bf16.gmra.mxu0 %v1735
      %v1845 = vpop.f32.mrf.mxu0
      %v1846 = vadd.f32 0.0, %v1845
      %v1847 = vpop.f32.mrf.mxu0
      %v1848 = vpop.f32.mrf.mxu0
      %v1849 = vadd.f32 0.0, %v1848
      %v1850 = vpop.f32.mrf.mxu0
      %1851 = vmatprep.mubr.bf16.mxu0 0
      %1852 = vmatmul.mubr.bf16.gmra.mxu0 %v1736
      %v1853 = vpop.f32.mrf.mxu0
      %v1854 = vadd.f32 0.0, %v1853
      %v1855 = vpop.f32.mrf.mxu0
      %v1856 = vpop.f32.mrf.mxu0
      %v1857 = vadd.f32 0.0, %v1856
      %v1858 = vpop.f32.mrf.mxu0
      %1859 = vmatprep.mubr.bf16.mxu0 0
      %1860 = vmatmul.mubr.bf16.gmra.mxu0 %v1737
      %v1861 = vpop.f32.mrf.mxu0
      %v1862 = vadd.f32 0.0, %v1861
      %v1863 = vpop.f32.mrf.mxu0
      %v1864 = vpop.f32.mrf.mxu0
      %v1865 = vadd.f32 0.0, %v1864
      %v1866 = vpop.f32.mrf.mxu0
      %1867 = vdwg.mxu0
      %v1868 = vld [vmem:[#allocation3] sm:$0xff]
      %v1869 = vld [vmem:[#allocation3 + $0x8] sm:$0xff]
      %v1870 = vld [vmem:[#allocation3 + $0x10] sm:$0xff]
      %v1871 = vld [vmem:[#allocation3 + $0x18] sm:$0xff]
      %v1872 = vld [vmem:[#allocation3 + $0x20] sm:$0xff]
      %v1873 = vld [vmem:[#allocation3 + $0x28] sm:$0xff]
      %v1874 = vld [vmem:[#allocation3 + $0x30] sm:$0xff]
      %v1875 = vld [vmem:[#allocation3 + $0x38] sm:$0xff]
      %v1876 = vadd.f32 %v1868, %v1838
      %v1877 = vadd.f32 %v1869, %v1841
      %v1878 = vadd.f32 %v1870, %v1846
      %v1879 = vadd.f32 %v1871, %v1849
      %v1880 = vadd.f32 %v1872, %v1854
      %v1881 = vadd.f32 %v1873, %v1857
      %v1882 = vadd.f32 %v1874, %v1862
      %v1883 = vadd.f32 %v1875, %v1865
      %1884 = vst [vmem:[#allocation3] sm:$0xff] %v1876
      %1885 = vst [vmem:[#allocation3 + $0x8] sm:$0xff] %v1877
      %1886 = vst [vmem:[#allocation3 + $0x10] sm:$0xff] %v1878
      %1887 = vst [vmem:[#allocation3 + $0x18] sm:$0xff] %v1879
      %1888 = vst [vmem:[#allocation3 + $0x20] sm:$0xff] %v1880
      %1889 = vst [vmem:[#allocation3 + $0x28] sm:$0xff] %v1881
      %1890 = vst [vmem:[#allocation3 + $0x30] sm:$0xff] %v1882
      %1891 = vst [vmem:[#allocation3 + $0x38] sm:$0xff] %v1883
      %s1892 = scalar_lea.vmem %s1544, 2 [#allocation2]
      %v1893 = vld [vmem:[%s1892] ss:$2 sm:$0xff]
      %s1894 = scalar_lea.vmem %s1544, 50 [#allocation2]
      %v1895 = vld [vmem:[%s1894] ss:$2 sm:$0xff]
      %s1896 = scalar_lea.vmem %s1544, 98 [#allocation2]
      %v1897 = vld [vmem:[%s1896] ss:$2 sm:$0xff]
      %s1898 = scalar_lea.vmem %s1544, 146 [#allocation2]
      %v1899 = vld [vmem:[%s1898] ss:$2 sm:$0xff]
      %s1900 = scalar_lea.vmem %s1544, 194 [#allocation2]
      %v1901 = vld [vmem:[%s1900] ss:$2 sm:$0xff]
      %s1902 = scalar_lea.vmem %s1544, 242 [#allocation2]
      %v1903 = vld [vmem:[%s1902] ss:$2 sm:$0xff]
      %s1904 = scalar_lea.vmem %s1544, 290 [#allocation2]
      %v1905 = vld [vmem:[%s1904] ss:$2 sm:$0xff]
      %s1906 = scalar_lea.vmem %s1544, 338 [#allocation2]
      %v1907 = vld [vmem:[%s1906] ss:$2 sm:$0xff]
      %v1908 = vpack.c.bf16 %v1895, %v1893
      %v1909 = vpack.c.bf16 %v1899, %v1897
      %v1910 = vpack.c.bf16 %v1903, %v1901
      %v1911 = vpack.c.bf16 %v1907, %v1905
      %s1912 = scalar_lea.vmem %s3, 512
      %v1913 = vld [vmem:[%s1912] sm:$0xf]
      %v1914 = vld [vmem:[%s1912 + $0x4] sm:$0xf]
      %v1915 = vld [vmem:[%s1912 + $0x8] sm:$0xf]
      %v1916 = vld [vmem:[%s1912 + $0xc] sm:$0xf]
      %v1917 = vld [vmem:[%s1912 + $0x10] sm:$0xf]
      %v1918 = vld [vmem:[%s1912 + $0x14] sm:$0xf]
      %v1919 = vld [vmem:[%s1912 + $0x18] sm:$0xf]
      %v1920 = vld [vmem:[%s1912 + $0x1c] sm:$0xf]
      %v1921 = vld [vmem:[%s1912 + $0x20] sm:$0xf]
      %v1922 = vld [vmem:[%s1912 + $0x24] sm:$0xf]
      %v1923 = vld [vmem:[%s1912 + $0x28] sm:$0xf]
      %v1924 = vld [vmem:[%s1912 + $0x2c] sm:$0xf]
      %v1925 = vld [vmem:[%s1912 + $0x30] sm:$0xf]
      %v1926 = vld [vmem:[%s1912 + $0x34] sm:$0xf]
      %v1927 = vld [vmem:[%s1912 + $0x38] sm:$0xf]
      %v1928 = vld [vmem:[%s1912 + $0x3c] sm:$0xf]
      %v1945 = vunpack.c.l.b16 %v1913
      %v1946 = vunpack.c.l.b16 %v1914
      %v1947 = vunpack.c.l.b16 %v1915
      %v1948 = vunpack.c.l.b16 %v1916
      %v1949 = vunpack.c.l.b16 %v1917
      %v1950 = vunpack.c.l.b16 %v1918
      %v1951 = vunpack.c.l.b16 %v1919
      %v1952 = vunpack.c.l.b16 %v1920
      %v1953 = vunpack.c.l.b16 %v1921
      %v1954 = vunpack.c.l.b16 %v1922
      %v1955 = vunpack.c.l.b16 %v1923
      %v1956 = vunpack.c.l.b16 %v1924
      %v1957 = vunpack.c.l.b16 %v1925
      %v1958 = vunpack.c.l.b16 %v1926
      %v1959 = vunpack.c.l.b16 %v1927
      %v1960 = vunpack.c.l.b16 %v1928
      %v1961 = vpack.c.b16 %v1946, %v1945
      %v1962 = vpack.c.b16 %v1948, %v1947
      %v1963 = vpack.c.b16 %v1950, %v1949
      %v1964 = vpack.c.b16 %v1952, %v1951
      %v1965 = vpack.c.b16 %v1954, %v1953
      %v1966 = vpack.c.b16 %v1956, %v1955
      %v1967 = vpack.c.b16 %v1958, %v1957
      %v1968 = vpack.c.b16 %v1960, %v1959
      %1977 = vmatprep.subr.bf16.mxu0 0
      %1978 = vmatpush1.bf16.msra.mxu0 %v1968
      %1979 = vmatprep.subr.bf16.mxu0 0
      %1980 = vmatpush1.bf16.msra.mxu0 %v1967
      %1981 = vmatprep.subr.bf16.mxu0 0
      %1982 = vmatpush1.bf16.msra.mxu0 %v1966
      %1983 = vmatprep.subr.bf16.mxu0 0
      %1984 = vmatpush1.bf16.msra.mxu0 %v1965
      %1985 = vmatprep.subr.bf16.mxu0 0
      %1986 = vmatpush1.bf16.msra.mxu0 %v1964
      %1987 = vmatprep.subr.bf16.mxu0 0
      %1988 = vmatpush1.bf16.msra.mxu0 %v1963
      %1989 = vmatprep.subr.bf16.mxu0 0
      %1990 = vmatpush1.bf16.msra.mxu0 %v1962
      %1991 = vmatprep.subr.bf16.mxu0 0
      %1992 = vmatpush1.bf16.msra.mxu0 %v1961
      %1993 = vmatprep.subr.bf16.mxu0 0
      %1994 = vmatpush2.bf16.msra.mxu0 0
      %1995 = vmatprep.subr.bf16.mxu0 0
      %1996 = vmatpush2.bf16.msra.mxu0 0
      %1997 = vmatprep.subr.bf16.mxu0 0
      %1998 = vmatpush2.bf16.msra.mxu0 0
      %1999 = vmatprep.subr.bf16.mxu0 0
      %2000 = vmatpush2.bf16.msra.mxu0 0
      %2001 = vmatprep.subr.bf16.mxu0 0
      %2002 = vmatpush2.bf16.msra.mxu0 0
      %2003 = vmatprep.subr.bf16.mxu0 0
      %2004 = vmatpush2.bf16.msra.mxu0 0
      %2005 = vmatprep.subr.bf16.mxu0 0
      %2006 = vmatpush2.bf16.msra.mxu0 0
      %2007 = vmatprep.subr.bf16.mxu0 0
      %2008 = vmatpush2.bf16.msra.mxu0 0
      %2009 = vmatprep.mubr.bf16.mxu0 0
      %2010 = vmatmul.mubr.bf16.gmra.mxu0 %v1908
      %v2011 = vpop.f32.mrf.mxu0
      %v2012 = vadd.f32 0.0, %v2011
      %v2013 = vpop.f32.mrf.mxu0
      %v2014 = vpop.f32.mrf.mxu0
      %v2015 = vadd.f32 0.0, %v2014
      %v2016 = vpop.f32.mrf.mxu0
      %2017 = vmatprep.mubr.bf16.mxu0 0
      %2018 = vmatmul.mubr.bf16.gmra.mxu0 %v1909
      %v2019 = vpop.f32.mrf.mxu0
      %v2020 = vadd.f32 0.0, %v2019
      %v2021 = vpop.f32.mrf.mxu0
      %v2022 = vpop.f32.mrf.mxu0
      %v2023 = vadd.f32 0.0, %v2022
      %v2024 = vpop.f32.mrf.mxu0
      %2025 = vmatprep.mubr.bf16.mxu0 0
      %2026 = vmatmul.mubr.bf16.gmra.mxu0 %v1910
      %v2027 = vpop.f32.mrf.mxu0
      %v2028 = vadd.f32 0.0, %v2027
      %v2029 = vpop.f32.mrf.mxu0
      %v2030 = vpop.f32.mrf.mxu0
      %v2031 = vadd.f32 0.0, %v2030
      %v2032 = vpop.f32.mrf.mxu0
      %2033 = vmatprep.mubr.bf16.mxu0 0
      %2034 = vmatmul.mubr.bf16.gmra.mxu0 %v1911
      %v2035 = vpop.f32.mrf.mxu0
      %v2036 = vadd.f32 0.0, %v2035
      %v2037 = vpop.f32.mrf.mxu0
      %v2038 = vpop.f32.mrf.mxu0
      %v2039 = vadd.f32 0.0, %v2038
      %v2040 = vpop.f32.mrf.mxu0
      %2041 = vdwg.mxu0
      %v2042 = vld [vmem:[#allocation3] sm:$0xff]
      %v2043 = vld [vmem:[#allocation3 + $0x8] sm:$0xff]
      %v2044 = vld [vmem:[#allocation3 + $0x10] sm:$0xff]
      %v2045 = vld [vmem:[#allocation3 + $0x18] sm:$0xff]
      %v2046 = vld [vmem:[#allocation3 + $0x20] sm:$0xff]
      %v2047 = vld [vmem:[#allocation3 + $0x28] sm:$0xff]
      %v2048 = vld [vmem:[#allocation3 + $0x30] sm:$0xff]
      %v2049 = vld [vmem:[#allocation3 + $0x38] sm:$0xff]
      %v2050 = vadd.f32 %v2042, %v2012
      %v2051 = vadd.f32 %v2043, %v2015
      %v2052 = vadd.f32 %v2044, %v2020
      %v2053 = vadd.f32 %v2045, %v2023
      %v2054 = vadd.f32 %v2046, %v2028
      %v2055 = vadd.f32 %v2047, %v2031
      %v2056 = vadd.f32 %v2048, %v2036
      %v2057 = vadd.f32 %v2049, %v2039
      %2058 = vst [vmem:[#allocation3] sm:$0xff] %v2050
      %2059 = vst [vmem:[#allocation3 + $0x8] sm:$0xff] %v2051
      %2060 = vst [vmem:[#allocation3 + $0x10] sm:$0xff] %v2052
      %2061 = vst [vmem:[#allocation3 + $0x18] sm:$0xff] %v2053
      %2062 = vst [vmem:[#allocation3 + $0x20] sm:$0xff] %v2054
      %2063 = vst [vmem:[#allocation3 + $0x28] sm:$0xff] %v2055
      %2064 = vst [vmem:[#allocation3 + $0x30] sm:$0xff] %v2056
      %2065 = vst [vmem:[#allocation3 + $0x38] sm:$0xff] %v2057
      %v2066 = vld [vmem:[#allocation3] sm:$0xff]
      %v2067 = vld [vmem:[#allocation3 + $0x8] sm:$0xff]
      %v2068 = vld [vmem:[#allocation3 + $0x10] sm:$0xff]
      %v2069 = vld [vmem:[#allocation3 + $0x18] sm:$0xff]
      %v2070 = vld [vmem:[#allocation3 + $0x20] sm:$0xff]
      %v2071 = vld [vmem:[#allocation3 + $0x28] sm:$0xff]
      %v2072 = vld [vmem:[#allocation3 + $0x30] sm:$0xff]
      %v2073 = vld [vmem:[#allocation3 + $0x38] sm:$0xff]
      %2074 = vst [vmem:[%s283] sm:$0xff] %v2066
      %2075 = vst [vmem:[%s283 + $0x8] sm:$0xff] %v2067
      %2076 = vst [vmem:[%s283 + $0x10] sm:$0xff] %v2068
      %2077 = vst [vmem:[%s283 + $0x18] sm:$0xff] %v2069
      %2078 = vst [vmem:[%s283 + $0x20] sm:$0xff] %v2070
      %2079 = vst [vmem:[%s283 + $0x28] sm:$0xff] %v2071
      %2080 = vst [vmem:[%s283 + $0x30] sm:$0xff] %v2072
      %2081 = vst [vmem:[%s283 + $0x38] sm:$0xff] %v2073
      %p2082 = scmp.eq.s32.totalorder %s19, 0
      // Predicated region
      $region41: #{basic_block_forward.4} parent=39 // pred_check
        %p2083 = pneg %p2082
      $region42: #{basic_block_forward.4} parent=39 // pred_check_branch
        %2085 = sbr.rel (%p2083) target = $region44
      $region43: #{basic_block_forward.4} parent=39 // pred_region
        %2086 = vst [vmem:[%s7] sm:$0xff] 0.0
      $region44: #{basic_block_forward.4} parent=39 // pred_fallthru
        _
      %v2087 = vld [vmem:[%s7] sm:$0x1]
      %v2088 = vadd.f32 %v2066, %v2067
      %v2089 = vadd.f32 %v2088, %v2068
      %v2090 = vadd.f32 %v2089, %v2069
      %v2091 = vadd.f32 %v2090, %v2070
      %v2092 = vadd.f32 %v2091, %v2071
      %v2093 = vadd.f32 %v2092, %v2072
      %v2094 = vadd.f32 %v2093, %v2073
      %v2095 = vrot.slane %v2094, 4
      %v2096 = vadd.f32 %v2094, %v2095
      %v2097 = vrot.slane %v2096, 2
      %v2098 = vadd.f32 %v2096, %v2097
      %v2099 = vrot.slane %v2098, 1
      %v2100 = vadd.f32 %v2098, %v2099
      %v2101 = vadd.f32 %v2087, %v2100
      %2102 = vst [vmem:[%s7] sm:$0x1] %v2101
      %v2103 = vld [vmem:[%s7 + $0x1] sm:$0x1]
      %v2104 = vmul.f32 %v2066, %v2066
      %v2105 = vmul.f32 %v2067, %v2067
      %v2106 = vmul.f32 %v2068, %v2068
      %v2107 = vmul.f32 %v2069, %v2069
      %v2108 = vmul.f32 %v2070, %v2070
      %v2109 = vmul.f32 %v2071, %v2071
      %v2110 = vmul.f32 %v2072, %v2072
      %v2111 = vmul.f32 %v2073, %v2073
      %v2112 = vadd.f32 %v2104, %v2105
      %v2113 = vadd.f32 %v2112, %v2106
      %v2114 = vadd.f32 %v2113, %v2107
      %v2115 = vadd.f32 %v2114, %v2108
      %v2116 = vadd.f32 %v2115, %v2109
      %v2117 = vadd.f32 %v2116, %v2110
      %v2118 = vadd.f32 %v2117, %v2111
      %v2119 = vrot.slane %v2118, 4
      %v2120 = vadd.f32 %v2118, %v2119
      %v2121 = vrot.slane %v2120, 2
      %v2122 = vadd.f32 %v2120, %v2121
      %v2123 = vrot.slane %v2122, 1
      %v2124 = vadd.f32 %v2122, %v2123
      %v2125 = vadd.f32 %v2103, %v2124
      %2126 = vst [vmem:[%s7 + $0x1] sm:$0x1] %v2125
      %v2127 = vld [vmem:[%s1196] ss:$2 sm:$0xff]
      %v2128 = vld [vmem:[%s1198] ss:$2 sm:$0xff]
      %v2129 = vld [vmem:[%s1200] ss:$2 sm:$0xff]
      %v2130 = vld [vmem:[%s1202] ss:$2 sm:$0xff]
      %v2131 = vld [vmem:[%s1204] ss:$2 sm:$0xff]
      %v2132 = vld [vmem:[%s1206] ss:$2 sm:$0xff]
      %v2133 = vld [vmem:[%s1208] ss:$2 sm:$0xff]
      %v2134 = vld [vmem:[%s1210] ss:$2 sm:$0xff]
      %v2135 = vpack.c.bf16 %v2128, %v2127
      %v2136 = vpack.c.bf16 %v2130, %v2129
      %v2137 = vpack.c.bf16 %v2132, %v2131
      %v2138 = vpack.c.bf16 %v2134, %v2133
      %v2139 = vld [vmem:[%s4] sm:$0xf]
      %v2140 = vld [vmem:[%s4 + $0x4] sm:$0xf]
      %v2141 = vld [vmem:[%s4 + $0x8] sm:$0xf]
      %v2142 = vld [vmem:[%s4 + $0xc] sm:$0xf]
      %v2143 = vld [vmem:[%s4 + $0x10] sm:$0xf]
      %v2144 = vld [vmem:[%s4 + $0x14] sm:$0xf]
      %v2145 = vld [vmem:[%s4 + $0x18] sm:$0xf]
      %v2146 = vld [vmem:[%s4 + $0x1c] sm:$0xf]
      %v2147 = vld [vmem:[%s4 + $0x20] sm:$0xf]
      %v2148 = vld [vmem:[%s4 + $0x24] sm:$0xf]
      %v2149 = vld [vmem:[%s4 + $0x28] sm:$0xf]
      %v2150 = vld [vmem:[%s4 + $0x2c] sm:$0xf]
      %v2151 = vld [vmem:[%s4 + $0x30] sm:$0xf]
      %v2152 = vld [vmem:[%s4 + $0x34] sm:$0xf]
      %v2153 = vld [vmem:[%s4 + $0x38] sm:$0xf]
      %v2154 = vld [vmem:[%s4 + $0x3c] sm:$0xf]
      %v2171 = vunpack.c.l.b16 %v2139
      %v2172 = vunpack.c.l.b16 %v2140
      %v2173 = vunpack.c.l.b16 %v2141
      %v2174 = vunpack.c.l.b16 %v2142
      %v2175 = vunpack.c.l.b16 %v2143
      %v2176 = vunpack.c.l.b16 %v2144
      %v2177 = vunpack.c.l.b16 %v2145
      %v2178 = vunpack.c.l.b16 %v2146
      %v2179 = vunpack.c.l.b16 %v2147
      %v2180 = vunpack.c.l.b16 %v2148
      %v2181 = vunpack.c.l.b16 %v2149
      %v2182 = vunpack.c.l.b16 %v2150
      %v2183 = vunpack.c.l.b16 %v2151
      %v2184 = vunpack.c.l.b16 %v2152
      %v2185 = vunpack.c.l.b16 %v2153
      %v2186 = vunpack.c.l.b16 %v2154
      %v2187 = vpack.c.b16 %v2172, %v2171
      %v2188 = vpack.c.b16 %v2174, %v2173
      %v2189 = vpack.c.b16 %v2176, %v2175
      %v2190 = vpack.c.b16 %v2178, %v2177
      %v2191 = vpack.c.b16 %v2180, %v2179
      %v2192 = vpack.c.b16 %v2182, %v2181
      %v2193 = vpack.c.b16 %v2184, %v2183
      %v2194 = vpack.c.b16 %v2186, %v2185
      %2203 = vmatprep.subr.bf16.mxu0 0
      %2204 = vmatpush1.bf16.msra.mxu0 %v2194
      %2205 = vmatprep.subr.bf16.mxu0 0
      %2206 = vmatpush1.bf16.msra.mxu0 %v2193
      %2207 = vmatprep.subr.bf16.mxu0 0
      %2208 = vmatpush1.bf16.msra.mxu0 %v2192
      %2209 = vmatprep.subr.bf16.mxu0 0
      %2210 = vmatpush1.bf16.msra.mxu0 %v2191
      %2211 = vmatprep.subr.bf16.mxu0 0
      %2212 = vmatpush1.bf16.msra.mxu0 %v2190
      %2213 = vmatprep.subr.bf16.mxu0 0
      %2214 = vmatpush1.bf16.msra.mxu0 %v2189
      %2215 = vmatprep.subr.bf16.mxu0 0
      %2216 = vmatpush1.bf16.msra.mxu0 %v2188
      %2217 = vmatprep.subr.bf16.mxu0 0
      %2218 = vmatpush1.bf16.msra.mxu0 %v2187
      %2219 = vmatprep.subr.bf16.mxu0 0
      %2220 = vmatpush2.bf16.msra.mxu0 0
      %2221 = vmatprep.subr.bf16.mxu0 0
      %2222 = vmatpush2.bf16.msra.mxu0 0
      %2223 = vmatprep.subr.bf16.mxu0 0
      %2224 = vmatpush2.bf16.msra.mxu0 0
      %2225 = vmatprep.subr.bf16.mxu0 0
      %2226 = vmatpush2.bf16.msra.mxu0 0
      %2227 = vmatprep.subr.bf16.mxu0 0
      %2228 = vmatpush2.bf16.msra.mxu0 0
      %2229 = vmatprep.subr.bf16.mxu0 0
      %2230 = vmatpush2.bf16.msra.mxu0 0
      %2231 = vmatprep.subr.bf16.mxu0 0
      %2232 = vmatpush2.bf16.msra.mxu0 0
      %2233 = vmatprep.subr.bf16.mxu0 0
      %2234 = vmatpush2.bf16.msra.mxu0 0
      %2235 = vmatprep.mubr.bf16.mxu0 0
      %2236 = vmatmul.mubr.bf16.gmra.mxu0 %v2135
      %v2237 = vpop.f32.mrf.mxu0
      %v2238 = vadd.f32 0.0, %v2237
      %v2239 = vpop.f32.mrf.mxu0
      %v2240 = vpop.f32.mrf.mxu0
      %v2241 = vadd.f32 0.0, %v2240
      %v2242 = vpop.f32.mrf.mxu0
      %2243 = vmatprep.mubr.bf16.mxu0 0
      %2244 = vmatmul.mubr.bf16.gmra.mxu0 %v2136
      %v2245 = vpop.f32.mrf.mxu0
      %v2246 = vadd.f32 0.0, %v2245
      %v2247 = vpop.f32.mrf.mxu0
      %v2248 = vpop.f32.mrf.mxu0
      %v2249 = vadd.f32 0.0, %v2248
      %v2250 = vpop.f32.mrf.mxu0
      %2251 = vmatprep.mubr.bf16.mxu0 0
      %2252 = vmatmul.mubr.bf16.gmra.mxu0 %v2137
      %v2253 = vpop.f32.mrf.mxu0
      %v2254 = vadd.f32 0.0, %v2253
      %v2255 = vpop.f32.mrf.mxu0
      %v2256 = vpop.f32.mrf.mxu0
      %v2257 = vadd.f32 0.0, %v2256
      %v2258 = vpop.f32.mrf.mxu0
      %2259 = vmatprep.mubr.bf16.mxu0 0
      %2260 = vmatmul.mubr.bf16.gmra.mxu0 %v2138
      %v2261 = vpop.f32.mrf.mxu0
      %v2262 = vadd.f32 0.0, %v2261
      %v2263 = vpop.f32.mrf.mxu0
      %v2264 = vpop.f32.mrf.mxu0
      %v2265 = vadd.f32 0.0, %v2264
      %v2266 = vpop.f32.mrf.mxu0
      %2267 = vdwg.mxu0
      %2268 = vst [vmem:[%s288] sm:$0xff] %v2238
      %2269 = vst [vmem:[%s288 + $0x8] sm:$0xff] %v2241
      %2270 = vst [vmem:[%s288 + $0x10] sm:$0xff] %v2246
      %2271 = vst [vmem:[%s288 + $0x18] sm:$0xff] %v2249
      %2272 = vst [vmem:[%s288 + $0x20] sm:$0xff] %v2254
      %2273 = vst [vmem:[%s288 + $0x28] sm:$0xff] %v2257
      %2274 = vst [vmem:[%s288 + $0x30] sm:$0xff] %v2262
      %2275 = vst [vmem:[%s288 + $0x38] sm:$0xff] %v2265
      %p2276 = scmp.lt.s32.totalorder %s19, 1
      %s2277 = scalar_select %p2276, %s19, 1
      %s2278 = smul.addr %s2277, 8
      %s2279 = smul.addr %s2278, 8
      %s2280 = scalar_lea.vmem %s5, %s2279
      %p2281 = scmp.lt.s32.totalorder %s19, 1
      %s2282 = scalar_select %p2281, %s19, 1
      %s2283 = smul.addr %s2282, 8
      %s2284 = smul.addr %s2283, 8
      %s2285 = scalar_lea.vmem %s6, %s2284
      // Predicated region
      $region45: #{basic_block_forward.4} parent=39 // pred_check
        %p2286 = pneg %p147
      $region46: #{basic_block_forward.4} parent=39 // pred_check_branch
        %2288 = sbr.rel (%p2286) target = $region48
      $region47: #{basic_block_forward.4} parent=39 // pred_region
        _
      $region48: #{basic_block_forward.4} parent=39 // pred_fallthru
        _
      // Predicated region
      $region49: #{basic_block_forward.4} parent=39 // pred_check
        %p2289 = pneg %p173
      $region50: #{basic_block_forward.4} parent=39 // pred_check_branch
        %2291 = sbr.rel (%p2289) target = $region52
      $region51: #{basic_block_forward.4} parent=39 // pred_region
        _
      $region52: #{basic_block_forward.4} parent=39 // pred_fallthru
        _
      // Predicated region
      $region53: #{basic_block_forward.4} parent=39 // pred_check
        %p2292 = pneg %p194
      $region54: #{basic_block_forward.4} parent=39 // pred_check_branch
        %2294 = sbr.rel (%p2292) target = $region56
      $region55: #{basic_block_forward.4} parent=39 // pred_region
        _
      $region56: #{basic_block_forward.4} parent=39 // pred_fallthru
        _
      // Predicated region
      $region57: #{basic_block_forward.4} parent=39 // pred_check
        %p2295 = pneg %p194
      $region58: #{basic_block_forward.4} parent=39 // pred_check_branch
        %2297 = sbr.rel (%p2295) target = $region60
      $region59: #{basic_block_forward.4} parent=39 // pred_region
        _
      $region60: #{basic_block_forward.4} parent=39 // pred_fallthru
        _
    $region40: #{basic_block_forward.4} parent=5 // pred_fallthru
      _
    %p2298 = scmp.le.s32.totalorder 2, %s14
    // Predicated region
    $region61: #{basic_block_forward.4} parent=5 // pred_check
      %p2299 = pneg %p2298
    $region62: #{basic_block_forward.4} parent=5 // pred_check_branch
      %2301 = sbr.rel (%p2299) target = $region64
    $region63: #{basic_block_forward.4} parent=5 // pred_region
      %s2302 = ssub.s32 %s14, 2
      // Predicated region
      $region65: #{basic_block_forward.4} parent=63 // pred_check
        %p2303 = pneg %p153
      $region66: #{basic_block_forward.4} parent=63 // pred_check_branch
        %2305 = sbr.rel (%p2303) target = $region68
      $region67: #{basic_block_forward.4} parent=63 // pred_region
        %p2306 = scmp.lt.s32.totalorder %s20, 1
        %s2307 = scalar_select %p2306, %s20, 1
        %s2308 = smul.addr %s2307, 8
        %s2309 = smul.addr %s2308, 8
        %s2310 = scalar_lea.vmem %s5, %s2309
      $region68: #{basic_block_forward.4} parent=63 // pred_fallthru
        _
      // Predicated region
      $region69: #{basic_block_forward.4} parent=63 // pred_check
        %p2311 = pneg %p179
      $region70: #{basic_block_forward.4} parent=63 // pred_check_branch
        %2313 = sbr.rel (%p2311) target = $region72
      $region71: #{basic_block_forward.4} parent=63 // pred_region
        %p2314 = scmp.lt.s32.totalorder %s20, 1
        %s2315 = scalar_select %p2314, %s20, 1
        %s2316 = smul.addr %s2315, 8
        %s2317 = smul.addr %s2316, 8
        %s2318 = scalar_lea.vmem %s6, %s2317
      $region72: #{basic_block_forward.4} parent=63 // pred_fallthru
        _
    $region64: #{basic_block_forward.4} parent=5 // pred_fallthru
      _
  $region6: #{basic_block_forward.4} parent=0 // loop_footer
    %s18 = sadd.s32 1, %s14
  $region7: #{basic_block_forward.4} parent=0 // loop_footer_branch
    %13 = sbr.rel target = $region3
  $region8: #{basic_block_forward.4} parent=0 // loop_exit
    _

// kernel: basic_block_forward.5
$region0: #{basic_block_forward.5}
  #allocation0 [shape = 'u32[]', space=smem, size = 0x4, offset = 0x4, fixed_abs, tag = 'smem constant byte address 0x4 - core index']
  #allocation1 [shape = 'u32[144,128]{1,0:T(1,128)}', space=vmem, size = 0x12000, scoped, tag = 'internal scratch']
  #allocation2 [shape = 'f32[10,10,128]{2,1,0:T(8,128)}', space=vmem, size = 0x14000, scoped, tag = 'scratch operand']
  #allocation3 [shape = 'f32[64,128]{1,0:T(8,128)}', space=vmem, size = 0x8000, scoped, tag = 'scratch operand']
  %s0 = inlined_call_operand.vmem [shape: f32[2,8,8,128], index: 0, kind: input, shape index: {}]
  %s1 = inlined_call_operand.vmem [shape: f32[1,128], index: 1, kind: input, shape index: {}]
  %s2 = inlined_call_operand.vmem [shape: f32[1,128], index: 2, kind: input, shape index: {}]
  %s3 = inlined_call_operand.vmem [shape: bf16[9,128,128], index: 3, kind: input, shape index: {}]
  %s4 = inlined_call_operand.vmem [shape: f32[2,8,8,128], index: 4, kind: input, shape index: {}]
  %s5 = inlined_call_operand.vmem [shape: f32[2,8,8,128], index: 5, kind: output, shape index: {}]
  %s6 = sld [smem:[#allocation0]]
  $region53: #{basic_block_forward.5} parent=0
    _
  %s8 = ssub.s32 1, %s6
  %s9 = scalar_select 0, %s8, %s6
  loop: start=0, step=1, limit=4
  $region2: #{basic_block_forward.5} parent=0 // loop_pre_header
    _
  $region3: #{basic_block_forward.5} parent=0 // loop_header
    %s11 = sphi 0, %s15
    %p12 = scmp.ge.s32.totalorder %s11, 4
    %s21 = sphi 0, %s23
    %s24 = sphi 0, %s21
    %s25 = sphi 0, %s24
    %s41 = sphi 0, %s25
    %s45 = sphi 0, %s45
    %s47 = sphi 0, %s45
    %s48 = sphi 0, %s47
    %s62 = sphi 0, %s48
    %s66 = sphi 0, %s66
    %s68 = sphi 0, %s66
    %s69 = sphi 0, %s68
    %s83 = sphi 0, %s69
    %s87 = sphi 0, %s87
    %s89 = sphi 0, %s87
    %s90 = sphi 0, %s89
    %s104 = sphi 0, %s90
    %s110 = sphi 0, %s112
    %s113 = sphi 0, %s110
    %s114 = sphi 0, %s113
    %s130 = sphi 0, %s114
    %s136 = sphi 0, %s138
    %s139 = sphi 0, %s136
    %s140 = sphi 0, %s139
    %s156 = sphi 0, %s140
  $region4: #{basic_block_forward.5} parent=0 // loop_header_branch
    %14 = sbr.rel (%p12) target = $region8
  $region5: #{basic_block_forward.5} parent=0 // loop_body
    %s16 = ssub.s32 %s11, 1
    %s17 = ssub.s32 %s11, 2
    %s18 = sadd.s32 %s11, 1
    %s19 = ssub.s32 %s11, %s18
    %p20 = scmp.eq.s32.totalorder %s19, 0
    %s22 = sadd.s32 %s21, 1
    %s23 = scalar_select %p20, %s21, %s22
    %p26 = pneg %p20
    %p27 = scmp.eq.s32.totalorder %s11, 1
    %p28 = por %p26, %p27
    %p29 = scmp.ne.s32.totalorder %s21, %s24
    %p30 = scmp.eq.s32.totalorder %s11, 0
    %p31 = por %p29, %p30
    %p32 = scmp.ne.s32.totalorder %s21, %s24
    %p33 = scmp.eq.s32.totalorder %s16, 1
    %p34 = por %p32, %p33
    %p35 = scmp.ne.s32.totalorder %s24, %s25
    %p36 = scmp.eq.s32.totalorder %s16, 0
    %p37 = por %p35, %p36
    %p38 = scmp.ne.s32.totalorder %s24, %s25
    %p39 = scmp.eq.s32.totalorder %s17, 1
    %p40 = por %p38, %p39
    %p42 = scmp.ne.s32.totalorder %s25, %s41
    %p43 = scmp.eq.s32.totalorder %s17, 0
    %p44 = por %p42, %p43
    %s46 = sadd.s32 %s45, 1
    %p49 = scmp.eq.s32.totalorder %s11, 1
    %p50 = scmp.ne.s32.totalorder %s45, %s47
    %p51 = scmp.eq.s32.totalorder %s11, 0
    %p52 = por %p50, %p51
    %p53 = scmp.ne.s32.totalorder %s45, %s47
    %p54 = scmp.eq.s32.totalorder %s16, 1
    %p55 = por %p53, %p54
    %p56 = scmp.ne.s32.totalorder %s47, %s48
    %p57 = scmp.eq.s32.totalorder %s16, 0
    %p58 = por %p56, %p57
    %p59 = scmp.ne.s32.totalorder %s47, %s48
    %p60 = scmp.eq.s32.totalorder %s17, 1
    %p61 = por %p59, %p60
    %p63 = scmp.ne.s32.totalorder %s48, %s62
    %p64 = scmp.eq.s32.totalorder %s17, 0
    %p65 = por %p63, %p64
    %s67 = sadd.s32 %s66, 1
    %p70 = scmp.eq.s32.totalorder %s11, 1
    %p71 = scmp.ne.s32.totalorder %s66, %s68
    %p72 = scmp.eq.s32.totalorder %s11, 0
    %p73 = por %p71, %p72
    %p74 = scmp.ne.s32.totalorder %s66, %s68
    %p75 = scmp.eq.s32.totalorder %s16, 1
    %p76 = por %p74, %p75
    %p77 = scmp.ne.s32.totalorder %s68, %s69
    %p78 = scmp.eq.s32.totalorder %s16, 0
    %p79 = por %p77, %p78
    %p80 = scmp.ne.s32.totalorder %s68, %s69
    %p81 = scmp.eq.s32.totalorder %s17, 1
    %p82 = por %p80, %p81
    %p84 = scmp.ne.s32.totalorder %s69, %s83
    %p85 = scmp.eq.s32.totalorder %s17, 0
    %p86 = por %p84, %p85
    %s88 = sadd.s32 %s87, 1
    %p91 = scmp.eq.s32.totalorder %s11, 1
    %p92 = scmp.ne.s32.totalorder %s87, %s89
    %p93 = scmp.eq.s32.totalorder %s11, 0
    %p94 = por %p92, %p93
    %p95 = scmp.ne.s32.totalorder %s87, %s89
    %p96 = scmp.eq.s32.totalorder %s16, 1
    %p97 = por %p95, %p96
    %p98 = scmp.ne.s32.totalorder %s89, %s90
    %p99 = scmp.eq.s32.totalorder %s16, 0
    %p100 = por %p98, %p99
    %p101 = scmp.ne.s32.totalorder %s89, %s90
    %p102 = scmp.eq.s32.totalorder %s17, 1
    %p103 = por %p101, %p102
    %p105 = scmp.ne.s32.totalorder %s90, %s104
    %p106 = scmp.eq.s32.totalorder %s17, 0
    %p107 = por %p105, %p106
    %s108 = ssub.s32 %s11, %s18
    %p109 = scmp.eq.s32.totalorder %s108, 0
    %s111 = sadd.s32 %s110, 1
    %s112 = scalar_select %p109, %s110, %s111
    %p115 = pneg %p109
    %p116 = scmp.eq.s32.totalorder %s11, 1
    %p117 = por %p115, %p116
    %p118 = scmp.ne.s32.totalorder %s110, %s113
    %p119 = scmp.eq.s32.totalorder %s11, 0
    %p120 = por %p118, %p119
    %p121 = scmp.ne.s32.totalorder %s110, %s113
    %p122 = scmp.eq.s32.totalorder %s16, 1
    %p123 = por %p121, %p122
    %p124 = scmp.ne.s32.totalorder %s113, %s114
    %p125 = scmp.eq.s32.totalorder %s16, 0
    %p126 = por %p124, %p125
    %p127 = scmp.ne.s32.totalorder %s113, %s114
    %p128 = scmp.eq.s32.totalorder %s17, 1
    %p129 = por %p127, %p128
    %p131 = scmp.ne.s32.totalorder %s114, %s130
    %p132 = scmp.eq.s32.totalorder %s17, 0
    %p133 = por %p131, %p132
    %s134 = ssub.s32 %s11, %s18
    %p135 = scmp.eq.s32.totalorder %s134, 0
    %s137 = sadd.s32 %s136, 1
    %s138 = scalar_select %p135, %s136, %s137
    %p141 = pneg %p135
    %p142 = scmp.eq.s32.totalorder %s11, 1
    %p143 = por %p141, %p142
    %p144 = scmp.ne.s32.totalorder %s136, %s139
    %p145 = scmp.eq.s32.totalorder %s11, 0
    %p146 = por %p144, %p145
    %p147 = scmp.ne.s32.totalorder %s136, %s139
    %p148 = scmp.eq.s32.totalorder %s16, 1
    %p149 = por %p147, %p148
    %p150 = scmp.ne.s32.totalorder %s139, %s140
    %p151 = scmp.eq.s32.totalorder %s16, 0
    %p152 = por %p150, %p151
    %p153 = scmp.ne.s32.totalorder %s139, %s140
    %p154 = scmp.eq.s32.totalorder %s17, 1
    %p155 = por %p153, %p154
    %p157 = scmp.ne.s32.totalorder %s140, %s156
    %p158 = scmp.eq.s32.totalorder %s17, 0
    %p159 = por %p157, %p158
    %p160 = scmp.le.s32.totalorder 1, %s11
    %p161 = scmp.lt.s32.totalorder %s11, 3
    %p162 = pnand %p160, %p161
    %p163 = pneg %p162
    // Predicated region
    $region9: #{basic_block_forward.5} parent=5 // pred_check
      _
    $region10: #{basic_block_forward.5} parent=5 // pred_check_branch
      %165 = sbr.rel (%p162) target = $region12
    $region11: #{basic_block_forward.5} parent=5 // pred_region
      %s166 = ssub.s32 %s11, 1
      // Predicated region
      $region13: #{basic_block_forward.5} parent=11 // pred_check
        %p167 = pneg %p58
      $region14: #{basic_block_forward.5} parent=11 // pred_check_branch
        %169 = sbr.rel (%p167) target = $region16
      $region15: #{basic_block_forward.5} parent=11 // pred_region
        _
      $region16: #{basic_block_forward.5} parent=11 // pred_fallthru
        _
      // Predicated region
      $region17: #{basic_block_forward.5} parent=11 // pred_check
        %p170 = pneg %p79
      $region18: #{basic_block_forward.5} parent=11 // pred_check_branch
        %172 = sbr.rel (%p170) target = $region20
      $region19: #{basic_block_forward.5} parent=11 // pred_region
        _
      $region20: #{basic_block_forward.5} parent=11 // pred_fallthru
        _
      // Predicated region
      $region21: #{basic_block_forward.5} parent=11 // pred_check
        %p173 = pneg %p100
      $region22: #{basic_block_forward.5} parent=11 // pred_check_branch
        %175 = sbr.rel (%p173) target = $region24
      $region23: #{basic_block_forward.5} parent=11 // pred_region
        _
      $region24: #{basic_block_forward.5} parent=11 // pred_fallthru
        _
    $region12: #{basic_block_forward.5} parent=5 // pred_fallthru
      _
    %p176 = scmp.lt.s32.totalorder %s11, 2
    // Predicated region
    $region25: #{basic_block_forward.5} parent=5 // pred_check
      %p177 = pneg %p176
    $region26: #{basic_block_forward.5} parent=5 // pred_check_branch
      %179 = sbr.rel (%p177) target = $region28
    $region27: #{basic_block_forward.5} parent=5 // pred_region
      // Predicated region
      $region29: #{basic_block_forward.5} parent=27 // pred_check
        %p180 = pneg %p31
      $region30: #{basic_block_forward.5} parent=27 // pred_check_branch
        %182 = sbr.rel (%p180) target = $region32
      $region31: #{basic_block_forward.5} parent=27 // pred_region
        %p183 = scmp.lt.s32.totalorder %s11, 1
        %s184 = scalar_select %p183, %s11, 1
        %s185 = smul.addr %s184, 8
        %s186 = smul.addr %s185, 8
        %s187 = scalar_lea.vmem %s0, %s186
      $region32: #{basic_block_forward.5} parent=27 // pred_fallthru
        _
      // Predicated region
      $region33: #{basic_block_forward.5} parent=27 // pred_check
        %p188 = pneg %p120
      $region34: #{basic_block_forward.5} parent=27 // pred_check_branch
        %190 = sbr.rel (%p188) target = $region36
      $region35: #{basic_block_forward.5} parent=27 // pred_region
        %p191 = scmp.lt.s32.totalorder %s11, 1
        %s192 = scalar_select %p191, %s11, 1
        %s193 = smul.addr %s192, 8
        %s194 = smul.addr %s193, 8
        %s195 = scalar_lea.vmem %s4, %s194
      $region36: #{basic_block_forward.5} parent=27 // pred_fallthru
        _
    $region28: #{basic_block_forward.5} parent=5 // pred_fallthru
      _
    %p196 = scmp.le.s32.totalorder 1, %s11
    %p197 = scmp.lt.s32.totalorder %s11, 3
    %p198 = pnand %p196, %p197
    %p199 = pneg %p198
    // Predicated region
    $region37: #{basic_block_forward.5} parent=5 // pred_check
      _
    $region38: #{basic_block_forward.5} parent=5 // pred_check_branch
      %201 = sbr.rel (%p198) target = $region40
    $region39: #{basic_block_forward.5} parent=5 // pred_region
      %s202 = ssub.s32 %s11, 1
      %p203 = scmp.lt.s32.totalorder %s16, 1
      %s204 = scalar_select %p203, %s16, 1
      %s205 = smul.addr %s204, 8
      %s206 = smul.addr %s205, 8
      %s207 = scalar_lea.vmem %s0, %s206
      %p208 = pneg %p37
      %p209 = pneg %p34
      %p210 = pneg %p58
      %p211 = pneg %p55
      %p212 = pneg %p79
      %p213 = pneg %p76
      %p214 = pneg %p100
      %p215 = pneg %p97
      %p216 = scmp.lt.s32.totalorder %s16, 1
      %s217 = scalar_select %p216, %s16, 1
      %s218 = smul.addr %s217, 8
      %s219 = smul.addr %s218, 8
      %s220 = scalar_lea.vmem %s4, %s219
      %p221 = pneg %p126
      %p222 = pneg %p123
      %p223 = pneg %p152
      %p224 = pneg %p149
      %p225 = scmp.lt.s32.totalorder %s16, 1
      %s226 = scalar_select %p225, %s16, 1
      %s227 = smul.addr %s226, 8
      %s228 = smul.addr %s227, 8
      %s229 = scalar_lea.vmem %s5, %s228
      %p230 = scmp.lt.s32.totalorder %s16, 1
      %s231 = scalar_select %p230, %s16, 1
      %s232 = smul.addr %s231, 8
      %s233 = smul.addr %s232, 8
      %s234 = scalar_lea.vmem %s0, %s233
      %p235 = scmp.lt.s32.totalorder %s16, 1
      %s236 = scalar_select %p235, %s16, 1
      %s237 = smul.addr %s236, 8
      %s238 = smul.addr %s237, 8
      %s239 = scalar_lea.vmem %s4, %s238
      %p240 = scmp.lt.s32.totalorder %s16, 1
      %s241 = scalar_select %p240, %s16, 1
      %s242 = smul.addr %s241, 8
      %s243 = smul.addr %s242, 8
      %s244 = scalar_lea.vmem %s5, %s243
      %246 = vst [vmem:[#allocation2] sm:$0xff] 0.0
      %247 = vst [vmem:[#allocation2 + $0x8] sm:$0x3] 0.0
      %248 = vst [vmem:[#allocation2 + $0x10] sm:$0xff] 0.0
      %249 = vst [vmem:[#allocation2 + $0x18] sm:$0x3] 0.0
      %250 = vst [vmem:[#allocation2 + $0x20] sm:$0xff] 0.0
      %251 = vst [vmem:[#allocation2 + $0x28] sm:$0x3] 0.0
      %252 = vst [vmem:[#allocation2 + $0x30] sm:$0xff] 0.0
      %253 = vst [vmem:[#allocation2 + $0x38] sm:$0x3] 0.0
      %254 = vst [vmem:[#allocation2 + $0x40] sm:$0xff] 0.0
      %255 = vst [vmem:[#allocation2 + $0x48] sm:$0x3] 0.0
      %256 = vst [vmem:[#allocation2 + $0x50] sm:$0xff] 0.0
      %257 = vst [vmem:[#allocation2 + $0x58] sm:$0x3] 0.0
      %258 = vst [vmem:[#allocation2 + $0x60] sm:$0xff] 0.0
      %259 = vst [vmem:[#allocation2 + $0x68] sm:$0x3] 0.0
      %260 = vst [vmem:[#allocation2 + $0x70] sm:$0xff] 0.0
      %261 = vst [vmem:[#allocation2 + $0x78] sm:$0x3] 0.0
      %262 = vst [vmem:[#allocation2 + $0x80] sm:$0xff] 0.0
      %263 = vst [vmem:[#allocation2 + $0x88] sm:$0x3] 0.0
      %264 = vst [vmem:[#allocation2 + $0x90] sm:$0xff] 0.0
      %265 = vst [vmem:[#allocation2 + $0x98] sm:$0x3] 0.0
      %v266 = vld [vmem:[%s234] sm:$0xff]
      %v267 = vld [vmem:[%s234 + $0x8] sm:$0xff]
      %v268 = vld [vmem:[%s234 + $0x10] sm:$0xff]
      %v269 = vld [vmem:[%s234 + $0x18] sm:$0xff]
      %v270 = vld [vmem:[%s234 + $0x20] sm:$0xff]
      %v271 = vld [vmem:[%s234 + $0x28] sm:$0xff]
      %v272 = vld [vmem:[%s234 + $0x30] sm:$0xff]
      %v273 = vld [vmem:[%s234 + $0x38] sm:$0xff]
      %v274 = vld [vmem:[%s1] sm:$0x1]
      %v276 = vlaneseq
      %v277 = vshrl.u32 %v276, 7
      %v278 = vsub.s32 0, %v277
      %v279 = vrot.slane %v274, %v278
      %v281 = vmul.f32 %v266, %v279
      %v282 = vmul.f32 %v267, %v279
      %v283 = vmul.f32 %v268, %v279
      %v284 = vmul.f32 %v269, %v279
      %v285 = vmul.f32 %v270, %v279
      %v286 = vmul.f32 %v271, %v279
      %v287 = vmul.f32 %v272, %v279
      %v288 = vmul.f32 %v273, %v279
      %v289 = vld [vmem:[%s2] sm:$0x1]
      %v291 = vlaneseq
      %v292 = vshrl.u32 %v291, 7
      %v293 = vsub.s32 0, %v292
      %v294 = vrot.slane %v289, %v293
      %v296 = vadd.f32 %v281, %v294
      %v297 = vadd.f32 %v282, %v294
      %v298 = vadd.f32 %v283, %v294
      %v299 = vadd.f32 %v284, %v294
      %v300 = vadd.f32 %v285, %v294
      %v301 = vadd.f32 %v286, %v294
      %v302 = vadd.f32 %v287, %v294
      %v303 = vadd.f32 %v288, %v294
      %v304 = vmax.f32 %v296, 0.0
      %v305 = vmax.f32 %v297, 0.0
      %v306 = vmax.f32 %v298, 0.0
      %v307 = vmax.f32 %v299, 0.0
      %v308 = vmax.f32 %v300, 0.0
      %v309 = vmax.f32 %v301, 0.0
      %v310 = vmax.f32 %v302, 0.0
      %v311 = vmax.f32 %v303, 0.0
      %s312 = scalar_lea.vmem [#allocation2], 16
      %313 = vst [vmem:[%s312 + $0x1] sm:$0xff] %v304
      %314 = vst [vmem:[%s312 + $0x11] sm:$0xff] %v305
      %315 = vst [vmem:[%s312 + $0x21] sm:$0xff] %v306
      %316 = vst [vmem:[%s312 + $0x31] sm:$0xff] %v307
      %317 = vst [vmem:[%s312 + $0x41] sm:$0xff] %v308
      %318 = vst [vmem:[%s312 + $0x51] sm:$0xff] %v309
      %319 = vst [vmem:[%s312 + $0x61] sm:$0xff] %v310
      %320 = vst [vmem:[%s312 + $0x71] sm:$0xff] %v311
      %v321 = vld [vmem:[#allocation2] sm:$0xff]
      %v322 = vld [vmem:[#allocation2 + $0x10] sm:$0xff]
      %v323 = vld [vmem:[#allocation2 + $0x20] sm:$0xff]
      %v324 = vld [vmem:[#allocation2 + $0x30] sm:$0xff]
      %v325 = vld [vmem:[#allocation2 + $0x40] sm:$0xff]
      %v326 = vld [vmem:[#allocation2 + $0x50] sm:$0xff]
      %v327 = vld [vmem:[#allocation2 + $0x60] sm:$0xff]
      %v328 = vld [vmem:[#allocation2 + $0x70] sm:$0xff]
      %v329 = vpack.c.bf16 %v322, %v321
      %v330 = vpack.c.bf16 %v324, %v323
      %v331 = vpack.c.bf16 %v326, %v325
      %v332 = vpack.c.bf16 %v328, %v327
      %v333 = vld [vmem:[%s3] sm:$0xf]
      %v334 = vld [vmem:[%s3 + $0x4] sm:$0xf]
      %v335 = vld [vmem:[%s3 + $0x8] sm:$0xf]
      %v336 = vld [vmem:[%s3 + $0xc] sm:$0xf]
      %v337 = vld [vmem:[%s3 + $0x10] sm:$0xf]
      %v338 = vld [vmem:[%s3 + $0x14] sm:$0xf]
      %v339 = vld [vmem:[%s3 + $0x18] sm:$0xf]
      %v340 = vld [vmem:[%s3 + $0x1c] sm:$0xf]
      %v341 = vld [vmem:[%s3 + $0x20] sm:$0xf]
      %v342 = vld [vmem:[%s3 + $0x24] sm:$0xf]
      %v343 = vld [vmem:[%s3 + $0x28] sm:$0xf]
      %v344 = vld [vmem:[%s3 + $0x2c] sm:$0xf]
      %v345 = vld [vmem:[%s3 + $0x30] sm:$0xf]
      %v346 = vld [vmem:[%s3 + $0x34] sm:$0xf]
      %v347 = vld [vmem:[%s3 + $0x38] sm:$0xf]
      %v348 = vld [vmem:[%s3 + $0x3c] sm:$0xf]
      %v365 = vunpack.c.l.b16 %v333
      %v366 = vunpack.c.l.b16 %v334
      %v367 = vunpack.c.l.b16 %v335
      %v368 = vunpack.c.l.b16 %v336
      %v369 = vunpack.c.l.b16 %v337
      %v370 = vunpack.c.l.b16 %v338
      %v371 = vunpack.c.l.b16 %v339
      %v372 = vunpack.c.l.b16 %v340
      %v373 = vunpack.c.l.b16 %v341
      %v374 = vunpack.c.l.b16 %v342
      %v375 = vunpack.c.l.b16 %v343
      %v376 = vunpack.c.l.b16 %v344
      %v377 = vunpack.c.l.b16 %v345
      %v378 = vunpack.c.l.b16 %v346
      %v379 = vunpack.c.l.b16 %v347
      %v380 = vunpack.c.l.b16 %v348
      %v381 = vpack.c.b16 %v366, %v365
      %v382 = vpack.c.b16 %v368, %v367
      %v383 = vpack.c.b16 %v370, %v369
      %v384 = vpack.c.b16 %v372, %v371
      %v385 = vpack.c.b16 %v374, %v373
      %v386 = vpack.c.b16 %v376, %v375
      %v387 = vpack.c.b16 %v378, %v377
      %v388 = vpack.c.b16 %v380, %v379
      %397 = vmatprep.subr.bf16.mxu0 0
      %398 = vmatpush1.bf16.msra.mxu0 %v388
      %399 = vmatprep.subr.bf16.mxu0 0
      %400 = vmatpush1.bf16.msra.mxu0 %v387
      %401 = vmatprep.subr.bf16.mxu0 0
      %402 = vmatpush1.bf16.msra.mxu0 %v386
      %403 = vmatprep.subr.bf16.mxu0 0
      %404 = vmatpush1.bf16.msra.mxu0 %v385
      %405 = vmatprep.subr.bf16.mxu0 0
      %406 = vmatpush1.bf16.msra.mxu0 %v384
      %407 = vmatprep.subr.bf16.mxu0 0
      %408 = vmatpush1.bf16.msra.mxu0 %v383
      %409 = vmatprep.subr.bf16.mxu0 0
      %410 = vmatpush1.bf16.msra.mxu0 %v382
      %411 = vmatprep.subr.bf16.mxu0 0
      %412 = vmatpush1.bf16.msra.mxu0 %v381
      %413 = vmatprep.subr.bf16.mxu0 0
      %414 = vmatpush2.bf16.msra.mxu0 0
      %415 = vmatprep.subr.bf16.mxu0 0
      %416 = vmatpush2.bf16.msra.mxu0 0
      %417 = vmatprep.subr.bf16.mxu0 0
      %418 = vmatpush2.bf16.msra.mxu0 0
      %419 = vmatprep.subr.bf16.mxu0 0
      %420 = vmatpush2.bf16.msra.mxu0 0
      %421 = vmatprep.subr.bf16.mxu0 0
      %422 = vmatpush2.bf16.msra.mxu0 0
      %423 = vmatprep.subr.bf16.mxu0 0
      %424 = vmatpush2.bf16.msra.mxu0 0
      %425 = vmatprep.subr.bf16.mxu0 0
      %426 = vmatpush2.bf16.msra.mxu0 0
      %427 = vmatprep.subr.bf16.mxu0 0
      %428 = vmatpush2.bf16.msra.mxu0 0
      %429 = vmatprep.mubr.bf16.mxu0 0
      %430 = vmatmul.mubr.bf16.gmra.mxu0 %v329
      %v431 = vpop.f32.mrf.mxu0
      %v432 = vadd.f32 0.0, %v431
      %v433 = vpop.f32.mrf.mxu0
      %v434 = vpop.f32.mrf.mxu0
      %v435 = vadd.f32 0.0, %v434
      %v436 = vpop.f32.mrf.mxu0
      %437 = vmatprep.mubr.bf16.mxu0 0
      %438 = vmatmul.mubr.bf16.gmra.mxu0 %v330
      %v439 = vpop.f32.mrf.mxu0
      %v440 = vadd.f32 0.0, %v439
      %v441 = vpop.f32.mrf.mxu0
      %v442 = vpop.f32.mrf.mxu0
      %v443 = vadd.f32 0.0, %v442
      %v444 = vpop.f32.mrf.mxu0
      %445 = vmatprep.mubr.bf16.mxu0 0
      %446 = vmatmul.mubr.bf16.gmra.mxu0 %v331
      %v447 = vpop.f32.mrf.mxu0
      %v448 = vadd.f32 0.0, %v447
      %v449 = vpop.f32.mrf.mxu0
      %v450 = vpop.f32.mrf.mxu0
      %v451 = vadd.f32 0.0, %v450
      %v452 = vpop.f32.mrf.mxu0
      %453 = vmatprep.mubr.bf16.mxu0 0
      %454 = vmatmul.mubr.bf16.gmra.mxu0 %v332
      %v455 = vpop.f32.mrf.mxu0
      %v456 = vadd.f32 0.0, %v455
      %v457 = vpop.f32.mrf.mxu0
      %v458 = vpop.f32.mrf.mxu0
      %v459 = vadd.f32 0.0, %v458
      %v460 = vpop.f32.mrf.mxu0
      %461 = vdwg.mxu0
      %462 = vst [vmem:[#allocation3] sm:$0xff] %v432
      %463 = vst [vmem:[#allocation3 + $0x8] sm:$0xff] %v435
      %464 = vst [vmem:[#allocation3 + $0x10] sm:$0xff] %v440
      %465 = vst [vmem:[#allocation3 + $0x18] sm:$0xff] %v443
      %466 = vst [vmem:[#allocation3 + $0x20] sm:$0xff] %v448
      %467 = vst [vmem:[#allocation3 + $0x28] sm:$0xff] %v451
      %468 = vst [vmem:[#allocation3 + $0x30] sm:$0xff] %v456
      %469 = vst [vmem:[#allocation3 + $0x38] sm:$0xff] %v459
      %v470 = vld [vmem:[#allocation2 + $0x1] sm:$0xff]
      %v471 = vld [vmem:[#allocation2 + $0x11] sm:$0xff]
      %v472 = vld [vmem:[#allocation2 + $0x21] sm:$0xff]
      %v473 = vld [vmem:[#allocation2 + $0x31] sm:$0xff]
      %v474 = vld [vmem:[#allocation2 + $0x41] sm:$0xff]
      %v475 = vld [vmem:[#allocation2 + $0x51] sm:$0xff]
      %v476 = vld [vmem:[#allocation2 + $0x61] sm:$0xff]
      %v477 = vld [vmem:[#allocation2 + $0x71] sm:$0xff]
      %v478 = vpack.c.bf16 %v471, %v470
      %v479 = vpack.c.bf16 %v473, %v472
      %v480 = vpack.c.bf16 %v475, %v474
      %v481 = vpack.c.bf16 %v477, %v476
      %s482 = scalar_lea.vmem %s3, 64
      %v483 = vld [vmem:[%s482] sm:$0xf]
      %v484 = vld [vmem:[%s482 + $0x4] sm:$0xf]
      %v485 = vld [vmem:[%s482 + $0x8] sm:$0xf]
      %v486 = vld [vmem:[%s482 + $0xc] sm:$0xf]
      %v487 = vld [vmem:[%s482 + $0x10] sm:$0xf]
      %v488 = vld [vmem:[%s482 + $0x14] sm:$0xf]
      %v489 = vld [vmem:[%s482 + $0x18] sm:$0xf]
      %v490 = vld [vmem:[%s482 + $0x1c] sm:$0xf]
      %v491 = vld [vmem:[%s482 + $0x20] sm:$0xf]
      %v492 = vld [vmem:[%s482 + $0x24] sm:$0xf]
      %v493 = vld [vmem:[%s482 + $0x28] sm:$0xf]
      %v494 = vld [vmem:[%s482 + $0x2c] sm:$0xf]
      %v495 = vld [vmem:[%s482 + $0x30] sm:$0xf]
      %v496 = vld [vmem:[%s482 + $0x34] sm:$0xf]
      %v497 = vld [vmem:[%s482 + $0x38] sm:$0xf]
      %v498 = vld [vmem:[%s482 + $0x3c] sm:$0xf]
      %v515 = vunpack.c.l.b16 %v483
      %v516 = vunpack.c.l.b16 %v484
      %v517 = vunpack.c.l.b16 %v485
      %v518 = vunpack.c.l.b16 %v486
      %v519 = vunpack.c.l.b16 %v487
      %v520 = vunpack.c.l.b16 %v488
      %v521 = vunpack.c.l.b16 %v489
      %v522 = vunpack.c.l.b16 %v490
      %v523 = vunpack.c.l.b16 %v491
      %v524 = vunpack.c.l.b16 %v492
      %v525 = vunpack.c.l.b16 %v493
      %v526 = vunpack.c.l.b16 %v494
      %v527 = vunpack.c.l.b16 %v495
      %v528 = vunpack.c.l.b16 %v496
      %v529 = vunpack.c.l.b16 %v497
      %v530 = vunpack.c.l.b16 %v498
      %v531 = vpack.c.b16 %v516, %v515
      %v532 = vpack.c.b16 %v518, %v517
      %v533 = vpack.c.b16 %v520, %v519
      %v534 = vpack.c.b16 %v522, %v521
      %v535 = vpack.c.b16 %v524, %v523
      %v536 = vpack.c.b16 %v526, %v525
      %v537 = vpack.c.b16 %v528, %v527
      %v538 = vpack.c.b16 %v530, %v529
      %547 = vmatprep.subr.bf16.mxu0 0
      %548 = vmatpush1.bf16.msra.mxu0 %v538
      %549 = vmatprep.subr.bf16.mxu0 0
      %550 = vmatpush1.bf16.msra.mxu0 %v537
      %551 = vmatprep.subr.bf16.mxu0 0
      %552 = vmatpush1.bf16.msra.mxu0 %v536
      %553 = vmatprep.subr.bf16.mxu0 0
      %554 = vmatpush1.bf16.msra.mxu0 %v535
      %555 = vmatprep.subr.bf16.mxu0 0
      %556 = vmatpush1.bf16.msra.mxu0 %v534
      %557 = vmatprep.subr.bf16.mxu0 0
      %558 = vmatpush1.bf16.msra.mxu0 %v533
      %559 = vmatprep.subr.bf16.mxu0 0
      %560 = vmatpush1.bf16.msra.mxu0 %v532
      %561 = vmatprep.subr.bf16.mxu0 0
      %562 = vmatpush1.bf16.msra.mxu0 %v531
      %563 = vmatprep.subr.bf16.mxu0 0
      %564 = vmatpush2.bf16.msra.mxu0 0
      %565 = vmatprep.subr.bf16.mxu0 0
      %566 = vmatpush2.bf16.msra.mxu0 0
      %567 = vmatprep.subr.bf16.mxu0 0
      %568 = vmatpush2.bf16.msra.mxu0 0
      %569 = vmatprep.subr.bf16.mxu0 0
      %570 = vmatpush2.bf16.msra.mxu0 0
      %571 = vmatprep.subr.bf16.mxu0 0
      %572 = vmatpush2.bf16.msra.mxu0 0
      %573 = vmatprep.subr.bf16.mxu0 0
      %574 = vmatpush2.bf16.msra.mxu0 0
      %575 = vmatprep.subr.bf16.mxu0 0
      %576 = vmatpush2.bf16.msra.mxu0 0
      %577 = vmatprep.subr.bf16.mxu0 0
      %578 = vmatpush2.bf16.msra.mxu0 0
      %579 = vmatprep.mubr.bf16.mxu0 0
      %580 = vmatmul.mubr.bf16.gmra.mxu0 %v478
      %v581 = vpop.f32.mrf.mxu0
      %v582 = vadd.f32 0.0, %v581
      %v583 = vpop.f32.mrf.mxu0
      %v584 = vpop.f32.mrf.mxu0
      %v585 = vadd.f32 0.0, %v584
      %v586 = vpop.f32.mrf.mxu0
      %587 = vmatprep.mubr.bf16.mxu0 0
      %588 = vmatmul.mubr.bf16.gmra.mxu0 %v479
      %v589 = vpop.f32.mrf.mxu0
      %v590 = vadd.f32 0.0, %v589
      %v591 = vpop.f32.mrf.mxu0
      %v592 = vpop.f32.mrf.mxu0
      %v593 = vadd.f32 0.0, %v592
      %v594 = vpop.f32.mrf.mxu0
      %595 = vmatprep.mubr.bf16.mxu0 0
      %596 = vmatmul.mubr.bf16.gmra.mxu0 %v480
      %v597 = vpop.f32.mrf.mxu0
      %v598 = vadd.f32 0.0, %v597
      %v599 = vpop.f32.mrf.mxu0
      %v600 = vpop.f32.mrf.mxu0
      %v601 = vadd.f32 0.0, %v600
      %v602 = vpop.f32.mrf.mxu0
      %603 = vmatprep.mubr.bf16.mxu0 0
      %604 = vmatmul.mubr.bf16.gmra.mxu0 %v481
      %v605 = vpop.f32.mrf.mxu0
      %v606 = vadd.f32 0.0, %v605
      %v607 = vpop.f32.mrf.mxu0
      %v608 = vpop.f32.mrf.mxu0
      %v609 = vadd.f32 0.0, %v608
      %v610 = vpop.f32.mrf.mxu0
      %611 = vdwg.mxu0
      %v612 = vld [vmem:[#allocation3] sm:$0xff]
      %v613 = vld [vmem:[#allocation3 + $0x8] sm:$0xff]
      %v614 = vld [vmem:[#allocation3 + $0x10] sm:$0xff]
      %v615 = vld [vmem:[#allocation3 + $0x18] sm:$0xff]
      %v616 = vld [vmem:[#allocation3 + $0x20] sm:$0xff]
      %v617 = vld [vmem:[#allocation3 + $0x28] sm:$0xff]
      %v618 = vld [vmem:[#allocation3 + $0x30] sm:$0xff]
      %v619 = vld [vmem:[#allocation3 + $0x38] sm:$0xff]
      %v620 = vadd.f32 %v612, %v582
      %v621 = vadd.f32 %v613, %v585
      %v622 = vadd.f32 %v614, %v590
      %v623 = vadd.f32 %v615, %v593
      %v624 = vadd.f32 %v616, %v598
      %v625 = vadd.f32 %v617, %v601
      %v626 = vadd.f32 %v618, %v606
      %v627 = vadd.f32 %v619, %v609
      %628 = vst [vmem:[#allocation3] sm:$0xff] %v620
      %629 = vst [vmem:[#allocation3 + $0x8] sm:$0xff] %v621
      %630 = vst [vmem:[#allocation3 + $0x10] sm:$0xff] %v622
      %631 = vst [vmem:[#allocation3 + $0x18] sm:$0xff] %v623
      %632 = vst [vmem:[#allocation3 + $0x20] sm:$0xff] %v624
      %633 = vst [vmem:[#allocation3 + $0x28] sm:$0xff] %v625
      %634 = vst [vmem:[#allocation3 + $0x30] sm:$0xff] %v626
      %635 = vst [vmem:[#allocation3 + $0x38] sm:$0xff] %v627
      %v636 = vld [vmem:[#allocation2 + $0x2] sm:$0xff]
      %v637 = vld [vmem:[#allocation2 + $0x12] sm:$0xff]
      %v638 = vld [vmem:[#allocation2 + $0x22] sm:$0xff]
      %v639 = vld [vmem:[#allocation2 + $0x32] sm:$0xff]
      %v640 = vld [vmem:[#allocation2 + $0x42] sm:$0xff]
      %v641 = vld [vmem:[#allocation2 + $0x52] sm:$0xff]
      %v642 = vld [vmem:[#allocation2 + $0x62] sm:$0xff]
      %v643 = vld [vmem:[#allocation2 + $0x72] sm:$0xff]
      %v644 = vpack.c.bf16 %v637, %v636
      %v645 = vpack.c.bf16 %v639, %v638
      %v646 = vpack.c.bf16 %v641, %v640
      %v647 = vpack.c.bf16 %v643, %v642
      %s648 = scalar_lea.vmem %s3, 128
      %v649 = vld [vmem:[%s648] sm:$0xf]
      %v650 = vld [vmem:[%s648 + $0x4] sm:$0xf]
      %v651 = vld [vmem:[%s648 + $0x8] sm:$0xf]
      %v652 = vld [vmem:[%s648 + $0xc] sm:$0xf]
      %v653 = vld [vmem:[%s648 + $0x10] sm:$0xf]
      %v654 = vld [vmem:[%s648 + $0x14] sm:$0xf]
      %v655 = vld [vmem:[%s648 + $0x18] sm:$0xf]
      %v656 = vld [vmem:[%s648 + $0x1c] sm:$0xf]
      %v657 = vld [vmem:[%s648 + $0x20] sm:$0xf]
      %v658 = vld [vmem:[%s648 + $0x24] sm:$0xf]
      %v659 = vld [vmem:[%s648 + $0x28] sm:$0xf]
      %v660 = vld [vmem:[%s648 + $0x2c] sm:$0xf]
      %v661 = vld [vmem:[%s648 + $0x30] sm:$0xf]
      %v662 = vld [vmem:[%s648 + $0x34] sm:$0xf]
      %v663 = vld [vmem:[%s648 + $0x38] sm:$0xf]
      %v664 = vld [vmem:[%s648 + $0x3c] sm:$0xf]
      %v681 = vunpack.c.l.b16 %v649
      %v682 = vunpack.c.l.b16 %v650
      %v683 = vunpack.c.l.b16 %v651
      %v684 = vunpack.c.l.b16 %v652
      %v685 = vunpack.c.l.b16 %v653
      %v686 = vunpack.c.l.b16 %v654
      %v687 = vunpack.c.l.b16 %v655
      %v688 = vunpack.c.l.b16 %v656
      %v689 = vunpack.c.l.b16 %v657
      %v690 = vunpack.c.l.b16 %v658
      %v691 = vunpack.c.l.b16 %v659
      %v692 = vunpack.c.l.b16 %v660
      %v693 = vunpack.c.l.b16 %v661
      %v694 = vunpack.c.l.b16 %v662
      %v695 = vunpack.c.l.b16 %v663
      %v696 = vunpack.c.l.b16 %v664
      %v697 = vpack.c.b16 %v682, %v681
      %v698 = vpack.c.b16 %v684, %v683
      %v699 = vpack.c.b16 %v686, %v685
      %v700 = vpack.c.b16 %v688, %v687
      %v701 = vpack.c.b16 %v690, %v689
      %v702 = vpack.c.b16 %v692, %v691
      %v703 = vpack.c.b16 %v694, %v693
      %v704 = vpack.c.b16 %v696, %v695
      %713 = vmatprep.subr.bf16.mxu0 0
      %714 = vmatpush1.bf16.msra.mxu0 %v704
      %715 = vmatprep.subr.bf16.mxu0 0
      %716 = vmatpush1.bf16.msra.mxu0 %v703
      %717 = vmatprep.subr.bf16.mxu0 0
      %718 = vmatpush1.bf16.msra.mxu0 %v702
      %719 = vmatprep.subr.bf16.mxu0 0
      %720 = vmatpush1.bf16.msra.mxu0 %v701
      %721 = vmatprep.subr.bf16.mxu0 0
      %722 = vmatpush1.bf16.msra.mxu0 %v700
      %723 = vmatprep.subr.bf16.mxu0 0
      %724 = vmatpush1.bf16.msra.mxu0 %v699
      %725 = vmatprep.subr.bf16.mxu0 0
      %726 = vmatpush1.bf16.msra.mxu0 %v698
      %727 = vmatprep.subr.bf16.mxu0 0
      %728 = vmatpush1.bf16.msra.mxu0 %v697
      %729 = vmatprep.subr.bf16.mxu0 0
      %730 = vmatpush2.bf16.msra.mxu0 0
      %731 = vmatprep.subr.bf16.mxu0 0
      %732 = vmatpush2.bf16.msra.mxu0 0
      %733 = vmatprep.subr.bf16.mxu0 0
      %734 = vmatpush2.bf16.msra.mxu0 0
      %735 = vmatprep.subr.bf16.mxu0 0
      %736 = vmatpush2.bf16.msra.mxu0 0
      %737 = vmatprep.subr.bf16.mxu0 0
      %738 = vmatpush2.bf16.msra.mxu0 0
      %739 = vmatprep.subr.bf16.mxu0 0
      %740 = vmatpush2.bf16.msra.mxu0 0
      %741 = vmatprep.subr.bf16.mxu0 0
      %742 = vmatpush2.bf16.msra.mxu0 0
      %743 = vmatprep.subr.bf16.mxu0 0
      %744 = vmatpush2.bf16.msra.mxu0 0
      %745 = vmatprep.mubr.bf16.mxu0 0
      %746 = vmatmul.mubr.bf16.gmra.mxu0 %v644
      %v747 = vpop.f32.mrf.mxu0
      %v748 = vadd.f32 0.0, %v747
      %v749 = vpop.f32.mrf.mxu0
      %v750 = vpop.f32.mrf.mxu0
      %v751 = vadd.f32 0.0, %v750
      %v752 = vpop.f32.mrf.mxu0
      %753 = vmatprep.mubr.bf16.mxu0 0
      %754 = vmatmul.mubr.bf16.gmra.mxu0 %v645
      %v755 = vpop.f32.mrf.mxu0
      %v756 = vadd.f32 0.0, %v755
      %v757 = vpop.f32.mrf.mxu0
      %v758 = vpop.f32.mrf.mxu0
      %v759 = vadd.f32 0.0, %v758
      %v760 = vpop.f32.mrf.mxu0
      %761 = vmatprep.mubr.bf16.mxu0 0
      %762 = vmatmul.mubr.bf16.gmra.mxu0 %v646
      %v763 = vpop.f32.mrf.mxu0
      %v764 = vadd.f32 0.0, %v763
      %v765 = vpop.f32.mrf.mxu0
      %v766 = vpop.f32.mrf.mxu0
      %v767 = vadd.f32 0.0, %v766
      %v768 = vpop.f32.mrf.mxu0
      %769 = vmatprep.mubr.bf16.mxu0 0
      %770 = vmatmul.mubr.bf16.gmra.mxu0 %v647
      %v771 = vpop.f32.mrf.mxu0
      %v772 = vadd.f32 0.0, %v771
      %v773 = vpop.f32.mrf.mxu0
      %v774 = vpop.f32.mrf.mxu0
      %v775 = vadd.f32 0.0, %v774
      %v776 = vpop.f32.mrf.mxu0
      %777 = vdwg.mxu0
      %v778 = vld [vmem:[#allocation3] sm:$0xff]
      %v779 = vld [vmem:[#allocation3 + $0x8] sm:$0xff]
      %v780 = vld [vmem:[#allocation3 + $0x10] sm:$0xff]
      %v781 = vld [vmem:[#allocation3 + $0x18] sm:$0xff]
      %v782 = vld [vmem:[#allocation3 + $0x20] sm:$0xff]
      %v783 = vld [vmem:[#allocation3 + $0x28] sm:$0xff]
      %v784 = vld [vmem:[#allocation3 + $0x30] sm:$0xff]
      %v785 = vld [vmem:[#allocation3 + $0x38] sm:$0xff]
      %v786 = vadd.f32 %v778, %v748
      %v787 = vadd.f32 %v779, %v751
      %v788 = vadd.f32 %v780, %v756
      %v789 = vadd.f32 %v781, %v759
      %v790 = vadd.f32 %v782, %v764
      %v791 = vadd.f32 %v783, %v767
      %v792 = vadd.f32 %v784, %v772
      %v793 = vadd.f32 %v785, %v775
      %794 = vst [vmem:[#allocation3] sm:$0xff] %v786
      %795 = vst [vmem:[#allocation3 + $0x8] sm:$0xff] %v787
      %796 = vst [vmem:[#allocation3 + $0x10] sm:$0xff] %v788
      %797 = vst [vmem:[#allocation3 + $0x18] sm:$0xff] %v789
      %798 = vst [vmem:[#allocation3 + $0x20] sm:$0xff] %v790
      %799 = vst [vmem:[#allocation3 + $0x28] sm:$0xff] %v791
      %800 = vst [vmem:[#allocation3 + $0x30] sm:$0xff] %v792
      %801 = vst [vmem:[#allocation3 + $0x38] sm:$0xff] %v793
      %v802 = vld [vmem:[%s312] sm:$0xff]
      %v803 = vld [vmem:[%s312 + $0x10] sm:$0xff]
      %v804 = vld [vmem:[%s312 + $0x20] sm:$0xff]
      %v805 = vld [vmem:[%s312 + $0x30] sm:$0xff]
      %v806 = vld [vmem:[%s312 + $0x40] sm:$0xff]
      %v807 = vld [vmem:[%s312 + $0x50] sm:$0xff]
      %v808 = vld [vmem:[%s312 + $0x60] sm:$0xff]
      %v809 = vld [vmem:[%s312 + $0x70] sm:$0xff]
      %v810 = vpack.c.bf16 %v803, %v802
      %v811 = vpack.c.bf16 %v805, %v804
      %v812 = vpack.c.bf16 %v807, %v806
      %v813 = vpack.c.bf16 %v809, %v808
      %s814 = scalar_lea.vmem %s3, 192
      %v815 = vld [vmem:[%s814] sm:$0xf]
      %v816 = vld [vmem:[%s814 + $0x4] sm:$0xf]
      %v817 = vld [vmem:[%s814 + $0x8] sm:$0xf]
      %v818 = vld [vmem:[%s814 + $0xc] sm:$0xf]
      %v819 = vld [vmem:[%s814 + $0x10] sm:$0xf]
      %v820 = vld [vmem:[%s814 + $0x14] sm:$0xf]
      %v821 = vld [vmem:[%s814 + $0x18] sm:$0xf]
      %v822 = vld [vmem:[%s814 + $0x1c] sm:$0xf]
      %v823 = vld [vmem:[%s814 + $0x20] sm:$0xf]
      %v824 = vld [vmem:[%s814 + $0x24] sm:$0xf]
      %v825 = vld [vmem:[%s814 + $0x28] sm:$0xf]
      %v826 = vld [vmem:[%s814 + $0x2c] sm:$0xf]
      %v827 = vld [vmem:[%s814 + $0x30] sm:$0xf]
      %v828 = vld [vmem:[%s814 + $0x34] sm:$0xf]
      %v829 = vld [vmem:[%s814 + $0x38] sm:$0xf]
      %v830 = vld [vmem:[%s814 + $0x3c] sm:$0xf]
      %v847 = vunpack.c.l.b16 %v815
      %v848 = vunpack.c.l.b16 %v816
      %v849 = vunpack.c.l.b16 %v817
      %v850 = vunpack.c.l.b16 %v818
      %v851 = vunpack.c.l.b16 %v819
      %v852 = vunpack.c.l.b16 %v820
      %v853 = vunpack.c.l.b16 %v821
      %v854 = vunpack.c.l.b16 %v822
      %v855 = vunpack.c.l.b16 %v823
      %v856 = vunpack.c.l.b16 %v824
      %v857 = vunpack.c.l.b16 %v825
      %v858 = vunpack.c.l.b16 %v826
      %v859 = vunpack.c.l.b16 %v827
      %v860 = vunpack.c.l.b16 %v828
      %v861 = vunpack.c.l.b16 %v829
      %v862 = vunpack.c.l.b16 %v830
      %v863 = vpack.c.b16 %v848, %v847
      %v864 = vpack.c.b16 %v850, %v849
      %v865 = vpack.c.b16 %v852, %v851
      %v866 = vpack.c.b16 %v854, %v853
      %v867 = vpack.c.b16 %v856, %v855
      %v868 = vpack.c.b16 %v858, %v857
      %v869 = vpack.c.b16 %v860, %v859
      %v870 = vpack.c.b16 %v862, %v861
      %879 = vmatprep.subr.bf16.mxu0 0
      %880 = vmatpush1.bf16.msra.mxu0 %v870
      %881 = vmatprep.subr.bf16.mxu0 0
      %882 = vmatpush1.bf16.msra.mxu0 %v869
      %883 = vmatprep.subr.bf16.mxu0 0
      %884 = vmatpush1.bf16.msra.mxu0 %v868
      %885 = vmatprep.subr.bf16.mxu0 0
      %886 = vmatpush1.bf16.msra.mxu0 %v867
      %887 = vmatprep.subr.bf16.mxu0 0
      %888 = vmatpush1.bf16.msra.mxu0 %v866
      %889 = vmatprep.subr.bf16.mxu0 0
      %890 = vmatpush1.bf16.msra.mxu0 %v865
      %891 = vmatprep.subr.bf16.mxu0 0
      %892 = vmatpush1.bf16.msra.mxu0 %v864
      %893 = vmatprep.subr.bf16.mxu0 0
      %894 = vmatpush1.bf16.msra.mxu0 %v863
      %895 = vmatprep.subr.bf16.mxu0 0
      %896 = vmatpush2.bf16.msra.mxu0 0
      %897 = vmatprep.subr.bf16.mxu0 0
      %898 = vmatpush2.bf16.msra.mxu0 0
      %899 = vmatprep.subr.bf16.mxu0 0
      %900 = vmatpush2.bf16.msra.mxu0 0
      %901 = vmatprep.subr.bf16.mxu0 0
      %902 = vmatpush2.bf16.msra.mxu0 0
      %903 = vmatprep.subr.bf16.mxu0 0
      %904 = vmatpush2.bf16.msra.mxu0 0
      %905 = vmatprep.subr.bf16.mxu0 0
      %906 = vmatpush2.bf16.msra.mxu0 0
      %907 = vmatprep.subr.bf16.mxu0 0
      %908 = vmatpush2.bf16.msra.mxu0 0
      %909 = vmatprep.subr.bf16.mxu0 0
      %910 = vmatpush2.bf16.msra.mxu0 0
      %911 = vmatprep.mubr.bf16.mxu0 0
      %912 = vmatmul.mubr.bf16.gmra.mxu0 %v810
      %v913 = vpop.f32.mrf.mxu0
      %v914 = vadd.f32 0.0, %v913
      %v915 = vpop.f32.mrf.mxu0
      %v916 = vpop.f32.mrf.mxu0
      %v917 = vadd.f32 0.0, %v916
      %v918 = vpop.f32.mrf.mxu0
      %919 = vmatprep.mubr.bf16.mxu0 0
      %920 = vmatmul.mubr.bf16.gmra.mxu0 %v811
      %v921 = vpop.f32.mrf.mxu0
      %v922 = vadd.f32 0.0, %v921
      %v923 = vpop.f32.mrf.mxu0
      %v924 = vpop.f32.mrf.mxu0
      %v925 = vadd.f32 0.0, %v924
      %v926 = vpop.f32.mrf.mxu0
      %927 = vmatprep.mubr.bf16.mxu0 0
      %928 = vmatmul.mubr.bf16.gmra.mxu0 %v812
      %v929 = vpop.f32.mrf.mxu0
      %v930 = vadd.f32 0.0, %v929
      %v931 = vpop.f32.mrf.mxu0
      %v932 = vpop.f32.mrf.mxu0
      %v933 = vadd.f32 0.0, %v932
      %v934 = vpop.f32.mrf.mxu0
      %935 = vmatprep.mubr.bf16.mxu0 0
      %936 = vmatmul.mubr.bf16.gmra.mxu0 %v813
      %v937 = vpop.f32.mrf.mxu0
      %v938 = vadd.f32 0.0, %v937
      %v939 = vpop.f32.mrf.mxu0
      %v940 = vpop.f32.mrf.mxu0
      %v941 = vadd.f32 0.0, %v940
      %v942 = vpop.f32.mrf.mxu0
      %943 = vdwg.mxu0
      %v944 = vld [vmem:[#allocation3] sm:$0xff]
      %v945 = vld [vmem:[#allocation3 + $0x8] sm:$0xff]
      %v946 = vld [vmem:[#allocation3 + $0x10] sm:$0xff]
      %v947 = vld [vmem:[#allocation3 + $0x18] sm:$0xff]
      %v948 = vld [vmem:[#allocation3 + $0x20] sm:$0xff]
      %v949 = vld [vmem:[#allocation3 + $0x28] sm:$0xff]
      %v950 = vld [vmem:[#allocation3 + $0x30] sm:$0xff]
      %v951 = vld [vmem:[#allocation3 + $0x38] sm:$0xff]
      %v952 = vadd.f32 %v944, %v914
      %v953 = vadd.f32 %v945, %v917
      %v954 = vadd.f32 %v946, %v922
      %v955 = vadd.f32 %v947, %v925
      %v956 = vadd.f32 %v948, %v930
      %v957 = vadd.f32 %v949, %v933
      %v958 = vadd.f32 %v950, %v938
      %v959 = vadd.f32 %v951, %v941
      %960 = vst [vmem:[#allocation3] sm:$0xff] %v952
      %961 = vst [vmem:[#allocation3 + $0x8] sm:$0xff] %v953
      %962 = vst [vmem:[#allocation3 + $0x10] sm:$0xff] %v954
      %963 = vst [vmem:[#allocation3 + $0x18] sm:$0xff] %v955
      %964 = vst [vmem:[#allocation3 + $0x20] sm:$0xff] %v956
      %965 = vst [vmem:[#allocation3 + $0x28] sm:$0xff] %v957
      %966 = vst [vmem:[#allocation3 + $0x30] sm:$0xff] %v958
      %967 = vst [vmem:[#allocation3 + $0x38] sm:$0xff] %v959
      %v968 = vld [vmem:[%s312 + $0x1] sm:$0xff]
      %v969 = vld [vmem:[%s312 + $0x11] sm:$0xff]
      %v970 = vld [vmem:[%s312 + $0x21] sm:$0xff]
      %v971 = vld [vmem:[%s312 + $0x31] sm:$0xff]
      %v972 = vld [vmem:[%s312 + $0x41] sm:$0xff]
      %v973 = vld [vmem:[%s312 + $0x51] sm:$0xff]
      %v974 = vld [vmem:[%s312 + $0x61] sm:$0xff]
      %v975 = vld [vmem:[%s312 + $0x71] sm:$0xff]
      %v976 = vpack.c.bf16 %v969, %v968
      %v977 = vpack.c.bf16 %v971, %v970
      %v978 = vpack.c.bf16 %v973, %v972
      %v979 = vpack.c.bf16 %v975, %v974
      %s980 = scalar_lea.vmem %s3, 256
      %v981 = vld [vmem:[%s980] sm:$0xf]
      %v982 = vld [vmem:[%s980 + $0x4] sm:$0xf]
      %v983 = vld [vmem:[%s980 + $0x8] sm:$0xf]
      %v984 = vld [vmem:[%s980 + $0xc] sm:$0xf]
      %v985 = vld [vmem:[%s980 + $0x10] sm:$0xf]
      %v986 = vld [vmem:[%s980 + $0x14] sm:$0xf]
      %v987 = vld [vmem:[%s980 + $0x18] sm:$0xf]
      %v988 = vld [vmem:[%s980 + $0x1c] sm:$0xf]
      %v989 = vld [vmem:[%s980 + $0x20] sm:$0xf]
      %v990 = vld [vmem:[%s980 + $0x24] sm:$0xf]
      %v991 = vld [vmem:[%s980 + $0x28] sm:$0xf]
      %v992 = vld [vmem:[%s980 + $0x2c] sm:$0xf]
      %v993 = vld [vmem:[%s980 + $0x30] sm:$0xf]
      %v994 = vld [vmem:[%s980 + $0x34] sm:$0xf]
      %v995 = vld [vmem:[%s980 + $0x38] sm:$0xf]
      %v996 = vld [vmem:[%s980 + $0x3c] sm:$0xf]
      %v1013 = vunpack.c.l.b16 %v981
      %v1014 = vunpack.c.l.b16 %v982
      %v1015 = vunpack.c.l.b16 %v983
      %v1016 = vunpack.c.l.b16 %v984
      %v1017 = vunpack.c.l.b16 %v985
      %v1018 = vunpack.c.l.b16 %v986
      %v1019 = vunpack.c.l.b16 %v987
      %v1020 = vunpack.c.l.b16 %v988
      %v1021 = vunpack.c.l.b16 %v989
      %v1022 = vunpack.c.l.b16 %v990
      %v1023 = vunpack.c.l.b16 %v991
      %v1024 = vunpack.c.l.b16 %v992
      %v1025 = vunpack.c.l.b16 %v993
      %v1026 = vunpack.c.l.b16 %v994
      %v1027 = vunpack.c.l.b16 %v995
      %v1028 = vunpack.c.l.b16 %v996
      %v1029 = vpack.c.b16 %v1014, %v1013
      %v1030 = vpack.c.b16 %v1016, %v1015
      %v1031 = vpack.c.b16 %v1018, %v1017
      %v1032 = vpack.c.b16 %v1020, %v1019
      %v1033 = vpack.c.b16 %v1022, %v1021
      %v1034 = vpack.c.b16 %v1024, %v1023
      %v1035 = vpack.c.b16 %v1026, %v1025
      %v1036 = vpack.c.b16 %v1028, %v1027
      %1045 = vmatprep.subr.bf16.mxu0 0
      %1046 = vmatpush1.bf16.msra.mxu0 %v1036
      %1047 = vmatprep.subr.bf16.mxu0 0
      %1048 = vmatpush1.bf16.msra.mxu0 %v1035
      %1049 = vmatprep.subr.bf16.mxu0 0
      %1050 = vmatpush1.bf16.msra.mxu0 %v1034
      %1051 = vmatprep.subr.bf16.mxu0 0
      %1052 = vmatpush1.bf16.msra.mxu0 %v1033
      %1053 = vmatprep.subr.bf16.mxu0 0
      %1054 = vmatpush1.bf16.msra.mxu0 %v1032
      %1055 = vmatprep.subr.bf16.mxu0 0
      %1056 = vmatpush1.bf16.msra.mxu0 %v1031
      %1057 = vmatprep.subr.bf16.mxu0 0
      %1058 = vmatpush1.bf16.msra.mxu0 %v1030
      %1059 = vmatprep.subr.bf16.mxu0 0
      %1060 = vmatpush1.bf16.msra.mxu0 %v1029
      %1061 = vmatprep.subr.bf16.mxu0 0
      %1062 = vmatpush2.bf16.msra.mxu0 0
      %1063 = vmatprep.subr.bf16.mxu0 0
      %1064 = vmatpush2.bf16.msra.mxu0 0
      %1065 = vmatprep.subr.bf16.mxu0 0
      %1066 = vmatpush2.bf16.msra.mxu0 0
      %1067 = vmatprep.subr.bf16.mxu0 0
      %1068 = vmatpush2.bf16.msra.mxu0 0
      %1069 = vmatprep.subr.bf16.mxu0 0
      %1070 = vmatpush2.bf16.msra.mxu0 0
      %1071 = vmatprep.subr.bf16.mxu0 0
      %1072 = vmatpush2.bf16.msra.mxu0 0
      %1073 = vmatprep.subr.bf16.mxu0 0
      %1074 = vmatpush2.bf16.msra.mxu0 0
      %1075 = vmatprep.subr.bf16.mxu0 0
      %1076 = vmatpush2.bf16.msra.mxu0 0
      %1077 = vmatprep.mubr.bf16.mxu0 0
      %1078 = vmatmul.mubr.bf16.gmra.mxu0 %v976
      %v1079 = vpop.f32.mrf.mxu0
      %v1080 = vadd.f32 0.0, %v1079
      %v1081 = vpop.f32.mrf.mxu0
      %v1082 = vpop.f32.mrf.mxu0
      %v1083 = vadd.f32 0.0, %v1082
      %v1084 = vpop.f32.mrf.mxu0
      %1085 = vmatprep.mubr.bf16.mxu0 0
      %1086 = vmatmul.mubr.bf16.gmra.mxu0 %v977
      %v1087 = vpop.f32.mrf.mxu0
      %v1088 = vadd.f32 0.0, %v1087
      %v1089 = vpop.f32.mrf.mxu0
      %v1090 = vpop.f32.mrf.mxu0
      %v1091 = vadd.f32 0.0, %v1090
      %v1092 = vpop.f32.mrf.mxu0
      %1093 = vmatprep.mubr.bf16.mxu0 0
      %1094 = vmatmul.mubr.bf16.gmra.mxu0 %v978
      %v1095 = vpop.f32.mrf.mxu0
      %v1096 = vadd.f32 0.0, %v1095
      %v1097 = vpop.f32.mrf.mxu0
      %v1098 = vpop.f32.mrf.mxu0
      %v1099 = vadd.f32 0.0, %v1098
      %v1100 = vpop.f32.mrf.mxu0
      %1101 = vmatprep.mubr.bf16.mxu0 0
      %1102 = vmatmul.mubr.bf16.gmra.mxu0 %v979
      %v1103 = vpop.f32.mrf.mxu0
      %v1104 = vadd.f32 0.0, %v1103
      %v1105 = vpop.f32.mrf.mxu0
      %v1106 = vpop.f32.mrf.mxu0
      %v1107 = vadd.f32 0.0, %v1106
      %v1108 = vpop.f32.mrf.mxu0
      %1109 = vdwg.mxu0
      %v1110 = vld [vmem:[#allocation3] sm:$0xff]
      %v1111 = vld [vmem:[#allocation3 + $0x8] sm:$0xff]
      %v1112 = vld [vmem:[#allocation3 + $0x10] sm:$0xff]
      %v1113 = vld [vmem:[#allocation3 + $0x18] sm:$0xff]
      %v1114 = vld [vmem:[#allocation3 + $0x20] sm:$0xff]
      %v1115 = vld [vmem:[#allocation3 + $0x28] sm:$0xff]
      %v1116 = vld [vmem:[#allocation3 + $0x30] sm:$0xff]
      %v1117 = vld [vmem:[#allocation3 + $0x38] sm:$0xff]
      %v1118 = vadd.f32 %v1110, %v1080
      %v1119 = vadd.f32 %v1111, %v1083
      %v1120 = vadd.f32 %v1112, %v1088
      %v1121 = vadd.f32 %v1113, %v1091
      %v1122 = vadd.f32 %v1114, %v1096
      %v1123 = vadd.f32 %v1115, %v1099
      %v1124 = vadd.f32 %v1116, %v1104
      %v1125 = vadd.f32 %v1117, %v1107
      %1126 = vst [vmem:[#allocation3] sm:$0xff] %v1118
      %1127 = vst [vmem:[#allocation3 + $0x8] sm:$0xff] %v1119
      %1128 = vst [vmem:[#allocation3 + $0x10] sm:$0xff] %v1120
      %1129 = vst [vmem:[#allocation3 + $0x18] sm:$0xff] %v1121
      %1130 = vst [vmem:[#allocation3 + $0x20] sm:$0xff] %v1122
      %1131 = vst [vmem:[#allocation3 + $0x28] sm:$0xff] %v1123
      %1132 = vst [vmem:[#allocation3 + $0x30] sm:$0xff] %v1124
      %1133 = vst [vmem:[#allocation3 + $0x38] sm:$0xff] %v1125
      %v1134 = vld [vmem:[%s312 + $0x2] sm:$0xff]
      %v1135 = vld [vmem:[%s312 + $0x12] sm:$0xff]
      %v1136 = vld [vmem:[%s312 + $0x22] sm:$0xff]
      %v1137 = vld [vmem:[%s312 + $0x32] sm:$0xff]
      %v1138 = vld [vmem:[%s312 + $0x42] sm:$0xff]
      %v1139 = vld [vmem:[%s312 + $0x52] sm:$0xff]
      %v1140 = vld [vmem:[%s312 + $0x62] sm:$0xff]
      %v1141 = vld [vmem:[%s312 + $0x72] sm:$0xff]
      %v1142 = vpack.c.bf16 %v1135, %v1134
      %v1143 = vpack.c.bf16 %v1137, %v1136
      %v1144 = vpack.c.bf16 %v1139, %v1138
      %v1145 = vpack.c.bf16 %v1141, %v1140
      %s1146 = scalar_lea.vmem %s3, 320
      %v1147 = vld [vmem:[%s1146] sm:$0xf]
      %v1148 = vld [vmem:[%s1146 + $0x4] sm:$0xf]
      %v1149 = vld [vmem:[%s1146 + $0x8] sm:$0xf]
      %v1150 = vld [vmem:[%s1146 + $0xc] sm:$0xf]
      %v1151 = vld [vmem:[%s1146 + $0x10] sm:$0xf]
      %v1152 = vld [vmem:[%s1146 + $0x14] sm:$0xf]
      %v1153 = vld [vmem:[%s1146 + $0x18] sm:$0xf]
      %v1154 = vld [vmem:[%s1146 + $0x1c] sm:$0xf]
      %v1155 = vld [vmem:[%s1146 + $0x20] sm:$0xf]
      %v1156 = vld [vmem:[%s1146 + $0x24] sm:$0xf]
      %v1157 = vld [vmem:[%s1146 + $0x28] sm:$0xf]
      %v1158 = vld [vmem:[%s1146 + $0x2c] sm:$0xf]
      %v1159 = vld [vmem:[%s1146 + $0x30] sm:$0xf]
      %v1160 = vld [vmem:[%s1146 + $0x34] sm:$0xf]
      %v1161 = vld [vmem:[%s1146 + $0x38] sm:$0xf]
      %v1162 = vld [vmem:[%s1146 + $0x3c] sm:$0xf]
      %v1179 = vunpack.c.l.b16 %v1147
      %v1180 = vunpack.c.l.b16 %v1148
      %v1181 = vunpack.c.l.b16 %v1149
      %v1182 = vunpack.c.l.b16 %v1150
      %v1183 = vunpack.c.l.b16 %v1151
      %v1184 = vunpack.c.l.b16 %v1152
      %v1185 = vunpack.c.l.b16 %v1153
      %v1186 = vunpack.c.l.b16 %v1154
      %v1187 = vunpack.c.l.b16 %v1155
      %v1188 = vunpack.c.l.b16 %v1156
      %v1189 = vunpack.c.l.b16 %v1157
      %v1190 = vunpack.c.l.b16 %v1158
      %v1191 = vunpack.c.l.b16 %v1159
      %v1192 = vunpack.c.l.b16 %v1160
      %v1193 = vunpack.c.l.b16 %v1161
      %v1194 = vunpack.c.l.b16 %v1162
      %v1195 = vpack.c.b16 %v1180, %v1179
      %v1196 = vpack.c.b16 %v1182, %v1181
      %v1197 = vpack.c.b16 %v1184, %v1183
      %v1198 = vpack.c.b16 %v1186, %v1185
      %v1199 = vpack.c.b16 %v1188, %v1187
      %v1200 = vpack.c.b16 %v1190, %v1189
      %v1201 = vpack.c.b16 %v1192, %v1191
      %v1202 = vpack.c.b16 %v1194, %v1193
      %1211 = vmatprep.subr.bf16.mxu0 0
      %1212 = vmatpush1.bf16.msra.mxu0 %v1202
      %1213 = vmatprep.subr.bf16.mxu0 0
      %1214 = vmatpush1.bf16.msra.mxu0 %v1201
      %1215 = vmatprep.subr.bf16.mxu0 0
      %1216 = vmatpush1.bf16.msra.mxu0 %v1200
      %1217 = vmatprep.subr.bf16.mxu0 0
      %1218 = vmatpush1.bf16.msra.mxu0 %v1199
      %1219 = vmatprep.subr.bf16.mxu0 0
      %1220 = vmatpush1.bf16.msra.mxu0 %v1198
      %1221 = vmatprep.subr.bf16.mxu0 0
      %1222 = vmatpush1.bf16.msra.mxu0 %v1197
      %1223 = vmatprep.subr.bf16.mxu0 0
      %1224 = vmatpush1.bf16.msra.mxu0 %v1196
      %1225 = vmatprep.subr.bf16.mxu0 0
      %1226 = vmatpush1.bf16.msra.mxu0 %v1195
      %1227 = vmatprep.subr.bf16.mxu0 0
      %1228 = vmatpush2.bf16.msra.mxu0 0
      %1229 = vmatprep.subr.bf16.mxu0 0
      %1230 = vmatpush2.bf16.msra.mxu0 0
      %1231 = vmatprep.subr.bf16.mxu0 0
      %1232 = vmatpush2.bf16.msra.mxu0 0
      %1233 = vmatprep.subr.bf16.mxu0 0
      %1234 = vmatpush2.bf16.msra.mxu0 0
      %1235 = vmatprep.subr.bf16.mxu0 0
      %1236 = vmatpush2.bf16.msra.mxu0 0
      %1237 = vmatprep.subr.bf16.mxu0 0
      %1238 = vmatpush2.bf16.msra.mxu0 0
      %1239 = vmatprep.subr.bf16.mxu0 0
      %1240 = vmatpush2.bf16.msra.mxu0 0
      %1241 = vmatprep.subr.bf16.mxu0 0
      %1242 = vmatpush2.bf16.msra.mxu0 0
      %1243 = vmatprep.mubr.bf16.mxu0 0
      %1244 = vmatmul.mubr.bf16.gmra.mxu0 %v1142
      %v1245 = vpop.f32.mrf.mxu0
      %v1246 = vadd.f32 0.0, %v1245
      %v1247 = vpop.f32.mrf.mxu0
      %v1248 = vpop.f32.mrf.mxu0
      %v1249 = vadd.f32 0.0, %v1248
      %v1250 = vpop.f32.mrf.mxu0
      %1251 = vmatprep.mubr.bf16.mxu0 0
      %1252 = vmatmul.mubr.bf16.gmra.mxu0 %v1143
      %v1253 = vpop.f32.mrf.mxu0
      %v1254 = vadd.f32 0.0, %v1253
      %v1255 = vpop.f32.mrf.mxu0
      %v1256 = vpop.f32.mrf.mxu0
      %v1257 = vadd.f32 0.0, %v1256
      %v1258 = vpop.f32.mrf.mxu0
      %1259 = vmatprep.mubr.bf16.mxu0 0
      %1260 = vmatmul.mubr.bf16.gmra.mxu0 %v1144
      %v1261 = vpop.f32.mrf.mxu0
      %v1262 = vadd.f32 0.0, %v1261
      %v1263 = vpop.f32.mrf.mxu0
      %v1264 = vpop.f32.mrf.mxu0
      %v1265 = vadd.f32 0.0, %v1264
      %v1266 = vpop.f32.mrf.mxu0
      %1267 = vmatprep.mubr.bf16.mxu0 0
      %1268 = vmatmul.mubr.bf16.gmra.mxu0 %v1145
      %v1269 = vpop.f32.mrf.mxu0
      %v1270 = vadd.f32 0.0, %v1269
      %v1271 = vpop.f32.mrf.mxu0
      %v1272 = vpop.f32.mrf.mxu0
      %v1273 = vadd.f32 0.0, %v1272
      %v1274 = vpop.f32.mrf.mxu0
      %1275 = vdwg.mxu0
      %v1276 = vld [vmem:[#allocation3] sm:$0xff]
      %v1277 = vld [vmem:[#allocation3 + $0x8] sm:$0xff]
      %v1278 = vld [vmem:[#allocation3 + $0x10] sm:$0xff]
      %v1279 = vld [vmem:[#allocation3 + $0x18] sm:$0xff]
      %v1280 = vld [vmem:[#allocation3 + $0x20] sm:$0xff]
      %v1281 = vld [vmem:[#allocation3 + $0x28] sm:$0xff]
      %v1282 = vld [vmem:[#allocation3 + $0x30] sm:$0xff]
      %v1283 = vld [vmem:[#allocation3 + $0x38] sm:$0xff]
      %v1284 = vadd.f32 %v1276, %v1246
      %v1285 = vadd.f32 %v1277, %v1249
      %v1286 = vadd.f32 %v1278, %v1254
      %v1287 = vadd.f32 %v1279, %v1257
      %v1288 = vadd.f32 %v1280, %v1262
      %v1289 = vadd.f32 %v1281, %v1265
      %v1290 = vadd.f32 %v1282, %v1270
      %v1291 = vadd.f32 %v1283, %v1273
      %1292 = vst [vmem:[#allocation3] sm:$0xff] %v1284
      %1293 = vst [vmem:[#allocation3 + $0x8] sm:$0xff] %v1285
      %1294 = vst [vmem:[#allocation3 + $0x10] sm:$0xff] %v1286
      %1295 = vst [vmem:[#allocation3 + $0x18] sm:$0xff] %v1287
      %1296 = vst [vmem:[#allocation3 + $0x20] sm:$0xff] %v1288
      %1297 = vst [vmem:[#allocation3 + $0x28] sm:$0xff] %v1289
      %1298 = vst [vmem:[#allocation3 + $0x30] sm:$0xff] %v1290
      %1299 = vst [vmem:[#allocation3 + $0x38] sm:$0xff] %v1291
      %s1300 = scalar_lea.vmem [#allocation2], 32
      %v1301 = vld [vmem:[%s1300] sm:$0xff]
      %v1302 = vld [vmem:[%s1300 + $0x10] sm:$0xff]
      %v1303 = vld [vmem:[%s1300 + $0x20] sm:$0xff]
      %v1304 = vld [vmem:[%s1300 + $0x30] sm:$0xff]
      %v1305 = vld [vmem:[%s1300 + $0x40] sm:$0xff]
      %v1306 = vld [vmem:[%s1300 + $0x50] sm:$0xff]
      %v1307 = vld [vmem:[%s1300 + $0x60] sm:$0xff]
      %v1308 = vld [vmem:[%s1300 + $0x70] sm:$0xff]
      %v1309 = vpack.c.bf16 %v1302, %v1301
      %v1310 = vpack.c.bf16 %v1304, %v1303
      %v1311 = vpack.c.bf16 %v1306, %v1305
      %v1312 = vpack.c.bf16 %v1308, %v1307
      %s1313 = scalar_lea.vmem %s3, 384
      %v1314 = vld [vmem:[%s1313] sm:$0xf]
      %v1315 = vld [vmem:[%s1313 + $0x4] sm:$0xf]
      %v1316 = vld [vmem:[%s1313 + $0x8] sm:$0xf]
      %v1317 = vld [vmem:[%s1313 + $0xc] sm:$0xf]
      %v1318 = vld [vmem:[%s1313 + $0x10] sm:$0xf]
      %v1319 = vld [vmem:[%s1313 + $0x14] sm:$0xf]
      %v1320 = vld [vmem:[%s1313 + $0x18] sm:$0xf]
      %v1321 = vld [vmem:[%s1313 + $0x1c] sm:$0xf]
      %v1322 = vld [vmem:[%s1313 + $0x20] sm:$0xf]
      %v1323 = vld [vmem:[%s1313 + $0x24] sm:$0xf]
      %v1324 = vld [vmem:[%s1313 + $0x28] sm:$0xf]
      %v1325 = vld [vmem:[%s1313 + $0x2c] sm:$0xf]
      %v1326 = vld [vmem:[%s1313 + $0x30] sm:$0xf]
      %v1327 = vld [vmem:[%s1313 + $0x34] sm:$0xf]
      %v1328 = vld [vmem:[%s1313 + $0x38] sm:$0xf]
      %v1329 = vld [vmem:[%s1313 + $0x3c] sm:$0xf]
      %v1346 = vunpack.c.l.b16 %v1314
      %v1347 = vunpack.c.l.b16 %v1315
      %v1348 = vunpack.c.l.b16 %v1316
      %v1349 = vunpack.c.l.b16 %v1317
      %v1350 = vunpack.c.l.b16 %v1318
      %v1351 = vunpack.c.l.b16 %v1319
      %v1352 = vunpack.c.l.b16 %v1320
      %v1353 = vunpack.c.l.b16 %v1321
      %v1354 = vunpack.c.l.b16 %v1322
      %v1355 = vunpack.c.l.b16 %v1323
      %v1356 = vunpack.c.l.b16 %v1324
      %v1357 = vunpack.c.l.b16 %v1325
      %v1358 = vunpack.c.l.b16 %v1326
      %v1359 = vunpack.c.l.b16 %v1327
      %v1360 = vunpack.c.l.b16 %v1328
      %v1361 = vunpack.c.l.b16 %v1329
      %v1362 = vpack.c.b16 %v1347, %v1346
      %v1363 = vpack.c.b16 %v1349, %v1348
      %v1364 = vpack.c.b16 %v1351, %v1350
      %v1365 = vpack.c.b16 %v1353, %v1352
      %v1366 = vpack.c.b16 %v1355, %v1354
      %v1367 = vpack.c.b16 %v1357, %v1356
      %v1368 = vpack.c.b16 %v1359, %v1358
      %v1369 = vpack.c.b16 %v1361, %v1360
      %1378 = vmatprep.subr.bf16.mxu0 0
      %1379 = vmatpush1.bf16.msra.mxu0 %v1369
      %1380 = vmatprep.subr.bf16.mxu0 0
      %1381 = vmatpush1.bf16.msra.mxu0 %v1368
      %1382 = vmatprep.subr.bf16.mxu0 0
      %1383 = vmatpush1.bf16.msra.mxu0 %v1367
      %1384 = vmatprep.subr.bf16.mxu0 0
      %1385 = vmatpush1.bf16.msra.mxu0 %v1366
      %1386 = vmatprep.subr.bf16.mxu0 0
      %1387 = vmatpush1.bf16.msra.mxu0 %v1365
      %1388 = vmatprep.subr.bf16.mxu0 0
      %1389 = vmatpush1.bf16.msra.mxu0 %v1364
      %1390 = vmatprep.subr.bf16.mxu0 0
      %1391 = vmatpush1.bf16.msra.mxu0 %v1363
      %1392 = vmatprep.subr.bf16.mxu0 0
      %1393 = vmatpush1.bf16.msra.mxu0 %v1362
      %1394 = vmatprep.subr.bf16.mxu0 0
      %1395 = vmatpush2.bf16.msra.mxu0 0
      %1396 = vmatprep.subr.bf16.mxu0 0
      %1397 = vmatpush2.bf16.msra.mxu0 0
      %1398 = vmatprep.subr.bf16.mxu0 0
      %1399 = vmatpush2.bf16.msra.mxu0 0
      %1400 = vmatprep.subr.bf16.mxu0 0
      %1401 = vmatpush2.bf16.msra.mxu0 0
      %1402 = vmatprep.subr.bf16.mxu0 0
      %1403 = vmatpush2.bf16.msra.mxu0 0
      %1404 = vmatprep.subr.bf16.mxu0 0
      %1405 = vmatpush2.bf16.msra.mxu0 0
      %1406 = vmatprep.subr.bf16.mxu0 0
      %1407 = vmatpush2.bf16.msra.mxu0 0
      %1408 = vmatprep.subr.bf16.mxu0 0
      %1409 = vmatpush2.bf16.msra.mxu0 0
      %1410 = vmatprep.mubr.bf16.mxu0 0
      %1411 = vmatmul.mubr.bf16.gmra.mxu0 %v1309
      %v1412 = vpop.f32.mrf.mxu0
      %v1413 = vadd.f32 0.0, %v1412
      %v1414 = vpop.f32.mrf.mxu0
      %v1415 = vpop.f32.mrf.mxu0
      %v1416 = vadd.f32 0.0, %v1415
      %v1417 = vpop.f32.mrf.mxu0
      %1418 = vmatprep.mubr.bf16.mxu0 0
      %1419 = vmatmul.mubr.bf16.gmra.mxu0 %v1310
      %v1420 = vpop.f32.mrf.mxu0
      %v1421 = vadd.f32 0.0, %v1420
      %v1422 = vpop.f32.mrf.mxu0
      %v1423 = vpop.f32.mrf.mxu0
      %v1424 = vadd.f32 0.0, %v1423
      %v1425 = vpop.f32.mrf.mxu0
      %1426 = vmatprep.mubr.bf16.mxu0 0
      %1427 = vmatmul.mubr.bf16.gmra.mxu0 %v1311
      %v1428 = vpop.f32.mrf.mxu0
      %v1429 = vadd.f32 0.0, %v1428
      %v1430 = vpop.f32.mrf.mxu0
      %v1431 = vpop.f32.mrf.mxu0
      %v1432 = vadd.f32 0.0, %v1431
      %v1433 = vpop.f32.mrf.mxu0
      %1434 = vmatprep.mubr.bf16.mxu0 0
      %1435 = vmatmul.mubr.bf16.gmra.mxu0 %v1312
      %v1436 = vpop.f32.mrf.mxu0
      %v1437 = vadd.f32 0.0, %v1436
      %v1438 = vpop.f32.mrf.mxu0
      %v1439 = vpop.f32.mrf.mxu0
      %v1440 = vadd.f32 0.0, %v1439
      %v1441 = vpop.f32.mrf.mxu0
      %1442 = vdwg.mxu0
      %v1443 = vld [vmem:[#allocation3] sm:$0xff]
      %v1444 = vld [vmem:[#allocation3 + $0x8] sm:$0xff]
      %v1445 = vld [vmem:[#allocation3 + $0x10] sm:$0xff]
      %v1446 = vld [vmem:[#allocation3 + $0x18] sm:$0xff]
      %v1447 = vld [vmem:[#allocation3 + $0x20] sm:$0xff]
      %v1448 = vld [vmem:[#allocation3 + $0x28] sm:$0xff]
      %v1449 = vld [vmem:[#allocation3 + $0x30] sm:$0xff]
      %v1450 = vld [vmem:[#allocation3 + $0x38] sm:$0xff]
      %v1451 = vadd.f32 %v1443, %v1413
      %v1452 = vadd.f32 %v1444, %v1416
      %v1453 = vadd.f32 %v1445, %v1421
      %v1454 = vadd.f32 %v1446, %v1424
      %v1455 = vadd.f32 %v1447, %v1429
      %v1456 = vadd.f32 %v1448, %v1432
      %v1457 = vadd.f32 %v1449, %v1437
      %v1458 = vadd.f32 %v1450, %v1440
      %1459 = vst [vmem:[#allocation3] sm:$0xff] %v1451
      %1460 = vst [vmem:[#allocation3 + $0x8] sm:$0xff] %v1452
      %1461 = vst [vmem:[#allocation3 + $0x10] sm:$0xff] %v1453
      %1462 = vst [vmem:[#allocation3 + $0x18] sm:$0xff] %v1454
      %1463 = vst [vmem:[#allocation3 + $0x20] sm:$0xff] %v1455
      %1464 = vst [vmem:[#allocation3 + $0x28] sm:$0xff] %v1456
      %1465 = vst [vmem:[#allocation3 + $0x30] sm:$0xff] %v1457
      %1466 = vst [vmem:[#allocation3 + $0x38] sm:$0xff] %v1458
      %v1467 = vld [vmem:[%s1300 + $0x1] sm:$0xff]
      %v1468 = vld [vmem:[%s1300 + $0x11] sm:$0xff]
      %v1469 = vld [vmem:[%s1300 + $0x21] sm:$0xff]
      %v1470 = vld [vmem:[%s1300 + $0x31] sm:$0xff]
      %v1471 = vld [vmem:[%s1300 + $0x41] sm:$0xff]
      %v1472 = vld [vmem:[%s1300 + $0x51] sm:$0xff]
      %v1473 = vld [vmem:[%s1300 + $0x61] sm:$0xff]
      %v1474 = vld [vmem:[%s1300 + $0x71] sm:$0xff]
      %v1475 = vpack.c.bf16 %v1468, %v1467
      %v1476 = vpack.c.bf16 %v1470, %v1469
      %v1477 = vpack.c.bf16 %v1472, %v1471
      %v1478 = vpack.c.bf16 %v1474, %v1473
      %s1479 = scalar_lea.vmem %s3, 448
      %v1480 = vld [vmem:[%s1479] sm:$0xf]
      %v1481 = vld [vmem:[%s1479 + $0x4] sm:$0xf]
      %v1482 = vld [vmem:[%s1479 + $0x8] sm:$0xf]
      %v1483 = vld [vmem:[%s1479 + $0xc] sm:$0xf]
      %v1484 = vld [vmem:[%s1479 + $0x10] sm:$0xf]
      %v1485 = vld [vmem:[%s1479 + $0x14] sm:$0xf]
      %v1486 = vld [vmem:[%s1479 + $0x18] sm:$0xf]
      %v1487 = vld [vmem:[%s1479 + $0x1c] sm:$0xf]
      %v1488 = vld [vmem:[%s1479 + $0x20] sm:$0xf]
      %v1489 = vld [vmem:[%s1479 + $0x24] sm:$0xf]
      %v1490 = vld [vmem:[%s1479 + $0x28] sm:$0xf]
      %v1491 = vld [vmem:[%s1479 + $0x2c] sm:$0xf]
      %v1492 = vld [vmem:[%s1479 + $0x30] sm:$0xf]
      %v1493 = vld [vmem:[%s1479 + $0x34] sm:$0xf]
      %v1494 = vld [vmem:[%s1479 + $0x38] sm:$0xf]
      %v1495 = vld [vmem:[%s1479 + $0x3c] sm:$0xf]
      %v1512 = vunpack.c.l.b16 %v1480
      %v1513 = vunpack.c.l.b16 %v1481
      %v1514 = vunpack.c.l.b16 %v1482
      %v1515 = vunpack.c.l.b16 %v1483
      %v1516 = vunpack.c.l.b16 %v1484
      %v1517 = vunpack.c.l.b16 %v1485
      %v1518 = vunpack.c.l.b16 %v1486
      %v1519 = vunpack.c.l.b16 %v1487
      %v1520 = vunpack.c.l.b16 %v1488
      %v1521 = vunpack.c.l.b16 %v1489
      %v1522 = vunpack.c.l.b16 %v1490
      %v1523 = vunpack.c.l.b16 %v1491
      %v1524 = vunpack.c.l.b16 %v1492
      %v1525 = vunpack.c.l.b16 %v1493
      %v1526 = vunpack.c.l.b16 %v1494
      %v1527 = vunpack.c.l.b16 %v1495
      %v1528 = vpack.c.b16 %v1513, %v1512
      %v1529 = vpack.c.b16 %v1515, %v1514
      %v1530 = vpack.c.b16 %v1517, %v1516
      %v1531 = vpack.c.b16 %v1519, %v1518
      %v1532 = vpack.c.b16 %v1521, %v1520
      %v1533 = vpack.c.b16 %v1523, %v1522
      %v1534 = vpack.c.b16 %v1525, %v1524
      %v1535 = vpack.c.b16 %v1527, %v1526
      %1544 = vmatprep.subr.bf16.mxu0 0
      %1545 = vmatpush1.bf16.msra.mxu0 %v1535
      %1546 = vmatprep.subr.bf16.mxu0 0
      %1547 = vmatpush1.bf16.msra.mxu0 %v1534
      %1548 = vmatprep.subr.bf16.mxu0 0
      %1549 = vmatpush1.bf16.msra.mxu0 %v1533
      %1550 = vmatprep.subr.bf16.mxu0 0
      %1551 = vmatpush1.bf16.msra.mxu0 %v1532
      %1552 = vmatprep.subr.bf16.mxu0 0
      %1553 = vmatpush1.bf16.msra.mxu0 %v1531
      %1554 = vmatprep.subr.bf16.mxu0 0
      %1555 = vmatpush1.bf16.msra.mxu0 %v1530
      %1556 = vmatprep.subr.bf16.mxu0 0
      %1557 = vmatpush1.bf16.msra.mxu0 %v1529
      %1558 = vmatprep.subr.bf16.mxu0 0
      %1559 = vmatpush1.bf16.msra.mxu0 %v1528
      %1560 = vmatprep.subr.bf16.mxu0 0
      %1561 = vmatpush2.bf16.msra.mxu0 0
      %1562 = vmatprep.subr.bf16.mxu0 0
      %1563 = vmatpush2.bf16.msra.mxu0 0
      %1564 = vmatprep.subr.bf16.mxu0 0
      %1565 = vmatpush2.bf16.msra.mxu0 0
      %1566 = vmatprep.subr.bf16.mxu0 0
      %1567 = vmatpush2.bf16.msra.mxu0 0
      %1568 = vmatprep.subr.bf16.mxu0 0
      %1569 = vmatpush2.bf16.msra.mxu0 0
      %1570 = vmatprep.subr.bf16.mxu0 0
      %1571 = vmatpush2.bf16.msra.mxu0 0
      %1572 = vmatprep.subr.bf16.mxu0 0
      %1573 = vmatpush2.bf16.msra.mxu0 0
      %1574 = vmatprep.subr.bf16.mxu0 0
      %1575 = vmatpush2.bf16.msra.mxu0 0
      %1576 = vmatprep.mubr.bf16.mxu0 0
      %1577 = vmatmul.mubr.bf16.gmra.mxu0 %v1475
      %v1578 = vpop.f32.mrf.mxu0
      %v1579 = vadd.f32 0.0, %v1578
      %v1580 = vpop.f32.mrf.mxu0
      %v1581 = vpop.f32.mrf.mxu0
      %v1582 = vadd.f32 0.0, %v1581
      %v1583 = vpop.f32.mrf.mxu0
      %1584 = vmatprep.mubr.bf16.mxu0 0
      %1585 = vmatmul.mubr.bf16.gmra.mxu0 %v1476
      %v1586 = vpop.f32.mrf.mxu0
      %v1587 = vadd.f32 0.0, %v1586
      %v1588 = vpop.f32.mrf.mxu0
      %v1589 = vpop.f32.mrf.mxu0
      %v1590 = vadd.f32 0.0, %v1589
      %v1591 = vpop.f32.mrf.mxu0
      %1592 = vmatprep.mubr.bf16.mxu0 0
      %1593 = vmatmul.mubr.bf16.gmra.mxu0 %v1477
      %v1594 = vpop.f32.mrf.mxu0
      %v1595 = vadd.f32 0.0, %v1594
      %v1596 = vpop.f32.mrf.mxu0
      %v1597 = vpop.f32.mrf.mxu0
      %v1598 = vadd.f32 0.0, %v1597
      %v1599 = vpop.f32.mrf.mxu0
      %1600 = vmatprep.mubr.bf16.mxu0 0
      %1601 = vmatmul.mubr.bf16.gmra.mxu0 %v1478
      %v1602 = vpop.f32.mrf.mxu0
      %v1603 = vadd.f32 0.0, %v1602
      %v1604 = vpop.f32.mrf.mxu0
      %v1605 = vpop.f32.mrf.mxu0
      %v1606 = vadd.f32 0.0, %v1605
      %v1607 = vpop.f32.mrf.mxu0
      %1608 = vdwg.mxu0
      %v1609 = vld [vmem:[#allocation3] sm:$0xff]
      %v1610 = vld [vmem:[#allocation3 + $0x8] sm:$0xff]
      %v1611 = vld [vmem:[#allocation3 + $0x10] sm:$0xff]
      %v1612 = vld [vmem:[#allocation3 + $0x18] sm:$0xff]
      %v1613 = vld [vmem:[#allocation3 + $0x20] sm:$0xff]
      %v1614 = vld [vmem:[#allocation3 + $0x28] sm:$0xff]
      %v1615 = vld [vmem:[#allocation3 + $0x30] sm:$0xff]
      %v1616 = vld [vmem:[#allocation3 + $0x38] sm:$0xff]
      %v1617 = vadd.f32 %v1609, %v1579
      %v1618 = vadd.f32 %v1610, %v1582
      %v1619 = vadd.f32 %v1611, %v1587
      %v1620 = vadd.f32 %v1612, %v1590
      %v1621 = vadd.f32 %v1613, %v1595
      %v1622 = vadd.f32 %v1614, %v1598
      %v1623 = vadd.f32 %v1615, %v1603
      %v1624 = vadd.f32 %v1616, %v1606
      %1625 = vst [vmem:[#allocation3] sm:$0xff] %v1617
      %1626 = vst [vmem:[#allocation3 + $0x8] sm:$0xff] %v1618
      %1627 = vst [vmem:[#allocation3 + $0x10] sm:$0xff] %v1619
      %1628 = vst [vmem:[#allocation3 + $0x18] sm:$0xff] %v1620
      %1629 = vst [vmem:[#allocation3 + $0x20] sm:$0xff] %v1621
      %1630 = vst [vmem:[#allocation3 + $0x28] sm:$0xff] %v1622
      %1631 = vst [vmem:[#allocation3 + $0x30] sm:$0xff] %v1623
      %1632 = vst [vmem:[#allocation3 + $0x38] sm:$0xff] %v1624
      %v1633 = vld [vmem:[%s1300 + $0x2] sm:$0xff]
      %v1634 = vld [vmem:[%s1300 + $0x12] sm:$0xff]
      %v1635 = vld [vmem:[%s1300 + $0x22] sm:$0xff]
      %v1636 = vld [vmem:[%s1300 + $0x32] sm:$0xff]
      %v1637 = vld [vmem:[%s1300 + $0x42] sm:$0xff]
      %v1638 = vld [vmem:[%s1300 + $0x52] sm:$0xff]
      %v1639 = vld [vmem:[%s1300 + $0x62] sm:$0xff]
      %v1640 = vld [vmem:[%s1300 + $0x72] sm:$0xff]
      %v1641 = vpack.c.bf16 %v1634, %v1633
      %v1642 = vpack.c.bf16 %v1636, %v1635
      %v1643 = vpack.c.bf16 %v1638, %v1637
      %v1644 = vpack.c.bf16 %v1640, %v1639
      %s1645 = scalar_lea.vmem %s3, 512
      %v1646 = vld [vmem:[%s1645] sm:$0xf]
      %v1647 = vld [vmem:[%s1645 + $0x4] sm:$0xf]
      %v1648 = vld [vmem:[%s1645 + $0x8] sm:$0xf]
      %v1649 = vld [vmem:[%s1645 + $0xc] sm:$0xf]
      %v1650 = vld [vmem:[%s1645 + $0x10] sm:$0xf]
      %v1651 = vld [vmem:[%s1645 + $0x14] sm:$0xf]
      %v1652 = vld [vmem:[%s1645 + $0x18] sm:$0xf]
      %v1653 = vld [vmem:[%s1645 + $0x1c] sm:$0xf]
      %v1654 = vld [vmem:[%s1645 + $0x20] sm:$0xf]
      %v1655 = vld [vmem:[%s1645 + $0x24] sm:$0xf]
      %v1656 = vld [vmem:[%s1645 + $0x28] sm:$0xf]
      %v1657 = vld [vmem:[%s1645 + $0x2c] sm:$0xf]
      %v1658 = vld [vmem:[%s1645 + $0x30] sm:$0xf]
      %v1659 = vld [vmem:[%s1645 + $0x34] sm:$0xf]
      %v1660 = vld [vmem:[%s1645 + $0x38] sm:$0xf]
      %v1661 = vld [vmem:[%s1645 + $0x3c] sm:$0xf]
      %v1678 = vunpack.c.l.b16 %v1646
      %v1679 = vunpack.c.l.b16 %v1647
      %v1680 = vunpack.c.l.b16 %v1648
      %v1681 = vunpack.c.l.b16 %v1649
      %v1682 = vunpack.c.l.b16 %v1650
      %v1683 = vunpack.c.l.b16 %v1651
      %v1684 = vunpack.c.l.b16 %v1652
      %v1685 = vunpack.c.l.b16 %v1653
      %v1686 = vunpack.c.l.b16 %v1654
      %v1687 = vunpack.c.l.b16 %v1655
      %v1688 = vunpack.c.l.b16 %v1656
      %v1689 = vunpack.c.l.b16 %v1657
      %v1690 = vunpack.c.l.b16 %v1658
      %v1691 = vunpack.c.l.b16 %v1659
      %v1692 = vunpack.c.l.b16 %v1660
      %v1693 = vunpack.c.l.b16 %v1661
      %v1694 = vpack.c.b16 %v1679, %v1678
      %v1695 = vpack.c.b16 %v1681, %v1680
      %v1696 = vpack.c.b16 %v1683, %v1682
      %v1697 = vpack.c.b16 %v1685, %v1684
      %v1698 = vpack.c.b16 %v1687, %v1686
      %v1699 = vpack.c.b16 %v1689, %v1688
      %v1700 = vpack.c.b16 %v1691, %v1690
      %v1701 = vpack.c.b16 %v1693, %v1692
      %1710 = vmatprep.subr.bf16.mxu0 0
      %1711 = vmatpush1.bf16.msra.mxu0 %v1701
      %1712 = vmatprep.subr.bf16.mxu0 0
      %1713 = vmatpush1.bf16.msra.mxu0 %v1700
      %1714 = vmatprep.subr.bf16.mxu0 0
      %1715 = vmatpush1.bf16.msra.mxu0 %v1699
      %1716 = vmatprep.subr.bf16.mxu0 0
      %1717 = vmatpush1.bf16.msra.mxu0 %v1698
      %1718 = vmatprep.subr.bf16.mxu0 0
      %1719 = vmatpush1.bf16.msra.mxu0 %v1697
      %1720 = vmatprep.subr.bf16.mxu0 0
      %1721 = vmatpush1.bf16.msra.mxu0 %v1696
      %1722 = vmatprep.subr.bf16.mxu0 0
      %1723 = vmatpush1.bf16.msra.mxu0 %v1695
      %1724 = vmatprep.subr.bf16.mxu0 0
      %1725 = vmatpush1.bf16.msra.mxu0 %v1694
      %1726 = vmatprep.subr.bf16.mxu0 0
      %1727 = vmatpush2.bf16.msra.mxu0 0
      %1728 = vmatprep.subr.bf16.mxu0 0
      %1729 = vmatpush2.bf16.msra.mxu0 0
      %1730 = vmatprep.subr.bf16.mxu0 0
      %1731 = vmatpush2.bf16.msra.mxu0 0
      %1732 = vmatprep.subr.bf16.mxu0 0
      %1733 = vmatpush2.bf16.msra.mxu0 0
      %1734 = vmatprep.subr.bf16.mxu0 0
      %1735 = vmatpush2.bf16.msra.mxu0 0
      %1736 = vmatprep.subr.bf16.mxu0 0
      %1737 = vmatpush2.bf16.msra.mxu0 0
      %1738 = vmatprep.subr.bf16.mxu0 0
      %1739 = vmatpush2.bf16.msra.mxu0 0
      %1740 = vmatprep.subr.bf16.mxu0 0
      %1741 = vmatpush2.bf16.msra.mxu0 0
      %1742 = vmatprep.mubr.bf16.mxu0 0
      %1743 = vmatmul.mubr.bf16.gmra.mxu0 %v1641
      %v1744 = vpop.f32.mrf.mxu0
      %v1745 = vadd.f32 0.0, %v1744
      %v1746 = vpop.f32.mrf.mxu0
      %v1747 = vpop.f32.mrf.mxu0
      %v1748 = vadd.f32 0.0, %v1747
      %v1749 = vpop.f32.mrf.mxu0
      %1750 = vmatprep.mubr.bf16.mxu0 0
      %1751 = vmatmul.mubr.bf16.gmra.mxu0 %v1642
      %v1752 = vpop.f32.mrf.mxu0
      %v1753 = vadd.f32 0.0, %v1752
      %v1754 = vpop.f32.mrf.mxu0
      %v1755 = vpop.f32.mrf.mxu0
      %v1756 = vadd.f32 0.0, %v1755
      %v1757 = vpop.f32.mrf.mxu0
      %1758 = vmatprep.mubr.bf16.mxu0 0
      %1759 = vmatmul.mubr.bf16.gmra.mxu0 %v1643
      %v1760 = vpop.f32.mrf.mxu0
      %v1761 = vadd.f32 0.0, %v1760
      %v1762 = vpop.f32.mrf.mxu0
      %v1763 = vpop.f32.mrf.mxu0
      %v1764 = vadd.f32 0.0, %v1763
      %v1765 = vpop.f32.mrf.mxu0
      %1766 = vmatprep.mubr.bf16.mxu0 0
      %1767 = vmatmul.mubr.bf16.gmra.mxu0 %v1644
      %v1768 = vpop.f32.mrf.mxu0
      %v1769 = vadd.f32 0.0, %v1768
      %v1770 = vpop.f32.mrf.mxu0
      %v1771 = vpop.f32.mrf.mxu0
      %v1772 = vadd.f32 0.0, %v1771
      %v1773 = vpop.f32.mrf.mxu0
      %1774 = vdwg.mxu0
      %v1775 = vld [vmem:[#allocation3] sm:$0xff]
      %v1776 = vld [vmem:[#allocation3 + $0x8] sm:$0xff]
      %v1777 = vld [vmem:[#allocation3 + $0x10] sm:$0xff]
      %v1778 = vld [vmem:[#allocation3 + $0x18] sm:$0xff]
      %v1779 = vld [vmem:[#allocation3 + $0x20] sm:$0xff]
      %v1780 = vld [vmem:[#allocation3 + $0x28] sm:$0xff]
      %v1781 = vld [vmem:[#allocation3 + $0x30] sm:$0xff]
      %v1782 = vld [vmem:[#allocation3 + $0x38] sm:$0xff]
      %v1783 = vadd.f32 %v1775, %v1745
      %v1784 = vadd.f32 %v1776, %v1748
      %v1785 = vadd.f32 %v1777, %v1753
      %v1786 = vadd.f32 %v1778, %v1756
      %v1787 = vadd.f32 %v1779, %v1761
      %v1788 = vadd.f32 %v1780, %v1764
      %v1789 = vadd.f32 %v1781, %v1769
      %v1790 = vadd.f32 %v1782, %v1772
      %1791 = vst [vmem:[#allocation3] sm:$0xff] %v1783
      %1792 = vst [vmem:[#allocation3 + $0x8] sm:$0xff] %v1784
      %1793 = vst [vmem:[#allocation3 + $0x10] sm:$0xff] %v1785
      %1794 = vst [vmem:[#allocation3 + $0x18] sm:$0xff] %v1786
      %1795 = vst [vmem:[#allocation3 + $0x20] sm:$0xff] %v1787
      %1796 = vst [vmem:[#allocation3 + $0x28] sm:$0xff] %v1788
      %1797 = vst [vmem:[#allocation3 + $0x30] sm:$0xff] %v1789
      %1798 = vst [vmem:[#allocation3 + $0x38] sm:$0xff] %v1790
      %v1799 = vld [vmem:[#allocation3] sm:$0xff]
      %v1800 = vld [vmem:[#allocation3 + $0x8] sm:$0xff]
      %v1801 = vld [vmem:[#allocation3 + $0x10] sm:$0xff]
      %v1802 = vld [vmem:[#allocation3 + $0x18] sm:$0xff]
      %v1803 = vld [vmem:[#allocation3 + $0x20] sm:$0xff]
      %v1804 = vld [vmem:[#allocation3 + $0x28] sm:$0xff]
      %v1805 = vld [vmem:[#allocation3 + $0x30] sm:$0xff]
      %v1806 = vld [vmem:[#allocation3 + $0x38] sm:$0xff]
      %v1807 = vld [vmem:[%s239] sm:$0xff]
      %v1808 = vld [vmem:[%s239 + $0x8] sm:$0xff]
      %v1809 = vld [vmem:[%s239 + $0x10] sm:$0xff]
      %v1810 = vld [vmem:[%s239 + $0x18] sm:$0xff]
      %v1811 = vld [vmem:[%s239 + $0x20] sm:$0xff]
      %v1812 = vld [vmem:[%s239 + $0x28] sm:$0xff]
      %v1813 = vld [vmem:[%s239 + $0x30] sm:$0xff]
      %v1814 = vld [vmem:[%s239 + $0x38] sm:$0xff]
      %v1815 = vadd.f32 %v1799, %v1807
      %v1816 = vadd.f32 %v1800, %v1808
      %v1817 = vadd.f32 %v1801, %v1809
      %v1818 = vadd.f32 %v1802, %v1810
      %v1819 = vadd.f32 %v1803, %v1811
      %v1820 = vadd.f32 %v1804, %v1812
      %v1821 = vadd.f32 %v1805, %v1813
      %v1822 = vadd.f32 %v1806, %v1814
      %1823 = vst [vmem:[%s244] sm:$0xff] %v1815
      %1824 = vst [vmem:[%s244 + $0x8] sm:$0xff] %v1816
      %1825 = vst [vmem:[%s244 + $0x10] sm:$0xff] %v1817
      %1826 = vst [vmem:[%s244 + $0x18] sm:$0xff] %v1818
      %1827 = vst [vmem:[%s244 + $0x20] sm:$0xff] %v1819
      %1828 = vst [vmem:[%s244 + $0x28] sm:$0xff] %v1820
      %1829 = vst [vmem:[%s244 + $0x30] sm:$0xff] %v1821
      %1830 = vst [vmem:[%s244 + $0x38] sm:$0xff] %v1822
      %p1831 = scmp.lt.s32.totalorder %s16, 1
      %s1832 = scalar_select %p1831, %s16, 1
      %s1833 = smul.addr %s1832, 8
      %s1834 = smul.addr %s1833, 8
      %s1835 = scalar_lea.vmem %s5, %s1834
      // Predicated region
      $region41: #{basic_block_forward.5} parent=39 // pred_check
        %p1836 = pneg %p149
      $region42: #{basic_block_forward.5} parent=39 // pred_check_branch
        %1838 = sbr.rel (%p1836) target = $region44
      $region43: #{basic_block_forward.5} parent=39 // pred_region
        _
      $region44: #{basic_block_forward.5} parent=39 // pred_fallthru
        _
    $region40: #{basic_block_forward.5} parent=5 // pred_fallthru
      _
    %p1839 = scmp.le.s32.totalorder 2, %s11
    // Predicated region
    $region45: #{basic_block_forward.5} parent=5 // pred_check
      %p1840 = pneg %p1839
    $region46: #{basic_block_forward.5} parent=5 // pred_check_branch
      %1842 = sbr.rel (%p1840) target = $region48
    $region47: #{basic_block_forward.5} parent=5 // pred_region
      %s1843 = ssub.s32 %s11, 2
      // Predicated region
      $region49: #{basic_block_forward.5} parent=47 // pred_check
        %p1844 = pneg %p155
      $region50: #{basic_block_forward.5} parent=47 // pred_check_branch
        %1846 = sbr.rel (%p1844) target = $region52
      $region51: #{basic_block_forward.5} parent=47 // pred_region
        %p1847 = scmp.lt.s32.totalorder %s17, 1
        %s1848 = scalar_select %p1847, %s17, 1
        %s1849 = smul.addr %s1848, 8
        %s1850 = smul.addr %s1849, 8
        %s1851 = scalar_lea.vmem %s5, %s1850
      $region52: #{basic_block_forward.5} parent=47 // pred_fallthru
        _
    $region48: #{basic_block_forward.5} parent=5 // pred_fallthru
      _
  $region6: #{basic_block_forward.5} parent=0 // loop_footer
    %s15 = sadd.s32 1, %s11
  $region7: #{basic_block_forward.5} parent=0 // loop_footer_branch
    %10 = sbr.rel target = $region3
  $region8: #{basic_block_forward.5} parent=0 // loop_exit
    _

</llo_original>
